<compile_context>
chip_gen: v7x
topology: tpu7x:2x2x1
jax: 0.10.0
libtpu: 0.0.40
codegen_flags: <defaults>
</compile_context>

<pallas_src>
import functools

import jax
import jax.numpy as jnp
from jax.experimental import pallas as pl
from jax.experimental.pallas import tpu as pltpu

HIDDEN = 2048
OUT_DIM = 964


def encoder_head_kernel(x_ref, we_ref, be_ref, pool_ref, w1_ref, b1_ref, h_ref):
    # Stage 1 (single grid step): frozen encoder (1x1 conv + ReLU + global average
    # pool == torch.squeeze of the (B, emb, 1, 1) output) + projector layer 1 + ReLU.
    # x    : (B*HW, C) f32      we/be : (C, E) f32, (1, E) f32
    # pool : (B_pad, B*HW) f32  block-diagonal 1/HW pooling matrix (pads batch to 8)
    # w1/b1: (E, HIDDEN) bf16, (1, HIDDEN) f32      h : (B_pad, HIDDEN) f32
    feat = jnp.dot(x_ref[...], we_ref[...], preferred_element_type=jnp.float32)
    feat = jnp.maximum(feat + be_ref[...], 0.0)                                  # (B*HW, E)
    # Global average pool as an MXU contraction (not a sublane-axis reduction).
    pooled = jnp.dot(pool_ref[...], feat, preferred_element_type=jnp.float32)   # (B_pad, E)
    # Projector layer 1: bf16 weight bytes, f32 activations / accumulation.
    h = jnp.dot(pooled, w1_ref[...].astype(jnp.float32),
                preferred_element_type=jnp.float32)                             # (B_pad, HIDDEN)
    h_ref[...] = jnp.maximum(h + b1_ref[...], 0.0)


def output_layer_kernel(h_ref, w2_ref, b2_ref, out_ref):
    # Stage 2 (one lane-dense N-tile of the streamed w2 per grid step):
    # projector layer 2.  h : (B_pad, HIDDEN) f32, w2 tile : (HIDDEN, TN) bf16.
    out_ref[...] = jnp.dot(h_ref[...], w2_ref[...].astype(jnp.float32),
                           preferred_element_type=jnp.float32) + b2_ref[...]


def prepare_params(params, *, batch, hw, tile_n=512):
    """One-time weight/layout prep. Cache the result; do NOT redo per forward call.

    * w1 / w2 (the dominant DMA bytes; w2 is the streamed operand) -> bfloat16.
    * w2 / b2 output dim zero-padded 964 -> multiple of tile_n (1024) so the streamed
      stage-2 tiles and the output stores are lane-dense.
    * Block-diagonal (B_pad, B*HW) pooling matrix with 1/HW entries: turns the global
      average pool into an MXU contraction and pads batch up to a full 8-row sublane
      group (padded rows are zero and sliced off after the kernel).
    """
    we, be, w1, b1, w2, b2 = params
    hidden, n_out = w2.shape

    n_pad = tile_n * pl.cdiv(n_out, tile_n)
    w1_p = w1.astype(jnp.bfloat16)
    w2_p = jnp.zeros((hidden, n_pad), jnp.bfloat16).at[:, :n_out].set(
        w2.astype(jnp.bfloat16))
    b2_p = jnp.zeros((1, n_pad), jnp.float32).at[:, :n_out].set(b2)

    b_pad = 8 * pl.cdiv(batch, 8)
    rows = jnp.arange(b_pad, dtype=jnp.int32)[:, None]
    cols = jnp.arange(batch * hw, dtype=jnp.int32)[None, :]
    pool = jnp.where(cols // hw == rows, 1.0 / hw, 0.0).astype(jnp.float32)

    return (we.astype(jnp.float32), be.astype(jnp.float32), w1_p,
            b1.astype(jnp.float32), w2_p, b2_p, pool)


@functools.partial(jax.jit, static_argnames=("n_out", "tile_n"))
def classifier_clr_forward(x_nchw, prepped, *, n_out=OUT_DIM, tile_n=512):
    """x_nchw: (B, C, H, W) float32 (PyTorch layout); prepped: prepare_params() output."""
    we, be, w1_p, b1, w2_p, b2_p, pool = prepped
    B, C, H, W = x_nchw.shape
    hw = H * W
    assert pool.shape[1] == B * hw, "prepared pooling matrix does not match input shape"
    b_pad = pool.shape[0]
    E = we.shape[1]
    hidden = w1_p.shape[1]
    n_pad = w2_p.shape[1]
    assert n_pad % tile_n == 0

    # NCHW -> (B*HW, C): plain 2-D matmuls in the kernel (no batched dot_general).
    x2d = jnp.transpose(x_nchw, (0, 2, 3, 1)).reshape(B * hw, C).astype(jnp.float32)

    # --- Stage 1: encoder + pool + projector layer 1 (one shot, everything in VMEM) ---
    h = pl.pallas_call(
        encoder_head_kernel,
        out_shape=jax.ShapeDtypeStruct((b_pad, hidden), jnp.float32),
        grid=(1,),
        in_specs=[
            pl.BlockSpec((B * hw, C), lambda i: (0, 0)),      # x
            pl.BlockSpec((C, E), lambda i: (0, 0)),           # we
            pl.BlockSpec((1, E), lambda i: (0, 0)),           # be
            pl.BlockSpec((b_pad, B * hw), lambda i: (0, 0)),  # pooling matrix
            pl.BlockSpec((E, hidden), lambda i: (0, 0)),      # w1 (bf16)
            pl.BlockSpec((1, hidden), lambda i: (0, 0)),      # b1
        ],
        out_specs=pl.BlockSpec((b_pad, hidden), lambda i: (0, 0)),
        compiler_params=pltpu.CompilerParams(
            dimension_semantics=("arbitrary",),
            vmem_limit_bytes=32 * 1024 * 1024,
        ),
    )(x2d, we, be, pool, w1_p, b1)

    # --- Stage 2: stream w2 in lane-dense (HIDDEN, tile_n) tiles; no cross-step
    # state, so the N-tile axis is "parallel" (v7x shards it across both cores). ---
    out_padded = pl.pallas_call(
        output_layer_kernel,
        out_shape=jax.ShapeDtypeStruct((b_pad, n_pad), jnp.float32),
        grid=(n_pad // tile_n,),
        in_specs=[
            pl.BlockSpec((b_pad, hidden), lambda j: (0, 0)),   # h (small, constant)
            pl.BlockSpec((hidden, tile_n), lambda j: (0, j)),  # w2 N-tile (bf16, streamed)
            pl.BlockSpec((1, tile_n), lambda j: (0, j)),       # b2 N-tile
        ],
        out_specs=pl.BlockSpec((b_pad, tile_n), lambda j: (0, j)),
        compiler_params=pltpu.CompilerParams(
            dimension_semantics=("parallel",),
            vmem_limit_bytes=32 * 1024 * 1024,
        ),
    )(h, w2_p, b2_p)

    return out_padded[:B, :n_out]


def init_params(key, in_channels, emb_size, hidden=HIDDEN, out_dim=OUT_DIM):
    """Deterministic synthetic parameter init (PyTorch-Linear-like scaling)."""
    ks = jax.random.split(key, 6)

    def lin(kw, kb, fan_in, fan_out):
        bound = 1.0 / jnp.sqrt(fan_in)
        w = jax.random.uniform(kw, (fan_in, fan_out), jnp.float32, -bound, bound)
        b = jax.random.uniform(kb, (1, fan_out), jnp.float32, -bound, bound)
        return w, b

    we, be = lin(ks[0], ks[1], in_channels, emb_size)     # frozen encoder (1x1 conv)
    w1, b1 = lin(ks[2], ks[3], emb_size, hidden)          # projector layer 1
    w2, b2 = lin(ks[4], ks[5], hidden, out_dim)           # projector layer 2
    return we, be, w1, b1, w2, b2


def reference_forward(x_nchw, params):
    """Plain-JAX f32 reference mirroring the PyTorch forward."""
    we, be, w1, b1, w2, b2 = params
    B, C, H, W = x_nchw.shape
    x = jnp.transpose(x_nchw, (0, 2, 3, 1)).reshape(B, H * W, C)
    feat = jnp.maximum(x @ we + be, 0.0)                  # (B, HW, E)
    pooled = jnp.mean(feat, axis=1)                       # squeeze((B,E,1,1)) -> (B,E)
    h = jnp.maximum(pooled @ w1 + b1, 0.0)
    return h @ w2 + b2


if __name__ == "__main__":
    key = jax.random.PRNGKey(0)
    k_x, k_p = jax.random.split(key)

    B, C, H, W = 2, 4, 16, 16       # small NCHW input, matching PyTorch convention
    emb_size = 32                   # synthetic encoder embedding size

    x = jax.random.normal(k_x, (B, C, H, W), jnp.float32)
    params = init_params(k_p, C, emb_size)

    # One-time weight prep (bf16 casts, 964->1024 pad, pooling matrix). Cached and
    # reused across forward calls instead of being rebuilt inside the forward.
    prepped = prepare_params(params, batch=B, hw=H * W)

    out = classifier_clr_forward(x, prepped)
    out = jax.block_until_ready(out)

    ref = reference_forward(x, params)
    assert out.shape == (B, OUT_DIM), out.shape
    # Loose tolerance: kernel uses bf16 projector weights (f32 activations/accumulation).
    assert jnp.allclose(out, ref, atol=2e-2, rtol=2e-2), "mismatch vs reference"

    print("KERNEL_OK")
</pallas_src>

<mosaic_0001>
module attributes {stable_mosaic.version = 11 : i64} {
  func.func @output_layer_kernel(%arg0: i32, %arg1: memref<8x2048xf32, #tpu.memory_space<vmem>>, %arg2: memref<2048x512xbf16, #tpu.memory_space<vmem>>, %arg3: memref<1x512xf32, #tpu.memory_space<vmem>>, %arg4: memref<8x512xf32, #tpu.memory_space<vmem>>) attributes {dimension_semantics = [#tpu.dimension_semantics<parallel>], iteration_bounds = array<i64: 2>, scalar_prefetch = 0 : i64, scratch_operands = 0 : i64, tpu.core_type = #tpu.core_type<tc>, window_params = [{pipeline_mode = #tpu.pipeline_mode<synchronous>, transform_indices = @transform_0, window_bounds = array<i64: 8, 2048>}, {transform_indices = @transform_1, window_bounds = array<i64: 2048, 512>}, {transform_indices = @transform_2, window_bounds = array<i64: 1, 512>}, {transform_indices = @transform_3, window_bounds = array<i64: 8, 512>}]} {
    %c0 = arith.constant 0 : index
    %c0_0 = arith.constant 0 : index
    %0 = vector.load %arg1[%c0, %c0_0] : memref<8x2048xf32, #tpu.memory_space<vmem>>, vector<8x2048xf32>
    %c0_1 = arith.constant 0 : index
    %c0_2 = arith.constant 0 : index
    %1 = vector.load %arg2[%c0_1, %c0_2] : memref<2048x512xbf16, #tpu.memory_space<vmem>>, vector<2048x512xbf16>
    %2 = arith.extf %1 : vector<2048x512xbf16> to vector<2048x512xf32>
    %cst = arith.constant dense<0.000000e+00> : vector<8x512xf32>
    %3 = tpu.matmul %0, %2, %cst {dimension_numbers = #tpu.dot_dimension_numbers<[1], [0], [0], [1], [0, 0, 1, 1], [], []>} : vector<8x2048xf32>, vector<2048x512xf32>, vector<8x512xf32> -> vector<8x512xf32>
    %c0_3 = arith.constant 0 : index
    %c0_4 = arith.constant 0 : index
    %4 = vector.load %arg3[%c0_3, %c0_4] : memref<1x512xf32, #tpu.memory_space<vmem>>, vector<1x512xf32>
    %5 = vector.broadcast %4 : vector<1x512xf32> to vector<8x512xf32>
    %6 = arith.addf %3, %5 : vector<8x512xf32>
    %c0_5 = arith.constant 0 : index
    %c0_6 = arith.constant 0 : index
    %7 = vector.load %arg4[%c0_5, %c0_6] : memref<8x512xf32, #tpu.memory_space<vmem>>, vector<8x512xf32>
    tpu.vector_store %arg4[%c0_5, %c0_6], %6 {strides = array<i32>} : memref<8x512xf32, #tpu.memory_space<vmem>>, vector<8x512xf32>,
    return
  }
  func.func @transform_0(%arg0: i32) -> (i32, i32) {
    %c0_i32 = arith.constant 0 : i32
    %c0_i32_0 = arith.constant 0 : i32
    %c0_i32_1 = arith.constant 0 : i32
    return %c0_i32, %c0_i32_0 : i32, i32
  }
  func.func @transform_1(%arg0: i32) -> (i32, i32) {
    %c0_i32 = arith.constant 0 : i32
    %c0_i32_0 = arith.constant 0 : i32
    return %c0_i32, %arg0 : i32, i32
  }
  func.func @transform_2(%arg0: i32) -> (i32, i32) {
    %c0_i32 = arith.constant 0 : i32
    %c0_i32_0 = arith.constant 0 : i32
    return %c0_i32, %arg0 : i32, i32
  }
  func.func @transform_3(%arg0: i32) -> (i32, i32) {
    %c0_i32 = arith.constant 0 : i32
    %c0_i32_0 = arith.constant 0 : i32
    return %c0_i32, %arg0 : i32, i32
  }
}

module attributes {stable_mosaic.version = 11 : i64} {
  func.func @encoder_head_kernel(%arg0: i32, %arg1: memref<512x4xf32, #tpu.memory_space<vmem>>, %arg2: memref<4x32xf32, #tpu.memory_space<vmem>>, %arg3: memref<1x32xf32, #tpu.memory_space<vmem>>, %arg4: memref<8x512xf32, #tpu.memory_space<vmem>>, %arg5: memref<32x2048xbf16, #tpu.memory_space<vmem>>, %arg6: memref<1x2048xf32, #tpu.memory_space<vmem>>, %arg7: memref<8x2048xf32, #tpu.memory_space<vmem>>) attributes {dimension_semantics = [#tpu.dimension_semantics<arbitrary>], iteration_bounds = array<i64: 1>, scalar_prefetch = 0 : i64, scratch_operands = 0 : i64, tpu.core_type = #tpu.core_type<tc>, window_params = [{pipeline_mode = #tpu.pipeline_mode<synchronous>, transform_indices = @transform_0, window_bounds = array<i64: 512, 4>}, {pipeline_mode = #tpu.pipeline_mode<synchronous>, transform_indices = @transform_1, window_bounds = array<i64: 4, 32>}, {pipeline_mode = #tpu.pipeline_mode<synchronous>, transform_indices = @transform_2, window_bounds = array<i64: 1, 32>}, {pipeline_mode = #tpu.pipeline_mode<synchronous>, transform_indices = @transform_3, window_bounds = array<i64: 8, 512>}, {pipeline_mode = #tpu.pipeline_mode<synchronous>, transform_indices = @transform_4, window_bounds = array<i64: 32, 2048>}, {pipeline_mode = #tpu.pipeline_mode<synchronous>, transform_indices = @transform_5, window_bounds = array<i64: 1, 2048>}, {pipeline_mode = #tpu.pipeline_mode<synchronous>, transform_indices = @transform_6, window_bounds = array<i64: 8, 2048>}]} {
    %c0 = arith.constant 0 : index
    %c0_0 = arith.constant 0 : index
    %0 = vector.load %arg1[%c0, %c0_0] : memref<512x4xf32, #tpu.memory_space<vmem>>, vector<512x4xf32>
    %c0_1 = arith.constant 0 : index
    %c0_2 = arith.constant 0 : index
    %1 = vector.load %arg2[%c0_1, %c0_2] : memref<4x32xf32, #tpu.memory_space<vmem>>, vector<4x32xf32>
    %cst = arith.constant dense<0.000000e+00> : vector<512x32xf32>
    %2 = tpu.matmul %0, %1, %cst {dimension_numbers = #tpu.dot_dimension_numbers<[1], [0], [0], [1], [0, 0, 1, 1], [], []>} : vector<512x4xf32>, vector<4x32xf32>, vector<512x32xf32> -> vector<512x32xf32>
    %c0_3 = arith.constant 0 : index
    %c0_4 = arith.constant 0 : index
    %3 = vector.load %arg3[%c0_3, %c0_4] : memref<1x32xf32, #tpu.memory_space<vmem>>, vector<1x32xf32>
    %4 = vector.broadcast %3 : vector<1x32xf32> to vector<512x32xf32>
    %5 = arith.addf %2, %4 : vector<512x32xf32>
    %cst_5 = arith.constant 0.000000e+00 : f32
    %6 = vector.broadcast %cst_5 : f32 to vector<512x32xf32>
    %7 = arith.maximumf %5, %6 : vector<512x32xf32>
    %c0_6 = arith.constant 0 : index
    %c0_7 = arith.constant 0 : index
    %8 = vector.load %arg4[%c0_6, %c0_7] : memref<8x512xf32, #tpu.memory_space<vmem>>, vector<8x512xf32>
    %cst_8 = arith.constant dense<0.000000e+00> : vector<8x32xf32>
    %9 = tpu.matmul %8, %7, %cst_8 {dimension_numbers = #tpu.dot_dimension_numbers<[1], [0], [0], [1], [0, 0, 1, 1], [], []>} : vector<8x512xf32>, vector<512x32xf32>, vector<8x32xf32> -> vector<8x32xf32>
    %c0_9 = arith.constant 0 : index
    %c0_10 = arith.constant 0 : index
    %10 = vector.load %arg5[%c0_9, %c0_10] : memref<32x2048xbf16, #tpu.memory_space<vmem>>, vector<32x2048xbf16>
    %11 = arith.extf %10 : vector<32x2048xbf16> to vector<32x2048xf32>
    %cst_11 = arith.constant dense<0.000000e+00> : vector<8x2048xf32>
    %12 = tpu.matmul %9, %11, %cst_11 {dimension_numbers = #tpu.dot_dimension_numbers<[1], [0], [0], [1], [0, 0, 1, 1], [], []>} : vector<8x32xf32>, vector<32x2048xf32>, vector<8x2048xf32> -> vector<8x2048xf32>
    %c0_12 = arith.constant 0 : index
    %c0_13 = arith.constant 0 : index
    %13 = vector.load %arg6[%c0_12, %c0_13] : memref<1x2048xf32, #tpu.memory_space<vmem>>, vector<1x2048xf32>
    %14 = vector.broadcast %13 : vector<1x2048xf32> to vector<8x2048xf32>
    %15 = arith.addf %12, %14 : vector<8x2048xf32>
    %cst_14 = arith.constant 0.000000e+00 : f32
    %16 = vector.broadcast %cst_14 : f32 to vector<8x2048xf32>
    %17 = arith.maximumf %15, %16 : vector<8x2048xf32>
    %c0_15 = arith.constant 0 : index
    %c0_16 = arith.constant 0 : index
    %18 = vector.load %arg7[%c0_15, %c0_16] : memref<8x2048xf32, #tpu.memory_space<vmem>>, vector<8x2048xf32>
    tpu.vector_store %arg7[%c0_15, %c0_16], %17 {strides = array<i32>} : memref<8x2048xf32, #tpu.memory_space<vmem>>, vector<8x2048xf32>,
    return
  }
  func.func @transform_0(%arg0: i32) -> (i32, i32) {
    %c0_i32 = arith.constant 0 : i32
    %c0_i32_0 = arith.constant 0 : i32
    %c0_i32_1 = arith.constant 0 : i32
    return %c0_i32, %c0_i32_0 : i32, i32
  }
  func.func @transform_1(%arg0: i32) -> (i32, i32) {
    %c0_i32 = arith.constant 0 : i32
    %c0_i32_0 = arith.constant 0 : i32
    %c0_i32_1 = arith.constant 0 : i32
    return %c0_i32, %c0_i32_0 : i32, i32
  }
  func.func @transform_2(%arg0: i32) -> (i32, i32) {
    %c0_i32 = arith.constant 0 : i32
    %c0_i32_0 = arith.constant 0 : i32
    %c0_i32_1 = arith.constant 0 : i32
    return %c0_i32, %c0_i32_0 : i32, i32
  }
  func.func @transform_3(%arg0: i32) -> (i32, i32) {
    %c0_i32 = arith.constant 0 : i32
    %c0_i32_0 = arith.constant 0 : i32
    %c0_i32_1 = arith.constant 0 : i32
    return %c0_i32, %c0_i32_0 : i32, i32
  }
  func.func @transform_4(%arg0: i32) -> (i32, i32) {
    %c0_i32 = arith.constant 0 : i32
    %c0_i32_0 = arith.constant 0 : i32
    %c0_i32_1 = arith.constant 0 : i32
    return %c0_i32, %c0_i32_0 : i32, i32
  }
  func.func @transform_5(%arg0: i32) -> (i32, i32) {
    %c0_i32 = arith.constant 0 : i32
    %c0_i32_0 = arith.constant 0 : i32
    %c0_i32_1 = arith.constant 0 : i32
    return %c0_i32, %c0_i32_0 : i32, i32
  }
  func.func @transform_6(%arg0: i32) -> (i32, i32) {
    %c0_i32 = arith.constant 0 : i32
    %c0_i32_0 = arith.constant 0 : i32
    %c0_i32_1 = arith.constant 0 : i32
    return %c0_i32, %c0_i32_0 : i32, i32
  }
}

</mosaic_0001>

<llo_original>
// kernel: classifier_clr_forward.2
$region0: #{classifier_clr_forward.2}
  #allocation0 [shape = 'u32[]', space=smem, size = 0x4, offset = 0x4, fixed_abs, tag = 'smem constant byte address 0x4 - core index']
  #allocation1 [shape = 'u32[144,128]{1,0:T(1,128)}', space=vmem, size = 0x12000, scoped, tag = 'internal scratch']
  %s0 = inlined_call_operand.vmem [shape: f32[512,4], index: 0, kind: input, shape index: {}]
  %s1 = inlined_call_operand.hbm [shape: f32[4,32], index: 1, kind: input, shape index: {}]
  %s2 = inlined_call_operand.hbm [shape: f32[1,32], index: 2, kind: input, shape index: {}]
  %s3 = inlined_call_operand.hbm [shape: f32[8,512], index: 3, kind: input, shape index: {}]
  %s4 = inlined_call_operand.hbm [shape: bf16[32,2048], index: 4, kind: input, shape index: {}]
  %s5 = inlined_call_operand.hbm [shape: f32[1,2048], index: 5, kind: input, shape index: {}]
  %s6 = inlined_call_operand.vmem [shape: f32[8,2048], index: 6, kind: output, shape index: {}]
  %s7 = sld [smem:[#allocation0]]
  $region54: #{classifier_clr_forward.2} parent=0
    _
  %s9 = ssub.s32 1, %s7
  %s10 = scalar_select 0, %s9, %s7
  $region1: #{classifier_clr_forward.2} parent=0
    #allocation2 [shape = 'u8[2048]{0}', space=vmem, size = 0x800, scoped, tag = 'input window, operand 1, single buffered']
    #allocation3 [shape = 's32[1]{0}', space=sflag, size = 0x4, scoped, tag = 'scoped memory for classifier_clr_forward.2']
    #allocation4 [shape = 'u8[512]{0}', space=vmem, size = 0x400, scoped, tag = 'input window, operand 2, single buffered']
    #allocation5 [shape = 's32[1]{0}', space=sflag, size = 0x4, scoped, tag = 'scoped memory for classifier_clr_forward.2']
    #allocation6 [shape = 'u8[16384]{0}', space=vmem, size = 0x4000, scoped, tag = 'input window, operand 3, single buffered']
    #allocation7 [shape = 'u8[131072]{0}', space=vmem, size = 0x20000, scoped, tag = 'input window, operand 4, single buffered']
    #allocation8 [shape = 's32[1]{0}', space=sflag, size = 0x4, scoped, tag = 'scoped memory for classifier_clr_forward.2']
    #allocation9 [shape = 'u8[8192]{0}', space=vmem, size = 0x2000, scoped, tag = 'input window, operand 5, single buffered']
    %11 = vsyncpa [#allocation3], 0
    %12 = vsyncpa [#allocation5], 0
    %13 = vsyncpa [#allocation8], 0
    // Predicated region
    $region2: #{classifier_clr_forward.2} parent=1 // pred_check
      _
    $region3: #{classifier_clr_forward.2} parent=1 // pred_check_branch
      %15 = sbr.rel (0) target = $region5
    $region4: #{classifier_clr_forward.2} parent=1 // pred_region
      _
    $region5: #{classifier_clr_forward.2} parent=1 // pred_fallthru
      _
    // Predicated region
    $region6: #{classifier_clr_forward.2} parent=1 // pred_check
      _
    $region7: #{classifier_clr_forward.2} parent=1 // pred_check_branch
      %17 = sbr.rel (0) target = $region9
    $region8: #{classifier_clr_forward.2} parent=1 // pred_region
      %s19 = ssub.s32 64, 64
      %20 = vsyncadd [#allocation3], %s19
      %s22 = sshll.u32 [#allocation2], 4
      %s23 = int_to_ptr.vmem [resolvable:$true] %s22
      %25 = dma.hbm_to_vmem [thread:$0]  %s1, 64, %s23, [#allocation3]
    $region9: #{classifier_clr_forward.2} parent=1 // pred_fallthru
      _
    // Predicated region
    $region10: #{classifier_clr_forward.2} parent=1 // pred_check
      _
    $region11: #{classifier_clr_forward.2} parent=1 // pred_check_branch
      %27 = sbr.rel (0) target = $region13
    $region12: #{classifier_clr_forward.2} parent=1 // pred_region
      %s29 = ssub.s32 16, 16
      %30 = vsyncadd [#allocation5], %s29
      %s32 = sshll.u32 [#allocation4], 4
      %s33 = int_to_ptr.vmem [resolvable:$true] %s32
      %35 = dma.hbm_to_vmem [thread:$0]  %s2, 16, %s33, [#allocation5]
    $region13: #{classifier_clr_forward.2} parent=1 // pred_fallthru
      _
    // Predicated region
    $region14: #{classifier_clr_forward.2} parent=1 // pred_check
      _
    $region15: #{classifier_clr_forward.2} parent=1 // pred_check_branch
      %37 = sbr.rel (0) target = $region17
    $region16: #{classifier_clr_forward.2} parent=1 // pred_region
      %s39 = ssub.s32 512, 512
      %40 = vsyncadd [#allocation5], %s39
      %s42 = sshll.u32 [#allocation6], 4
      %s43 = int_to_ptr.vmem [resolvable:$true] %s42
      %45 = dma.hbm_to_vmem [thread:$0]  %s3, 512, %s43, [#allocation5]
    $region17: #{classifier_clr_forward.2} parent=1 // pred_fallthru
      _
    // Predicated region
    $region18: #{classifier_clr_forward.2} parent=1 // pred_check
      _
    $region19: #{classifier_clr_forward.2} parent=1 // pred_check_branch
      %47 = sbr.rel (0) target = $region21
    $region20: #{classifier_clr_forward.2} parent=1 // pred_region
      %s49 = ssub.s32 4096, 4096
      %50 = vsyncadd [#allocation8], %s49
      %s51 = sshll.u32 [#allocation7], 4
      %s52 = int_to_ptr.vmem [resolvable:$true] %s51
      %57 = dma.hbm_to_vmem [thread:$0]  %s4, 4096, %s52, [#allocation8], 1024, 1024, 64
    $region21: #{classifier_clr_forward.2} parent=1 // pred_fallthru
      _
    // Predicated region
    $region22: #{classifier_clr_forward.2} parent=1 // pred_check
      _
    $region23: #{classifier_clr_forward.2} parent=1 // pred_check_branch
      %59 = sbr.rel (0) target = $region25
    $region24: #{classifier_clr_forward.2} parent=1 // pred_region
      %s61 = ssub.s32 256, 256
      %62 = vsyncadd [#allocation8], %s61
      %s64 = sshll.u32 [#allocation9], 4
      %s65 = int_to_ptr.vmem [resolvable:$true] %s64
      %67 = dma.hbm_to_vmem [thread:$0]  %s5, 256, %s65, [#allocation8]
    $region25: #{classifier_clr_forward.2} parent=1 // pred_fallthru
      _
    // Predicated region
    $region26: #{classifier_clr_forward.2} parent=1 // pred_check
      _
    $region27: #{classifier_clr_forward.2} parent=1 // pred_check_branch
      %69 = sbr.rel (0) target = $region29
    $region28: #{classifier_clr_forward.2} parent=1 // pred_region
      %70 = dma.done [#allocation3], 64
    $region29: #{classifier_clr_forward.2} parent=1 // pred_fallthru
      _
    // Predicated region
    $region30: #{classifier_clr_forward.2} parent=1 // pred_check
      _
    $region31: #{classifier_clr_forward.2} parent=1 // pred_check_branch
      %72 = sbr.rel (0) target = $region33
    $region32: #{classifier_clr_forward.2} parent=1 // pred_region
      %73 = dma.done [#allocation5], 16
    $region33: #{classifier_clr_forward.2} parent=1 // pred_fallthru
      _
    // Predicated region
    $region34: #{classifier_clr_forward.2} parent=1 // pred_check
      _
    $region35: #{classifier_clr_forward.2} parent=1 // pred_check_branch
      %75 = sbr.rel (0) target = $region37
    $region36: #{classifier_clr_forward.2} parent=1 // pred_region
      %76 = dma.done [#allocation5], 512
    $region37: #{classifier_clr_forward.2} parent=1 // pred_fallthru
      _
    // Predicated region
    $region38: #{classifier_clr_forward.2} parent=1 // pred_check
      _
    $region39: #{classifier_clr_forward.2} parent=1 // pred_check_branch
      %78 = sbr.rel (0) target = $region41
    $region40: #{classifier_clr_forward.2} parent=1 // pred_region
      %79 = dma.done [#allocation8], 4096
    $region41: #{classifier_clr_forward.2} parent=1 // pred_fallthru
      _
    // Predicated region
    $region42: #{classifier_clr_forward.2} parent=1 // pred_check
      _
    $region43: #{classifier_clr_forward.2} parent=1 // pred_check_branch
      %81 = sbr.rel (0) target = $region45
    $region44: #{classifier_clr_forward.2} parent=1 // pred_region
      %82 = dma.done [#allocation8], 256
    $region45: #{classifier_clr_forward.2} parent=1 // pred_fallthru
      _
    %v83 = vld [vmem:[%s0] sm:$0xff]
    %v84 = vld [vmem:[%s0 + $0x8] sm:$0xff]
    %v85 = vld [vmem:[%s0 + $0x10] sm:$0xff]
    %v86 = vld [vmem:[%s0 + $0x18] sm:$0xff]
    %v87 = vld [vmem:[%s0 + $0x20] sm:$0xff]
    %v88 = vld [vmem:[%s0 + $0x28] sm:$0xff]
    %v89 = vld [vmem:[%s0 + $0x30] sm:$0xff]
    %v90 = vld [vmem:[%s0 + $0x38] sm:$0xff]
    %v91 = vld [vmem:[%s0 + $0x40] sm:$0xff]
    %v92 = vld [vmem:[%s0 + $0x48] sm:$0xff]
    %v93 = vld [vmem:[%s0 + $0x50] sm:$0xff]
    %v94 = vld [vmem:[%s0 + $0x58] sm:$0xff]
    %v95 = vld [vmem:[%s0 + $0x60] sm:$0xff]
    %v96 = vld [vmem:[%s0 + $0x68] sm:$0xff]
    %v97 = vld [vmem:[%s0 + $0x70] sm:$0xff]
    %v98 = vld [vmem:[%s0 + $0x78] sm:$0xff]
    %v99 = vld [vmem:[%s0 + $0x80] sm:$0xff]
    %v100 = vld [vmem:[%s0 + $0x88] sm:$0xff]
    %v101 = vld [vmem:[%s0 + $0x90] sm:$0xff]
    %v102 = vld [vmem:[%s0 + $0x98] sm:$0xff]
    %v103 = vld [vmem:[%s0 + $0xa0] sm:$0xff]
    %v104 = vld [vmem:[%s0 + $0xa8] sm:$0xff]
    %v105 = vld [vmem:[%s0 + $0xb0] sm:$0xff]
    %v106 = vld [vmem:[%s0 + $0xb8] sm:$0xff]
    %v107 = vld [vmem:[%s0 + $0xc0] sm:$0xff]
    %v108 = vld [vmem:[%s0 + $0xc8] sm:$0xff]
    %v109 = vld [vmem:[%s0 + $0xd0] sm:$0xff]
    %v110 = vld [vmem:[%s0 + $0xd8] sm:$0xff]
    %v111 = vld [vmem:[%s0 + $0xe0] sm:$0xff]
    %v112 = vld [vmem:[%s0 + $0xe8] sm:$0xff]
    %v113 = vld [vmem:[%s0 + $0xf0] sm:$0xff]
    %v114 = vld [vmem:[%s0 + $0xf8] sm:$0xff]
    %v115 = vld [vmem:[%s0 + $0x100] sm:$0xff]
    %v116 = vld [vmem:[%s0 + $0x108] sm:$0xff]
    %v117 = vld [vmem:[%s0 + $0x110] sm:$0xff]
    %v118 = vld [vmem:[%s0 + $0x118] sm:$0xff]
    %v119 = vld [vmem:[%s0 + $0x120] sm:$0xff]
    %v120 = vld [vmem:[%s0 + $0x128] sm:$0xff]
    %v121 = vld [vmem:[%s0 + $0x130] sm:$0xff]
    %v122 = vld [vmem:[%s0 + $0x138] sm:$0xff]
    %v123 = vld [vmem:[%s0 + $0x140] sm:$0xff]
    %v124 = vld [vmem:[%s0 + $0x148] sm:$0xff]
    %v125 = vld [vmem:[%s0 + $0x150] sm:$0xff]
    %v126 = vld [vmem:[%s0 + $0x158] sm:$0xff]
    %v127 = vld [vmem:[%s0 + $0x160] sm:$0xff]
    %v128 = vld [vmem:[%s0 + $0x168] sm:$0xff]
    %v129 = vld [vmem:[%s0 + $0x170] sm:$0xff]
    %v130 = vld [vmem:[%s0 + $0x178] sm:$0xff]
    %v131 = vld [vmem:[%s0 + $0x180] sm:$0xff]
    %v132 = vld [vmem:[%s0 + $0x188] sm:$0xff]
    %v133 = vld [vmem:[%s0 + $0x190] sm:$0xff]
    %v134 = vld [vmem:[%s0 + $0x198] sm:$0xff]
    %v135 = vld [vmem:[%s0 + $0x1a0] sm:$0xff]
    %v136 = vld [vmem:[%s0 + $0x1a8] sm:$0xff]
    %v137 = vld [vmem:[%s0 + $0x1b0] sm:$0xff]
    %v138 = vld [vmem:[%s0 + $0x1b8] sm:$0xff]
    %v139 = vld [vmem:[%s0 + $0x1c0] sm:$0xff]
    %v140 = vld [vmem:[%s0 + $0x1c8] sm:$0xff]
    %v141 = vld [vmem:[%s0 + $0x1d0] sm:$0xff]
    %v142 = vld [vmem:[%s0 + $0x1d8] sm:$0xff]
    %v143 = vld [vmem:[%s0 + $0x1e0] sm:$0xff]
    %v144 = vld [vmem:[%s0 + $0x1e8] sm:$0xff]
    %v145 = vld [vmem:[%s0 + $0x1f0] sm:$0xff]
    %v146 = vld [vmem:[%s0 + $0x1f8] sm:$0xff]
    %v147 = vld [vmem:[#allocation2] sm:$0xf]
    %v148 = vld [vmem:[#allocation4] sm:$0x1]
    %v150 = vlaneseq
    %v151 = vshrl.u32 %v150, 7
    %v152 = vsub.s32 0, %v151
    %v153 = vrot.slane %v148, %v152
    %vm155 = vcmask 31744
    %v157 = vsel %vm155, %v83, 0
    %v160 = vsel %vm155, %v84, 0
    %v163 = vsel %vm155, %v85, 0
    %v166 = vsel %vm155, %v86, 0
    %v169 = vsel %vm155, %v87, 0
    %v172 = vsel %vm155, %v88, 0
    %v175 = vsel %vm155, %v89, 0
    %v178 = vsel %vm155, %v90, 0
    %v181 = vsel %vm155, %v91, 0
    %v184 = vsel %vm155, %v92, 0
    %v187 = vsel %vm155, %v93, 0
    %v190 = vsel %vm155, %v94, 0
    %v193 = vsel %vm155, %v95, 0
    %v196 = vsel %vm155, %v96, 0
    %v199 = vsel %vm155, %v97, 0
    %v202 = vsel %vm155, %v98, 0
    %v205 = vsel %vm155, %v99, 0
    %v208 = vsel %vm155, %v100, 0
    %v211 = vsel %vm155, %v101, 0
    %v214 = vsel %vm155, %v102, 0
    %v217 = vsel %vm155, %v103, 0
    %v220 = vsel %vm155, %v104, 0
    %v223 = vsel %vm155, %v105, 0
    %v226 = vsel %vm155, %v106, 0
    %v229 = vsel %vm155, %v107, 0
    %v232 = vsel %vm155, %v108, 0
    %v235 = vsel %vm155, %v109, 0
    %v238 = vsel %vm155, %v110, 0
    %v241 = vsel %vm155, %v111, 0
    %v244 = vsel %vm155, %v112, 0
    %v247 = vsel %vm155, %v113, 0
    %v250 = vsel %vm155, %v114, 0
    %v253 = vsel %vm155, %v115, 0
    %v256 = vsel %vm155, %v116, 0
    %v259 = vsel %vm155, %v117, 0
    %v262 = vsel %vm155, %v118, 0
    %v265 = vsel %vm155, %v119, 0
    %v268 = vsel %vm155, %v120, 0
    %v271 = vsel %vm155, %v121, 0
    %v274 = vsel %vm155, %v122, 0
    %v277 = vsel %vm155, %v123, 0
    %v280 = vsel %vm155, %v124, 0
    %v283 = vsel %vm155, %v125, 0
    %v286 = vsel %vm155, %v126, 0
    %v289 = vsel %vm155, %v127, 0
    %v292 = vsel %vm155, %v128, 0
    %v295 = vsel %vm155, %v129, 0
    %v298 = vsel %vm155, %v130, 0
    %v301 = vsel %vm155, %v131, 0
    %v304 = vsel %vm155, %v132, 0
    %v307 = vsel %vm155, %v133, 0
    %v310 = vsel %vm155, %v134, 0
    %v313 = vsel %vm155, %v135, 0
    %v316 = vsel %vm155, %v136, 0
    %v319 = vsel %vm155, %v137, 0
    %v322 = vsel %vm155, %v138, 0
    %v325 = vsel %vm155, %v139, 0
    %v328 = vsel %vm155, %v140, 0
    %v331 = vsel %vm155, %v141, 0
    %v334 = vsel %vm155, %v142, 0
    %v337 = vsel %vm155, %v143, 0
    %v340 = vsel %vm155, %v144, 0
    %v343 = vsel %vm155, %v145, 0
    %v346 = vsel %vm155, %v146, 0
    %vm348 = vcmask 1043456
    %v350 = vsel %vm348, %v147, 0
    %352 = vmatprep.subr.mxu0 0.0
    %353 = vmatpush1.msra.mxu0 %v350
    %354 = vmatprep.subr.mxu0 0.0
    %355 = vmatpush1.msra.mxu0 0.0
    %356 = vmatprep.subr.mxu0 0.0
    %357 = vmatpush1.msra.mxu0 0.0
    %358 = vmatprep.subr.mxu0 0.0
    %359 = vmatpush1.msra.mxu0 0.0
    %360 = vmatprep.subr.mxu0 0.0
    %361 = vmatpush1.msra.mxu0 0.0
    %362 = vmatprep.subr.mxu0 0.0
    %363 = vmatpush1.msra.mxu0 0.0
    %364 = vmatprep.subr.mxu0 0.0
    %365 = vmatpush1.msra.mxu0 0.0
    %366 = vmatprep.subr.mxu0 0.0
    %367 = vmatpush1.msra.mxu0 0.0
    %368 = vmatprep.subr.mxu0 0.0
    %369 = vmatpush1.msra.mxu0 0.0
    %370 = vmatprep.subr.mxu0 0.0
    %371 = vmatpush1.msra.mxu0 0.0
    %372 = vmatprep.subr.mxu0 0.0
    %373 = vmatpush1.msra.mxu0 0.0
    %374 = vmatprep.subr.mxu0 0.0
    %375 = vmatpush1.msra.mxu0 0.0
    %376 = vmatprep.subr.mxu0 0.0
    %377 = vmatpush1.msra.mxu0 0.0
    %378 = vmatprep.subr.mxu0 0.0
    %379 = vmatpush1.msra.mxu0 0.0
    %380 = vmatprep.subr.mxu0 0.0
    %381 = vmatpush1.msra.mxu0 0.0
    %382 = vmatprep.subr.mxu0 0.0
    %383 = vmatpush1.msra.mxu0 0.0
    %384 = vmatprep.subr.mxu0 0.0
    %385 = vmatpush1.msra.mxu0 0.0
    %386 = vmatprep.subr.mxu0 0.0
    %387 = vmatpush1.msra.mxu0 0.0
    %388 = vmatprep.subr.mxu0 0.0
    %389 = vmatpush1.msra.mxu0 0.0
    %390 = vmatprep.subr.mxu0 0.0
    %391 = vmatpush1.msra.mxu0 0.0
    %392 = vmatprep.subr.mxu0 0.0
    %393 = vmatpush1.msra.mxu0 0.0
    %394 = vmatprep.subr.mxu0 0.0
    %395 = vmatpush1.msra.mxu0 0.0
    %396 = vmatprep.subr.mxu0 0.0
    %397 = vmatpush1.msra.mxu0 0.0
    %398 = vmatprep.subr.mxu0 0.0
    %399 = vmatpush1.msra.mxu0 0.0
    %400 = vmatprep.subr.mxu0 0.0
    %401 = vmatpush1.msra.mxu0 0.0
    %402 = vmatprep.subr.mxu0 0.0
    %403 = vmatpush1.msra.mxu0 0.0
    %404 = vmatprep.subr.mxu0 0.0
    %405 = vmatpush1.msra.mxu0 0.0
    %406 = vmatprep.subr.mxu0 0.0
    %407 = vmatpush1.msra.mxu0 0.0
    %408 = vmatprep.subr.mxu0 0.0
    %409 = vmatpush1.msra.mxu0 0.0
    %410 = vmatprep.subr.mxu0 0.0
    %411 = vmatpush1.msra.mxu0 0.0
    %412 = vmatprep.subr.mxu0 0.0
    %413 = vmatpush1.msra.mxu0 0.0
    %414 = vmatprep.subr.mxu0 0.0
    %415 = vmatpush1.msra.mxu0 0.0
    %416 = vmatprep.mubr.f32.mxu0 0.0
    %417 = vmatmul.mubr.f32.gmra.mrb[0].mxu0 %v157
    %v418 = vpop.f32.mrb[0].mxu0
    %v419 = vadd.f32 %v153, %v418
    %v420 = vpop.f32.mrb[0].mxu0
    %421 = vmatprep.mubr.f32.mxu0 0.0
    %422 = vmatmul.mubr.f32.gmra.mrb[0].mxu0 %v160
    %v423 = vpop.f32.mrb[0].mxu0
    %v424 = vadd.f32 %v153, %v423
    %v425 = vpop.f32.mrb[0].mxu0
    %426 = vmatprep.mubr.f32.mxu0 0.0
    %427 = vmatmul.mubr.f32.gmra.mrb[0].mxu0 %v163
    %v428 = vpop.f32.mrb[0].mxu0
    %v429 = vadd.f32 %v153, %v428
    %v430 = vpop.f32.mrb[0].mxu0
    %431 = vmatprep.mubr.f32.mxu0 0.0
    %432 = vmatmul.mubr.f32.gmra.mrb[0].mxu0 %v166
    %v433 = vpop.f32.mrb[0].mxu0
    %v434 = vadd.f32 %v153, %v433
    %v435 = vpop.f32.mrb[0].mxu0
    %436 = vmatprep.mubr.f32.mxu0 0.0
    %437 = vmatmul.mubr.f32.gmra.mrb[0].mxu0 %v169
    %v438 = vpop.f32.mrb[0].mxu0
    %v439 = vadd.f32 %v153, %v438
    %v440 = vpop.f32.mrb[0].mxu0
    %441 = vmatprep.mubr.f32.mxu0 0.0
    %442 = vmatmul.mubr.f32.gmra.mrb[0].mxu0 %v172
    %v443 = vpop.f32.mrb[0].mxu0
    %v444 = vadd.f32 %v153, %v443
    %v445 = vpop.f32.mrb[0].mxu0
    %446 = vmatprep.mubr.f32.mxu0 0.0
    %447 = vmatmul.mubr.f32.gmra.mrb[0].mxu0 %v175
    %v448 = vpop.f32.mrb[0].mxu0
    %v449 = vadd.f32 %v153, %v448
    %v450 = vpop.f32.mrb[0].mxu0
    %451 = vmatprep.mubr.f32.mxu0 0.0
    %452 = vmatmul.mubr.f32.gmra.mrb[0].mxu0 %v178
    %v453 = vpop.f32.mrb[0].mxu0
    %v454 = vadd.f32 %v153, %v453
    %v455 = vpop.f32.mrb[0].mxu0
    %456 = vmatprep.mubr.f32.mxu0 0.0
    %457 = vmatmul.mubr.f32.gmra.mrb[0].mxu0 %v181
    %v458 = vpop.f32.mrb[0].mxu0
    %v459 = vadd.f32 %v153, %v458
    %v460 = vpop.f32.mrb[0].mxu0
    %461 = vmatprep.mubr.f32.mxu0 0.0
    %462 = vmatmul.mubr.f32.gmra.mrb[0].mxu0 %v184
    %v463 = vpop.f32.mrb[0].mxu0
    %v464 = vadd.f32 %v153, %v463
    %v465 = vpop.f32.mrb[0].mxu0
    %466 = vmatprep.mubr.f32.mxu0 0.0
    %467 = vmatmul.mubr.f32.gmra.mrb[0].mxu0 %v187
    %v468 = vpop.f32.mrb[0].mxu0
    %v469 = vadd.f32 %v153, %v468
    %v470 = vpop.f32.mrb[0].mxu0
    %471 = vmatprep.mubr.f32.mxu0 0.0
    %472 = vmatmul.mubr.f32.gmra.mrb[0].mxu0 %v190
    %v473 = vpop.f32.mrb[0].mxu0
    %v474 = vadd.f32 %v153, %v473
    %v475 = vpop.f32.mrb[0].mxu0
    %476 = vmatprep.mubr.f32.mxu0 0.0
    %477 = vmatmul.mubr.f32.gmra.mrb[0].mxu0 %v193
    %v478 = vpop.f32.mrb[0].mxu0
    %v479 = vadd.f32 %v153, %v478
    %v480 = vpop.f32.mrb[0].mxu0
    %481 = vmatprep.mubr.f32.mxu0 0.0
    %482 = vmatmul.mubr.f32.gmra.mrb[0].mxu0 %v196
    %v483 = vpop.f32.mrb[0].mxu0
    %v484 = vadd.f32 %v153, %v483
    %v485 = vpop.f32.mrb[0].mxu0
    %486 = vmatprep.mubr.f32.mxu0 0.0
    %487 = vmatmul.mubr.f32.gmra.mrb[0].mxu0 %v199
    %v488 = vpop.f32.mrb[0].mxu0
    %v489 = vadd.f32 %v153, %v488
    %v490 = vpop.f32.mrb[0].mxu0
    %491 = vmatprep.mubr.f32.mxu0 0.0
    %492 = vmatmul.mubr.f32.gmra.mrb[0].mxu0 %v202
    %v493 = vpop.f32.mrb[0].mxu0
    %v494 = vadd.f32 %v153, %v493
    %v495 = vpop.f32.mrb[0].mxu0
    %496 = vmatprep.mubr.f32.mxu0 0.0
    %497 = vmatmul.mubr.f32.gmra.mrb[0].mxu0 %v205
    %v498 = vpop.f32.mrb[0].mxu0
    %v499 = vadd.f32 %v153, %v498
    %v500 = vpop.f32.mrb[0].mxu0
    %501 = vmatprep.mubr.f32.mxu0 0.0
    %502 = vmatmul.mubr.f32.gmra.mrb[0].mxu0 %v208
    %v503 = vpop.f32.mrb[0].mxu0
    %v504 = vadd.f32 %v153, %v503
    %v505 = vpop.f32.mrb[0].mxu0
    %506 = vmatprep.mubr.f32.mxu0 0.0
    %507 = vmatmul.mubr.f32.gmra.mrb[0].mxu0 %v211
    %v508 = vpop.f32.mrb[0].mxu0
    %v509 = vadd.f32 %v153, %v508
    %v510 = vpop.f32.mrb[0].mxu0
    %511 = vmatprep.mubr.f32.mxu0 0.0
    %512 = vmatmul.mubr.f32.gmra.mrb[0].mxu0 %v214
    %v513 = vpop.f32.mrb[0].mxu0
    %v514 = vadd.f32 %v153, %v513
    %v515 = vpop.f32.mrb[0].mxu0
    %516 = vmatprep.mubr.f32.mxu0 0.0
    %517 = vmatmul.mubr.f32.gmra.mrb[0].mxu0 %v217
    %v518 = vpop.f32.mrb[0].mxu0
    %v519 = vadd.f32 %v153, %v518
    %v520 = vpop.f32.mrb[0].mxu0
    %521 = vmatprep.mubr.f32.mxu0 0.0
    %522 = vmatmul.mubr.f32.gmra.mrb[0].mxu0 %v220
    %v523 = vpop.f32.mrb[0].mxu0
    %v524 = vadd.f32 %v153, %v523
    %v525 = vpop.f32.mrb[0].mxu0
    %526 = vmatprep.mubr.f32.mxu0 0.0
    %527 = vmatmul.mubr.f32.gmra.mrb[0].mxu0 %v223
    %v528 = vpop.f32.mrb[0].mxu0
    %v529 = vadd.f32 %v153, %v528
    %v530 = vpop.f32.mrb[0].mxu0
    %531 = vmatprep.mubr.f32.mxu0 0.0
    %532 = vmatmul.mubr.f32.gmra.mrb[0].mxu0 %v226
    %v533 = vpop.f32.mrb[0].mxu0
    %v534 = vadd.f32 %v153, %v533
    %v535 = vpop.f32.mrb[0].mxu0
    %536 = vmatprep.mubr.f32.mxu0 0.0
    %537 = vmatmul.mubr.f32.gmra.mrb[0].mxu0 %v229
    %v538 = vpop.f32.mrb[0].mxu0
    %v539 = vadd.f32 %v153, %v538
    %v540 = vpop.f32.mrb[0].mxu0
    %541 = vmatprep.mubr.f32.mxu0 0.0
    %542 = vmatmul.mubr.f32.gmra.mrb[0].mxu0 %v232
    %v543 = vpop.f32.mrb[0].mxu0
    %v544 = vadd.f32 %v153, %v543
    %v545 = vpop.f32.mrb[0].mxu0
    %546 = vmatprep.mubr.f32.mxu0 0.0
    %547 = vmatmul.mubr.f32.gmra.mrb[0].mxu0 %v235
    %v548 = vpop.f32.mrb[0].mxu0
    %v549 = vadd.f32 %v153, %v548
    %v550 = vpop.f32.mrb[0].mxu0
    %551 = vmatprep.mubr.f32.mxu0 0.0
    %552 = vmatmul.mubr.f32.gmra.mrb[0].mxu0 %v238
    %v553 = vpop.f32.mrb[0].mxu0
    %v554 = vadd.f32 %v153, %v553
    %v555 = vpop.f32.mrb[0].mxu0
    %556 = vmatprep.mubr.f32.mxu0 0.0
    %557 = vmatmul.mubr.f32.gmra.mrb[0].mxu0 %v241
    %v558 = vpop.f32.mrb[0].mxu0
    %v559 = vadd.f32 %v153, %v558
    %v560 = vpop.f32.mrb[0].mxu0
    %561 = vmatprep.mubr.f32.mxu0 0.0
    %562 = vmatmul.mubr.f32.gmra.mrb[0].mxu0 %v244
    %v563 = vpop.f32.mrb[0].mxu0
    %v564 = vadd.f32 %v153, %v563
    %v565 = vpop.f32.mrb[0].mxu0
    %566 = vmatprep.mubr.f32.mxu0 0.0
    %567 = vmatmul.mubr.f32.gmra.mrb[0].mxu0 %v247
    %v568 = vpop.f32.mrb[0].mxu0
    %v569 = vadd.f32 %v153, %v568
    %v570 = vpop.f32.mrb[0].mxu0
    %571 = vmatprep.mubr.f32.mxu0 0.0
    %572 = vmatmul.mubr.f32.gmra.mrb[0].mxu0 %v250
    %v573 = vpop.f32.mrb[0].mxu0
    %v574 = vadd.f32 %v153, %v573
    %v575 = vpop.f32.mrb[0].mxu0
    %576 = vmatprep.mubr.f32.mxu0 0.0
    %577 = vmatmul.mubr.f32.gmra.mrb[0].mxu0 %v253
    %v578 = vpop.f32.mrb[0].mxu0
    %v579 = vadd.f32 %v153, %v578
    %v580 = vpop.f32.mrb[0].mxu0
    %581 = vmatprep.mubr.f32.mxu0 0.0
    %582 = vmatmul.mubr.f32.gmra.mrb[0].mxu0 %v256
    %v583 = vpop.f32.mrb[0].mxu0
    %v584 = vadd.f32 %v153, %v583
    %v585 = vpop.f32.mrb[0].mxu0
    %586 = vmatprep.mubr.f32.mxu0 0.0
    %587 = vmatmul.mubr.f32.gmra.mrb[0].mxu0 %v259
    %v588 = vpop.f32.mrb[0].mxu0
    %v589 = vadd.f32 %v153, %v588
    %v590 = vpop.f32.mrb[0].mxu0
    %591 = vmatprep.mubr.f32.mxu0 0.0
    %592 = vmatmul.mubr.f32.gmra.mrb[0].mxu0 %v262
    %v593 = vpop.f32.mrb[0].mxu0
    %v594 = vadd.f32 %v153, %v593
    %v595 = vpop.f32.mrb[0].mxu0
    %596 = vmatprep.mubr.f32.mxu0 0.0
    %597 = vmatmul.mubr.f32.gmra.mrb[0].mxu0 %v265
    %v598 = vpop.f32.mrb[0].mxu0
    %v599 = vadd.f32 %v153, %v598
    %v600 = vpop.f32.mrb[0].mxu0
    %601 = vmatprep.mubr.f32.mxu0 0.0
    %602 = vmatmul.mubr.f32.gmra.mrb[0].mxu0 %v268
    %v603 = vpop.f32.mrb[0].mxu0
    %v604 = vadd.f32 %v153, %v603
    %v605 = vpop.f32.mrb[0].mxu0
    %606 = vmatprep.mubr.f32.mxu0 0.0
    %607 = vmatmul.mubr.f32.gmra.mrb[0].mxu0 %v271
    %v608 = vpop.f32.mrb[0].mxu0
    %v609 = vadd.f32 %v153, %v608
    %v610 = vpop.f32.mrb[0].mxu0
    %611 = vmatprep.mubr.f32.mxu0 0.0
    %612 = vmatmul.mubr.f32.gmra.mrb[0].mxu0 %v274
    %v613 = vpop.f32.mrb[0].mxu0
    %v614 = vadd.f32 %v153, %v613
    %v615 = vpop.f32.mrb[0].mxu0
    %616 = vmatprep.mubr.f32.mxu0 0.0
    %617 = vmatmul.mubr.f32.gmra.mrb[0].mxu0 %v277
    %v618 = vpop.f32.mrb[0].mxu0
    %v619 = vadd.f32 %v153, %v618
    %v620 = vpop.f32.mrb[0].mxu0
    %621 = vmatprep.mubr.f32.mxu0 0.0
    %622 = vmatmul.mubr.f32.gmra.mrb[0].mxu0 %v280
    %v623 = vpop.f32.mrb[0].mxu0
    %v624 = vadd.f32 %v153, %v623
    %v625 = vpop.f32.mrb[0].mxu0
    %626 = vmatprep.mubr.f32.mxu0 0.0
    %627 = vmatmul.mubr.f32.gmra.mrb[0].mxu0 %v283
    %v628 = vpop.f32.mrb[0].mxu0
    %v629 = vadd.f32 %v153, %v628
    %v630 = vpop.f32.mrb[0].mxu0
    %631 = vmatprep.mubr.f32.mxu0 0.0
    %632 = vmatmul.mubr.f32.gmra.mrb[0].mxu0 %v286
    %v633 = vpop.f32.mrb[0].mxu0
    %v634 = vadd.f32 %v153, %v633
    %v635 = vpop.f32.mrb[0].mxu0
    %636 = vmatprep.mubr.f32.mxu0 0.0
    %637 = vmatmul.mubr.f32.gmra.mrb[0].mxu0 %v289
    %v638 = vpop.f32.mrb[0].mxu0
    %v639 = vadd.f32 %v153, %v638
    %v640 = vpop.f32.mrb[0].mxu0
    %641 = vmatprep.mubr.f32.mxu0 0.0
    %642 = vmatmul.mubr.f32.gmra.mrb[0].mxu0 %v292
    %v643 = vpop.f32.mrb[0].mxu0
    %v644 = vadd.f32 %v153, %v643
    %v645 = vpop.f32.mrb[0].mxu0
    %646 = vmatprep.mubr.f32.mxu0 0.0
    %647 = vmatmul.mubr.f32.gmra.mrb[0].mxu0 %v295
    %v648 = vpop.f32.mrb[0].mxu0
    %v649 = vadd.f32 %v153, %v648
    %v650 = vpop.f32.mrb[0].mxu0
    %651 = vmatprep.mubr.f32.mxu0 0.0
    %652 = vmatmul.mubr.f32.gmra.mrb[0].mxu0 %v298
    %v653 = vpop.f32.mrb[0].mxu0
    %v654 = vadd.f32 %v153, %v653
    %v655 = vpop.f32.mrb[0].mxu0
    %656 = vmatprep.mubr.f32.mxu0 0.0
    %657 = vmatmul.mubr.f32.gmra.mrb[0].mxu0 %v301
    %v658 = vpop.f32.mrb[0].mxu0
    %v659 = vadd.f32 %v153, %v658
    %v660 = vpop.f32.mrb[0].mxu0
    %661 = vmatprep.mubr.f32.mxu0 0.0
    %662 = vmatmul.mubr.f32.gmra.mrb[0].mxu0 %v304
    %v663 = vpop.f32.mrb[0].mxu0
    %v664 = vadd.f32 %v153, %v663
    %v665 = vpop.f32.mrb[0].mxu0
    %666 = vmatprep.mubr.f32.mxu0 0.0
    %667 = vmatmul.mubr.f32.gmra.mrb[0].mxu0 %v307
    %v668 = vpop.f32.mrb[0].mxu0
    %v669 = vadd.f32 %v153, %v668
    %v670 = vpop.f32.mrb[0].mxu0
    %671 = vmatprep.mubr.f32.mxu0 0.0
    %672 = vmatmul.mubr.f32.gmra.mrb[0].mxu0 %v310
    %v673 = vpop.f32.mrb[0].mxu0
    %v674 = vadd.f32 %v153, %v673
    %v675 = vpop.f32.mrb[0].mxu0
    %676 = vmatprep.mubr.f32.mxu0 0.0
    %677 = vmatmul.mubr.f32.gmra.mrb[0].mxu0 %v313
    %v678 = vpop.f32.mrb[0].mxu0
    %v679 = vadd.f32 %v153, %v678
    %v680 = vpop.f32.mrb[0].mxu0
    %681 = vmatprep.mubr.f32.mxu0 0.0
    %682 = vmatmul.mubr.f32.gmra.mrb[0].mxu0 %v316
    %v683 = vpop.f32.mrb[0].mxu0
    %v684 = vadd.f32 %v153, %v683
    %v685 = vpop.f32.mrb[0].mxu0
    %686 = vmatprep.mubr.f32.mxu0 0.0
    %687 = vmatmul.mubr.f32.gmra.mrb[0].mxu0 %v319
    %v688 = vpop.f32.mrb[0].mxu0
    %v689 = vadd.f32 %v153, %v688
    %v690 = vpop.f32.mrb[0].mxu0
    %691 = vmatprep.mubr.f32.mxu0 0.0
    %692 = vmatmul.mubr.f32.gmra.mrb[0].mxu0 %v322
    %v693 = vpop.f32.mrb[0].mxu0
    %v694 = vadd.f32 %v153, %v693
    %v695 = vpop.f32.mrb[0].mxu0
    %696 = vmatprep.mubr.f32.mxu0 0.0
    %697 = vmatmul.mubr.f32.gmra.mrb[0].mxu0 %v325
    %v698 = vpop.f32.mrb[0].mxu0
    %v699 = vadd.f32 %v153, %v698
    %v700 = vpop.f32.mrb[0].mxu0
    %701 = vmatprep.mubr.f32.mxu0 0.0
    %702 = vmatmul.mubr.f32.gmra.mrb[0].mxu0 %v328
    %v703 = vpop.f32.mrb[0].mxu0
    %v704 = vadd.f32 %v153, %v703
    %v705 = vpop.f32.mrb[0].mxu0
    %706 = vmatprep.mubr.f32.mxu0 0.0
    %707 = vmatmul.mubr.f32.gmra.mrb[0].mxu0 %v331
    %v708 = vpop.f32.mrb[0].mxu0
    %v709 = vadd.f32 %v153, %v708
    %v710 = vpop.f32.mrb[0].mxu0
    %711 = vmatprep.mubr.f32.mxu0 0.0
    %712 = vmatmul.mubr.f32.gmra.mrb[0].mxu0 %v334
    %v713 = vpop.f32.mrb[0].mxu0
    %v714 = vadd.f32 %v153, %v713
    %v715 = vpop.f32.mrb[0].mxu0
    %716 = vmatprep.mubr.f32.mxu0 0.0
    %717 = vmatmul.mubr.f32.gmra.mrb[0].mxu0 %v337
    %v718 = vpop.f32.mrb[0].mxu0
    %v719 = vadd.f32 %v153, %v718
    %v720 = vpop.f32.mrb[0].mxu0
    %721 = vmatprep.mubr.f32.mxu0 0.0
    %722 = vmatmul.mubr.f32.gmra.mrb[0].mxu0 %v340
    %v723 = vpop.f32.mrb[0].mxu0
    %v724 = vadd.f32 %v153, %v723
    %v725 = vpop.f32.mrb[0].mxu0
    %726 = vmatprep.mubr.f32.mxu0 0.0
    %727 = vmatmul.mubr.f32.gmra.mrb[0].mxu0 %v343
    %v728 = vpop.f32.mrb[0].mxu0
    %v729 = vadd.f32 %v153, %v728
    %v730 = vpop.f32.mrb[0].mxu0
    %731 = vmatprep.mubr.f32.mxu0 0.0
    %732 = vmatmul.mubr.f32.gmra.mrb[0].mxu0 %v346
    %v733 = vpop.f32.mrb[0].mxu0
    %v734 = vadd.f32 %v153, %v733
    %v735 = vpop.f32.mrb[0].mxu0
    %736 = vdwg.mxu0
    %v737 = vmax.f32 %v419, 0.0
    %v738 = vmax.f32 %v424, 0.0
    %v739 = vmax.f32 %v429, 0.0
    %v740 = vmax.f32 %v434, 0.0
    %v741 = vmax.f32 %v439, 0.0
    %v742 = vmax.f32 %v444, 0.0
    %v743 = vmax.f32 %v449, 0.0
    %v744 = vmax.f32 %v454, 0.0
    %v745 = vmax.f32 %v459, 0.0
    %v746 = vmax.f32 %v464, 0.0
    %v747 = vmax.f32 %v469, 0.0
    %v748 = vmax.f32 %v474, 0.0
    %v749 = vmax.f32 %v479, 0.0
    %v750 = vmax.f32 %v484, 0.0
    %v751 = vmax.f32 %v489, 0.0
    %v752 = vmax.f32 %v494, 0.0
    %v753 = vmax.f32 %v499, 0.0
    %v754 = vmax.f32 %v504, 0.0
    %v755 = vmax.f32 %v509, 0.0
    %v756 = vmax.f32 %v514, 0.0
    %v757 = vmax.f32 %v519, 0.0
    %v758 = vmax.f32 %v524, 0.0
    %v759 = vmax.f32 %v529, 0.0
    %v760 = vmax.f32 %v534, 0.0
    %v761 = vmax.f32 %v539, 0.0
    %v762 = vmax.f32 %v544, 0.0
    %v763 = vmax.f32 %v549, 0.0
    %v764 = vmax.f32 %v554, 0.0
    %v765 = vmax.f32 %v559, 0.0
    %v766 = vmax.f32 %v564, 0.0
    %v767 = vmax.f32 %v569, 0.0
    %v768 = vmax.f32 %v574, 0.0
    %v769 = vmax.f32 %v579, 0.0
    %v770 = vmax.f32 %v584, 0.0
    %v771 = vmax.f32 %v589, 0.0
    %v772 = vmax.f32 %v594, 0.0
    %v773 = vmax.f32 %v599, 0.0
    %v774 = vmax.f32 %v604, 0.0
    %v775 = vmax.f32 %v609, 0.0
    %v776 = vmax.f32 %v614, 0.0
    %v777 = vmax.f32 %v619, 0.0
    %v778 = vmax.f32 %v624, 0.0
    %v779 = vmax.f32 %v629, 0.0
    %v780 = vmax.f32 %v634, 0.0
    %v781 = vmax.f32 %v639, 0.0
    %v782 = vmax.f32 %v644, 0.0
    %v783 = vmax.f32 %v649, 0.0
    %v784 = vmax.f32 %v654, 0.0
    %v785 = vmax.f32 %v659, 0.0
    %v786 = vmax.f32 %v664, 0.0
    %v787 = vmax.f32 %v669, 0.0
    %v788 = vmax.f32 %v674, 0.0
    %v789 = vmax.f32 %v679, 0.0
    %v790 = vmax.f32 %v684, 0.0
    %v791 = vmax.f32 %v689, 0.0
    %v792 = vmax.f32 %v694, 0.0
    %v793 = vmax.f32 %v699, 0.0
    %v794 = vmax.f32 %v704, 0.0
    %v795 = vmax.f32 %v709, 0.0
    %v796 = vmax.f32 %v714, 0.0
    %v797 = vmax.f32 %v719, 0.0
    %v798 = vmax.f32 %v724, 0.0
    %v799 = vmax.f32 %v729, 0.0
    %v800 = vmax.f32 %v734, 0.0
    %v801 = vld [vmem:[#allocation6] sm:$0xff]
    %v802 = vld [vmem:[#allocation6 + $0x8] sm:$0xff]
    %v803 = vld [vmem:[#allocation6 + $0x10] sm:$0xff]
    %v804 = vld [vmem:[#allocation6 + $0x18] sm:$0xff]
    %805 = vmatprep.subr.mxu0 0.0
    %806 = vmatpush1.msra.mxu0 %v737
    %807 = vmatprep.subr.mxu0 0.0
    %808 = vmatpush1.msra.mxu0 %v738
    %809 = vmatprep.subr.mxu0 0.0
    %810 = vmatpush1.msra.mxu0 %v739
    %811 = vmatprep.subr.mxu0 0.0
    %812 = vmatpush1.msra.mxu0 %v740
    %813 = vmatprep.subr.mxu0 0.0
    %814 = vmatpush1.msra.mxu0 %v741
    %815 = vmatprep.subr.mxu0 0.0
    %816 = vmatpush1.msra.mxu0 %v742
    %817 = vmatprep.subr.mxu0 0.0
    %818 = vmatpush1.msra.mxu0 %v743
    %819 = vmatprep.subr.mxu0 0.0
    %820 = vmatpush1.msra.mxu0 %v744
    %821 = vmatprep.subr.mxu0 0.0
    %822 = vmatpush1.msra.mxu0 %v745
    %823 = vmatprep.subr.mxu0 0.0
    %824 = vmatpush1.msra.mxu0 %v746
    %825 = vmatprep.subr.mxu0 0.0
    %826 = vmatpush1.msra.mxu0 %v747
    %827 = vmatprep.subr.mxu0 0.0
    %828 = vmatpush1.msra.mxu0 %v748
    %829 = vmatprep.subr.mxu0 0.0
    %830 = vmatpush1.msra.mxu0 %v749
    %831 = vmatprep.subr.mxu0 0.0
    %832 = vmatpush1.msra.mxu0 %v750
    %833 = vmatprep.subr.mxu0 0.0
    %834 = vmatpush1.msra.mxu0 %v751
    %835 = vmatprep.subr.mxu0 0.0
    %836 = vmatpush1.msra.mxu0 %v752
    %837 = vmatprep.subr.mxu0 0.0
    %838 = vmatpush1.msra.mxu0 %v753
    %839 = vmatprep.subr.mxu0 0.0
    %840 = vmatpush1.msra.mxu0 %v754
    %841 = vmatprep.subr.mxu0 0.0
    %842 = vmatpush1.msra.mxu0 %v755
    %843 = vmatprep.subr.mxu0 0.0
    %844 = vmatpush1.msra.mxu0 %v756
    %845 = vmatprep.subr.mxu0 0.0
    %846 = vmatpush1.msra.mxu0 %v757
    %847 = vmatprep.subr.mxu0 0.0
    %848 = vmatpush1.msra.mxu0 %v758
    %849 = vmatprep.subr.mxu0 0.0
    %850 = vmatpush1.msra.mxu0 %v759
    %851 = vmatprep.subr.mxu0 0.0
    %852 = vmatpush1.msra.mxu0 %v760
    %853 = vmatprep.subr.mxu0 0.0
    %854 = vmatpush1.msra.mxu0 %v761
    %855 = vmatprep.subr.mxu0 0.0
    %856 = vmatpush1.msra.mxu0 %v762
    %857 = vmatprep.subr.mxu0 0.0
    %858 = vmatpush1.msra.mxu0 %v763
    %859 = vmatprep.subr.mxu0 0.0
    %860 = vmatpush1.msra.mxu0 %v764
    %861 = vmatprep.subr.mxu0 0.0
    %862 = vmatpush1.msra.mxu0 %v765
    %863 = vmatprep.subr.mxu0 0.0
    %864 = vmatpush1.msra.mxu0 %v766
    %865 = vmatprep.subr.mxu0 0.0
    %866 = vmatpush1.msra.mxu0 %v767
    %867 = vmatprep.subr.mxu0 0.0
    %868 = vmatpush1.msra.mxu0 %v768
    %869 = vmatprep.mubr.f32.mxu0 %v802
    %870 = vmatmul.mubr.f32.gmra.mrb[0].mxu0 %v801
    %v871 = vpop.f32.mrb[0].mxu0
    %v872 = vadd.f32 0.0, %v871
    %v873 = vpop.f32.mrb[0].mxu0
    %874 = vdwg.mxu0
    %875 = vmatprep.subr.mxu0 0.0
    %876 = vmatpush1.msra.mxu0 %v769
    %877 = vmatprep.subr.mxu0 0.0
    %878 = vmatpush1.msra.mxu0 %v770
    %879 = vmatprep.subr.mxu0 0.0
    %880 = vmatpush1.msra.mxu0 %v771
    %881 = vmatprep.subr.mxu0 0.0
    %882 = vmatpush1.msra.mxu0 %v772
    %883 = vmatprep.subr.mxu0 0.0
    %884 = vmatpush1.msra.mxu0 %v773
    %885 = vmatprep.subr.mxu0 0.0
    %886 = vmatpush1.msra.mxu0 %v774
    %887 = vmatprep.subr.mxu0 0.0
    %888 = vmatpush1.msra.mxu0 %v775
    %889 = vmatprep.subr.mxu0 0.0
    %890 = vmatpush1.msra.mxu0 %v776
    %891 = vmatprep.subr.mxu0 0.0
    %892 = vmatpush1.msra.mxu0 %v777
    %893 = vmatprep.subr.mxu0 0.0
    %894 = vmatpush1.msra.mxu0 %v778
    %895 = vmatprep.subr.mxu0 0.0
    %896 = vmatpush1.msra.mxu0 %v779
    %897 = vmatprep.subr.mxu0 0.0
    %898 = vmatpush1.msra.mxu0 %v780
    %899 = vmatprep.subr.mxu0 0.0
    %900 = vmatpush1.msra.mxu0 %v781
    %901 = vmatprep.subr.mxu0 0.0
    %902 = vmatpush1.msra.mxu0 %v782
    %903 = vmatprep.subr.mxu0 0.0
    %904 = vmatpush1.msra.mxu0 %v783
    %905 = vmatprep.subr.mxu0 0.0
    %906 = vmatpush1.msra.mxu0 %v784
    %907 = vmatprep.subr.mxu0 0.0
    %908 = vmatpush1.msra.mxu0 %v785
    %909 = vmatprep.subr.mxu0 0.0
    %910 = vmatpush1.msra.mxu0 %v786
    %911 = vmatprep.subr.mxu0 0.0
    %912 = vmatpush1.msra.mxu0 %v787
    %913 = vmatprep.subr.mxu0 0.0
    %914 = vmatpush1.msra.mxu0 %v788
    %915 = vmatprep.subr.mxu0 0.0
    %916 = vmatpush1.msra.mxu0 %v789
    %917 = vmatprep.subr.mxu0 0.0
    %918 = vmatpush1.msra.mxu0 %v790
    %919 = vmatprep.subr.mxu0 0.0
    %920 = vmatpush1.msra.mxu0 %v791
    %921 = vmatprep.subr.mxu0 0.0
    %922 = vmatpush1.msra.mxu0 %v792
    %923 = vmatprep.subr.mxu0 0.0
    %924 = vmatpush1.msra.mxu0 %v793
    %925 = vmatprep.subr.mxu0 0.0
    %926 = vmatpush1.msra.mxu0 %v794
    %927 = vmatprep.subr.mxu0 0.0
    %928 = vmatpush1.msra.mxu0 %v795
    %929 = vmatprep.subr.mxu0 0.0
    %930 = vmatpush1.msra.mxu0 %v796
    %931 = vmatprep.subr.mxu0 0.0
    %932 = vmatpush1.msra.mxu0 %v797
    %933 = vmatprep.subr.mxu0 0.0
    %934 = vmatpush1.msra.mxu0 %v798
    %935 = vmatprep.subr.mxu0 0.0
    %936 = vmatpush1.msra.mxu0 %v799
    %937 = vmatprep.subr.mxu0 0.0
    %938 = vmatpush1.msra.mxu0 %v800
    %939 = vmatprep.mubr.f32.mxu0 %v804
    %940 = vmatmul.mubr.f32.gmra.mrb[0].mxu0 %v803
    %v941 = vpop.f32.mrb[0].mxu0
    %v942 = vadd.f32 %v872, %v941
    %v943 = vpop.f32.mrb[0].mxu0
    %944 = vdwg.mxu0
    %v945 = vld [vmem:[#allocation7] sm:$0xff]
    %v946 = vld [vmem:[#allocation7 + $0x8] sm:$0xff]
    %v947 = vld [vmem:[#allocation7 + $0x10] sm:$0xff]
    %v948 = vld [vmem:[#allocation7 + $0x18] sm:$0xff]
    %v949 = vld [vmem:[#allocation7 + $0x20] sm:$0xff]
    %v950 = vld [vmem:[#allocation7 + $0x28] sm:$0xff]
    %v951 = vld [vmem:[#allocation7 + $0x30] sm:$0xff]
    %v952 = vld [vmem:[#allocation7 + $0x38] sm:$0xff]
    %v953 = vld [vmem:[#allocation7 + $0x40] sm:$0xff]
    %v954 = vld [vmem:[#allocation7 + $0x48] sm:$0xff]
    %v955 = vld [vmem:[#allocation7 + $0x50] sm:$0xff]
    %v956 = vld [vmem:[#allocation7 + $0x58] sm:$0xff]
    %v957 = vld [vmem:[#allocation7 + $0x60] sm:$0xff]
    %v958 = vld [vmem:[#allocation7 + $0x68] sm:$0xff]
    %v959 = vld [vmem:[#allocation7 + $0x70] sm:$0xff]
    %v960 = vld [vmem:[#allocation7 + $0x78] sm:$0xff]
    %v961 = vld [vmem:[#allocation7 + $0x80] sm:$0xff]
    %v962 = vld [vmem:[#allocation7 + $0x88] sm:$0xff]
    %v963 = vld [vmem:[#allocation7 + $0x90] sm:$0xff]
    %v964 = vld [vmem:[#allocation7 + $0x98] sm:$0xff]
    %v965 = vld [vmem:[#allocation7 + $0xa0] sm:$0xff]
    %v966 = vld [vmem:[#allocation7 + $0xa8] sm:$0xff]
    %v967 = vld [vmem:[#allocation7 + $0xb0] sm:$0xff]
    %v968 = vld [vmem:[#allocation7 + $0xb8] sm:$0xff]
    %v969 = vld [vmem:[#allocation7 + $0xc0] sm:$0xff]
    %v970 = vld [vmem:[#allocation7 + $0xc8] sm:$0xff]
    %v971 = vld [vmem:[#allocation7 + $0xd0] sm:$0xff]
    %v972 = vld [vmem:[#allocation7 + $0xd8] sm:$0xff]
    %v973 = vld [vmem:[#allocation7 + $0xe0] sm:$0xff]
    %v974 = vld [vmem:[#allocation7 + $0xe8] sm:$0xff]
    %v975 = vld [vmem:[#allocation7 + $0xf0] sm:$0xff]
    %v976 = vld [vmem:[#allocation7 + $0xf8] sm:$0xff]
    %v977 = vunpack.c.l.bf16 %v945
    %v978 = vunpack.c.h.bf16 %v945
    %v979 = vunpack.c.l.bf16 %v946
    %v980 = vunpack.c.h.bf16 %v946
    %v981 = vunpack.c.l.bf16 %v947
    %v982 = vunpack.c.h.bf16 %v947
    %v983 = vunpack.c.l.bf16 %v948
    %v984 = vunpack.c.h.bf16 %v948
    %v985 = vunpack.c.l.bf16 %v949
    %v986 = vunpack.c.h.bf16 %v949
    %v987 = vunpack.c.l.bf16 %v950
    %v988 = vunpack.c.h.bf16 %v950
    %v989 = vunpack.c.l.bf16 %v951
    %v990 = vunpack.c.h.bf16 %v951
    %v991 = vunpack.c.l.bf16 %v952
    %v992 = vunpack.c.h.bf16 %v952
    %v993 = vunpack.c.l.bf16 %v953
    %v994 = vunpack.c.h.bf16 %v953
    %v995 = vunpack.c.l.bf16 %v954
    %v996 = vunpack.c.h.bf16 %v954
    %v997 = vunpack.c.l.bf16 %v955
    %v998 = vunpack.c.h.bf16 %v955
    %v999 = vunpack.c.l.bf16 %v956
    %v1000 = vunpack.c.h.bf16 %v956
    %v1001 = vunpack.c.l.bf16 %v957
    %v1002 = vunpack.c.h.bf16 %v957
    %v1003 = vunpack.c.l.bf16 %v958
    %v1004 = vunpack.c.h.bf16 %v958
    %v1005 = vunpack.c.l.bf16 %v959
    %v1006 = vunpack.c.h.bf16 %v959
    %v1007 = vunpack.c.l.bf16 %v960
    %v1008 = vunpack.c.h.bf16 %v960
    %v1009 = vunpack.c.l.bf16 %v961
    %v1010 = vunpack.c.h.bf16 %v961
    %v1011 = vunpack.c.l.bf16 %v962
    %v1012 = vunpack.c.h.bf16 %v962
    %v1013 = vunpack.c.l.bf16 %v963
    %v1014 = vunpack.c.h.bf16 %v963
    %v1015 = vunpack.c.l.bf16 %v964
    %v1016 = vunpack.c.h.bf16 %v964
    %v1017 = vunpack.c.l.bf16 %v965
    %v1018 = vunpack.c.h.bf16 %v965
    %v1019 = vunpack.c.l.bf16 %v966
    %v1020 = vunpack.c.h.bf16 %v966
    %v1021 = vunpack.c.l.bf16 %v967
    %v1022 = vunpack.c.h.bf16 %v967
    %v1023 = vunpack.c.l.bf16 %v968
    %v1024 = vunpack.c.h.bf16 %v968
    %v1025 = vunpack.c.l.bf16 %v969
    %v1026 = vunpack.c.h.bf16 %v969
    %v1027 = vunpack.c.l.bf16 %v970
    %v1028 = vunpack.c.h.bf16 %v970
    %v1029 = vunpack.c.l.bf16 %v971
    %v1030 = vunpack.c.h.bf16 %v971
    %v1031 = vunpack.c.l.bf16 %v972
    %v1032 = vunpack.c.h.bf16 %v972
    %v1033 = vunpack.c.l.bf16 %v973
    %v1034 = vunpack.c.h.bf16 %v973
    %v1035 = vunpack.c.l.bf16 %v974
    %v1036 = vunpack.c.h.bf16 %v974
    %v1037 = vunpack.c.l.bf16 %v975
    %v1038 = vunpack.c.h.bf16 %v975
    %v1039 = vunpack.c.l.bf16 %v976
    %v1040 = vunpack.c.h.bf16 %v976
    %v1041 = vld [vmem:[#allocation9] sm:$0xff]
    %v1042 = vld [vmem:[#allocation9 + $0x8] sm:$0xff]
    %v1045 = vlaneseq
    %v1046 = vshrl.u32 %v1045, 7
    %v1047 = vsub.s32 0, %v1046
    %v1048 = vrot.slane %v1041, %v1047
    %v1049 = vlaneseq
    %v1050 = vshrl.u32 %v1049, 7
    %v1051 = vsub.s32 1, %v1050
    %v1052 = vrot.slane %v1041, %v1051
    %v1053 = vlaneseq
    %v1054 = vshrl.u32 %v1053, 7
    %v1055 = vsub.s32 2, %v1054
    %v1056 = vrot.slane %v1041, %v1055
    %v1057 = vlaneseq
    %v1058 = vshrl.u32 %v1057, 7
    %v1059 = vsub.s32 3, %v1058
    %v1060 = vrot.slane %v1041, %v1059
    %v1061 = vlaneseq
    %v1062 = vshrl.u32 %v1061, 7
    %v1063 = vsub.s32 4, %v1062
    %v1064 = vrot.slane %v1041, %v1063
    %v1065 = vlaneseq
    %v1066 = vshrl.u32 %v1065, 7
    %v1067 = vsub.s32 5, %v1066
    %v1068 = vrot.slane %v1041, %v1067
    %v1069 = vlaneseq
    %v1070 = vshrl.u32 %v1069, 7
    %v1071 = vsub.s32 6, %v1070
    %v1072 = vrot.slane %v1041, %v1071
    %v1073 = vlaneseq
    %v1074 = vshrl.u32 %v1073, 7
    %v1075 = vsub.s32 7, %v1074
    %v1076 = vrot.slane %v1041, %v1075
    %v1077 = vlaneseq
    %v1078 = vshrl.u32 %v1077, 7
    %v1079 = vsub.s32 0, %v1078
    %v1080 = vrot.slane %v1042, %v1079
    %v1081 = vlaneseq
    %v1082 = vshrl.u32 %v1081, 7
    %v1083 = vsub.s32 1, %v1082
    %v1084 = vrot.slane %v1042, %v1083
    %v1085 = vlaneseq
    %v1086 = vshrl.u32 %v1085, 7
    %v1087 = vsub.s32 2, %v1086
    %v1088 = vrot.slane %v1042, %v1087
    %v1089 = vlaneseq
    %v1090 = vshrl.u32 %v1089, 7
    %v1091 = vsub.s32 3, %v1090
    %v1092 = vrot.slane %v1042, %v1091
    %v1093 = vlaneseq
    %v1094 = vshrl.u32 %v1093, 7
    %v1095 = vsub.s32 4, %v1094
    %v1096 = vrot.slane %v1042, %v1095
    %v1097 = vlaneseq
    %v1098 = vshrl.u32 %v1097, 7
    %v1099 = vsub.s32 5, %v1098
    %v1100 = vrot.slane %v1042, %v1099
    %v1101 = vlaneseq
    %v1102 = vshrl.u32 %v1101, 7
    %v1103 = vsub.s32 6, %v1102
    %v1104 = vrot.slane %v1042, %v1103
    %v1105 = vlaneseq
    %v1106 = vshrl.u32 %v1105, 7
    %v1107 = vsub.s32 7, %v1106
    %v1108 = vrot.slane %v1042, %v1107
    %vm1125 = vcmask 261120
    %v1127 = vsel %vm1125, %v942, 0
    %1129 = vmatprep.subr.mxu0 %v978
    %1130 = vmatpush1.msra.mxu0 %v977
    %1131 = vmatprep.subr.mxu0 %v994
    %1132 = vmatpush1.msra.mxu0 %v993
    %1133 = vmatprep.subr.mxu0 %v1010
    %1134 = vmatpush1.msra.mxu0 %v1009
    %1135 = vmatprep.subr.mxu0 %v1026
    %1136 = vmatpush1.msra.mxu0 %v1025
    %1137 = vmatprep.subr.mxu0 0.0
    %1138 = vmatpush1.msra.mxu0 0.0
    %1139 = vmatprep.subr.mxu0 0.0
    %1140 = vmatpush1.msra.mxu0 0.0
    %1141 = vmatprep.subr.mxu0 0.0
    %1142 = vmatpush1.msra.mxu0 0.0
    %1143 = vmatprep.subr.mxu0 0.0
    %1144 = vmatpush1.msra.mxu0 0.0
    %1145 = vmatprep.subr.mxu0 0.0
    %1146 = vmatpush1.msra.mxu0 0.0
    %1147 = vmatprep.subr.mxu0 0.0
    %1148 = vmatpush1.msra.mxu0 0.0
    %1149 = vmatprep.subr.mxu0 0.0
    %1150 = vmatpush1.msra.mxu0 0.0
    %1151 = vmatprep.subr.mxu0 0.0
    %1152 = vmatpush1.msra.mxu0 0.0
    %1153 = vmatprep.subr.mxu0 0.0
    %1154 = vmatpush1.msra.mxu0 0.0
    %1155 = vmatprep.subr.mxu0 0.0
    %1156 = vmatpush1.msra.mxu0 0.0
    %1157 = vmatprep.subr.mxu0 0.0
    %1158 = vmatpush1.msra.mxu0 0.0
    %1159 = vmatprep.subr.mxu0 0.0
    %1160 = vmatpush1.msra.mxu0 0.0
    %1161 = vmatprep.subr.mxu0 0.0
    %1162 = vmatpush1.msra.mxu0 0.0
    %1163 = vmatprep.subr.mxu0 0.0
    %1164 = vmatpush1.msra.mxu0 0.0
    %1165 = vmatprep.subr.mxu0 0.0
    %1166 = vmatpush1.msra.mxu0 0.0
    %1167 = vmatprep.subr.mxu0 0.0
    %1168 = vmatpush1.msra.mxu0 0.0
    %1169 = vmatprep.subr.mxu0 0.0
    %1170 = vmatpush1.msra.mxu0 0.0
    %1171 = vmatprep.subr.mxu0 0.0
    %1172 = vmatpush1.msra.mxu0 0.0
    %1173 = vmatprep.subr.mxu0 0.0
    %1174 = vmatpush1.msra.mxu0 0.0
    %1175 = vmatprep.subr.mxu0 0.0
    %1176 = vmatpush1.msra.mxu0 0.0
    %1177 = vmatprep.subr.mxu0 0.0
    %1178 = vmatpush1.msra.mxu0 0.0
    %1179 = vmatprep.subr.mxu0 0.0
    %1180 = vmatpush1.msra.mxu0 0.0
    %1181 = vmatprep.subr.mxu0 0.0
    %1182 = vmatpush1.msra.mxu0 0.0
    %1183 = vmatprep.subr.mxu0 0.0
    %1184 = vmatpush1.msra.mxu0 0.0
    %1185 = vmatprep.subr.mxu0 0.0
    %1186 = vmatpush1.msra.mxu0 0.0
    %1187 = vmatprep.subr.mxu0 0.0
    %1188 = vmatpush1.msra.mxu0 0.0
    %1189 = vmatprep.subr.mxu0 0.0
    %1190 = vmatpush1.msra.mxu0 0.0
    %1191 = vmatprep.subr.mxu0 0.0
    %1192 = vmatpush1.msra.mxu0 0.0
    %1193 = vmatprep.mubr.f32.mxu0 0.0
    %1194 = vmatmul.mubr.f32.gmra.mrb[0].mxu0 %v1127
    %v1195 = vpop.f32.mrb[0].mxu0
    %v1196 = vadd.f32 %v1048, %v1195
    %v1197 = vpop.f32.mrb[0].mxu0
    %v1198 = vadd.f32 %v1052, %v1197
    %1199 = vdwg.mxu0
    %1200 = vmatprep.subr.mxu0 %v980
    %1201 = vmatpush1.msra.mxu0 %v979
    %1202 = vmatprep.subr.mxu0 %v996
    %1203 = vmatpush1.msra.mxu0 %v995
    %1204 = vmatprep.subr.mxu0 %v1012
    %1205 = vmatpush1.msra.mxu0 %v1011
    %1206 = vmatprep.subr.mxu0 %v1028
    %1207 = vmatpush1.msra.mxu0 %v1027
    %1208 = vmatprep.subr.mxu0 0.0
    %1209 = vmatpush1.msra.mxu0 0.0
    %1210 = vmatprep.subr.mxu0 0.0
    %1211 = vmatpush1.msra.mxu0 0.0
    %1212 = vmatprep.subr.mxu0 0.0
    %1213 = vmatpush1.msra.mxu0 0.0
    %1214 = vmatprep.subr.mxu0 0.0
    %1215 = vmatpush1.msra.mxu0 0.0
    %1216 = vmatprep.subr.mxu0 0.0
    %1217 = vmatpush1.msra.mxu0 0.0
    %1218 = vmatprep.subr.mxu0 0.0
    %1219 = vmatpush1.msra.mxu0 0.0
    %1220 = vmatprep.subr.mxu0 0.0
    %1221 = vmatpush1.msra.mxu0 0.0
    %1222 = vmatprep.subr.mxu0 0.0
    %1223 = vmatpush1.msra.mxu0 0.0
    %1224 = vmatprep.subr.mxu0 0.0
    %1225 = vmatpush1.msra.mxu0 0.0
    %1226 = vmatprep.subr.mxu0 0.0
    %1227 = vmatpush1.msra.mxu0 0.0
    %1228 = vmatprep.subr.mxu0 0.0
    %1229 = vmatpush1.msra.mxu0 0.0
    %1230 = vmatprep.subr.mxu0 0.0
    %1231 = vmatpush1.msra.mxu0 0.0
    %1232 = vmatprep.subr.mxu0 0.0
    %1233 = vmatpush1.msra.mxu0 0.0
    %1234 = vmatprep.subr.mxu0 0.0
    %1235 = vmatpush1.msra.mxu0 0.0
    %1236 = vmatprep.subr.mxu0 0.0
    %1237 = vmatpush1.msra.mxu0 0.0
    %1238 = vmatprep.subr.mxu0 0.0
    %1239 = vmatpush1.msra.mxu0 0.0
    %1240 = vmatprep.subr.mxu0 0.0
    %1241 = vmatpush1.msra.mxu0 0.0
    %1242 = vmatprep.subr.mxu0 0.0
    %1243 = vmatpush1.msra.mxu0 0.0
    %1244 = vmatprep.subr.mxu0 0.0
    %1245 = vmatpush1.msra.mxu0 0.0
    %1246 = vmatprep.subr.mxu0 0.0
    %1247 = vmatpush1.msra.mxu0 0.0
    %1248 = vmatprep.subr.mxu0 0.0
    %1249 = vmatpush1.msra.mxu0 0.0
    %1250 = vmatprep.subr.mxu0 0.0
    %1251 = vmatpush1.msra.mxu0 0.0
    %1252 = vmatprep.subr.mxu0 0.0
    %1253 = vmatpush1.msra.mxu0 0.0
    %1254 = vmatprep.subr.mxu0 0.0
    %1255 = vmatpush1.msra.mxu0 0.0
    %1256 = vmatprep.subr.mxu0 0.0
    %1257 = vmatpush1.msra.mxu0 0.0
    %1258 = vmatprep.subr.mxu0 0.0
    %1259 = vmatpush1.msra.mxu0 0.0
    %1260 = vmatprep.subr.mxu0 0.0
    %1261 = vmatpush1.msra.mxu0 0.0
    %1262 = vmatprep.subr.mxu0 0.0
    %1263 = vmatpush1.msra.mxu0 0.0
    %1264 = vmatprep.mubr.f32.mxu0 0.0
    %1265 = vmatmul.mubr.f32.gmra.mrb[0].mxu0 %v1127
    %v1266 = vpop.f32.mrb[0].mxu0
    %v1267 = vadd.f32 %v1056, %v1266
    %v1268 = vpop.f32.mrb[0].mxu0
    %v1269 = vadd.f32 %v1060, %v1268
    %1270 = vdwg.mxu0
    %1271 = vmatprep.subr.mxu0 %v982
    %1272 = vmatpush1.msra.mxu0 %v981
    %1273 = vmatprep.subr.mxu0 %v998
    %1274 = vmatpush1.msra.mxu0 %v997
    %1275 = vmatprep.subr.mxu0 %v1014
    %1276 = vmatpush1.msra.mxu0 %v1013
    %1277 = vmatprep.subr.mxu0 %v1030
    %1278 = vmatpush1.msra.mxu0 %v1029
    %1279 = vmatprep.subr.mxu0 0.0
    %1280 = vmatpush1.msra.mxu0 0.0
    %1281 = vmatprep.subr.mxu0 0.0
    %1282 = vmatpush1.msra.mxu0 0.0
    %1283 = vmatprep.subr.mxu0 0.0
    %1284 = vmatpush1.msra.mxu0 0.0
    %1285 = vmatprep.subr.mxu0 0.0
    %1286 = vmatpush1.msra.mxu0 0.0
    %1287 = vmatprep.subr.mxu0 0.0
    %1288 = vmatpush1.msra.mxu0 0.0
    %1289 = vmatprep.subr.mxu0 0.0
    %1290 = vmatpush1.msra.mxu0 0.0
    %1291 = vmatprep.subr.mxu0 0.0
    %1292 = vmatpush1.msra.mxu0 0.0
    %1293 = vmatprep.subr.mxu0 0.0
    %1294 = vmatpush1.msra.mxu0 0.0
    %1295 = vmatprep.subr.mxu0 0.0
    %1296 = vmatpush1.msra.mxu0 0.0
    %1297 = vmatprep.subr.mxu0 0.0
    %1298 = vmatpush1.msra.mxu0 0.0
    %1299 = vmatprep.subr.mxu0 0.0
    %1300 = vmatpush1.msra.mxu0 0.0
    %1301 = vmatprep.subr.mxu0 0.0
    %1302 = vmatpush1.msra.mxu0 0.0
    %1303 = vmatprep.subr.mxu0 0.0
    %1304 = vmatpush1.msra.mxu0 0.0
    %1305 = vmatprep.subr.mxu0 0.0
    %1306 = vmatpush1.msra.mxu0 0.0
    %1307 = vmatprep.subr.mxu0 0.0
    %1308 = vmatpush1.msra.mxu0 0.0
    %1309 = vmatprep.subr.mxu0 0.0
    %1310 = vmatpush1.msra.mxu0 0.0
    %1311 = vmatprep.subr.mxu0 0.0
    %1312 = vmatpush1.msra.mxu0 0.0
    %1313 = vmatprep.subr.mxu0 0.0
    %1314 = vmatpush1.msra.mxu0 0.0
    %1315 = vmatprep.subr.mxu0 0.0
    %1316 = vmatpush1.msra.mxu0 0.0
    %1317 = vmatprep.subr.mxu0 0.0
    %1318 = vmatpush1.msra.mxu0 0.0
    %1319 = vmatprep.subr.mxu0 0.0
    %1320 = vmatpush1.msra.mxu0 0.0
    %1321 = vmatprep.subr.mxu0 0.0
    %1322 = vmatpush1.msra.mxu0 0.0
    %1323 = vmatprep.subr.mxu0 0.0
    %1324 = vmatpush1.msra.mxu0 0.0
    %1325 = vmatprep.subr.mxu0 0.0
    %1326 = vmatpush1.msra.mxu0 0.0
    %1327 = vmatprep.subr.mxu0 0.0
    %1328 = vmatpush1.msra.mxu0 0.0
    %1329 = vmatprep.subr.mxu0 0.0
    %1330 = vmatpush1.msra.mxu0 0.0
    %1331 = vmatprep.subr.mxu0 0.0
    %1332 = vmatpush1.msra.mxu0 0.0
    %1333 = vmatprep.subr.mxu0 0.0
    %1334 = vmatpush1.msra.mxu0 0.0
    %1335 = vmatprep.mubr.f32.mxu0 0.0
    %1336 = vmatmul.mubr.f32.gmra.mrb[0].mxu0 %v1127
    %v1337 = vpop.f32.mrb[0].mxu0
    %v1338 = vadd.f32 %v1064, %v1337
    %v1339 = vpop.f32.mrb[0].mxu0
    %v1340 = vadd.f32 %v1068, %v1339
    %1341 = vdwg.mxu0
    %1342 = vmatprep.subr.mxu0 %v984
    %1343 = vmatpush1.msra.mxu0 %v983
    %1344 = vmatprep.subr.mxu0 %v1000
    %1345 = vmatpush1.msra.mxu0 %v999
    %1346 = vmatprep.subr.mxu0 %v1016
    %1347 = vmatpush1.msra.mxu0 %v1015
    %1348 = vmatprep.subr.mxu0 %v1032
    %1349 = vmatpush1.msra.mxu0 %v1031
    %1350 = vmatprep.subr.mxu0 0.0
    %1351 = vmatpush1.msra.mxu0 0.0
    %1352 = vmatprep.subr.mxu0 0.0
    %1353 = vmatpush1.msra.mxu0 0.0
    %1354 = vmatprep.subr.mxu0 0.0
    %1355 = vmatpush1.msra.mxu0 0.0
    %1356 = vmatprep.subr.mxu0 0.0
    %1357 = vmatpush1.msra.mxu0 0.0
    %1358 = vmatprep.subr.mxu0 0.0
    %1359 = vmatpush1.msra.mxu0 0.0
    %1360 = vmatprep.subr.mxu0 0.0
    %1361 = vmatpush1.msra.mxu0 0.0
    %1362 = vmatprep.subr.mxu0 0.0
    %1363 = vmatpush1.msra.mxu0 0.0
    %1364 = vmatprep.subr.mxu0 0.0
    %1365 = vmatpush1.msra.mxu0 0.0
    %1366 = vmatprep.subr.mxu0 0.0
    %1367 = vmatpush1.msra.mxu0 0.0
    %1368 = vmatprep.subr.mxu0 0.0
    %1369 = vmatpush1.msra.mxu0 0.0
    %1370 = vmatprep.subr.mxu0 0.0
    %1371 = vmatpush1.msra.mxu0 0.0
    %1372 = vmatprep.subr.mxu0 0.0
    %1373 = vmatpush1.msra.mxu0 0.0
    %1374 = vmatprep.subr.mxu0 0.0
    %1375 = vmatpush1.msra.mxu0 0.0
    %1376 = vmatprep.subr.mxu0 0.0
    %1377 = vmatpush1.msra.mxu0 0.0
    %1378 = vmatprep.subr.mxu0 0.0
    %1379 = vmatpush1.msra.mxu0 0.0
    %1380 = vmatprep.subr.mxu0 0.0
    %1381 = vmatpush1.msra.mxu0 0.0
    %1382 = vmatprep.subr.mxu0 0.0
    %1383 = vmatpush1.msra.mxu0 0.0
    %1384 = vmatprep.subr.mxu0 0.0
    %1385 = vmatpush1.msra.mxu0 0.0
    %1386 = vmatprep.subr.mxu0 0.0
    %1387 = vmatpush1.msra.mxu0 0.0
    %1388 = vmatprep.subr.mxu0 0.0
    %1389 = vmatpush1.msra.mxu0 0.0
    %1390 = vmatprep.subr.mxu0 0.0
    %1391 = vmatpush1.msra.mxu0 0.0
    %1392 = vmatprep.subr.mxu0 0.0
    %1393 = vmatpush1.msra.mxu0 0.0
    %1394 = vmatprep.subr.mxu0 0.0
    %1395 = vmatpush1.msra.mxu0 0.0
    %1396 = vmatprep.subr.mxu0 0.0
    %1397 = vmatpush1.msra.mxu0 0.0
    %1398 = vmatprep.subr.mxu0 0.0
    %1399 = vmatpush1.msra.mxu0 0.0
    %1400 = vmatprep.subr.mxu0 0.0
    %1401 = vmatpush1.msra.mxu0 0.0
    %1402 = vmatprep.subr.mxu0 0.0
    %1403 = vmatpush1.msra.mxu0 0.0
    %1404 = vmatprep.subr.mxu0 0.0
    %1405 = vmatpush1.msra.mxu0 0.0
    %1406 = vmatprep.mubr.f32.mxu0 0.0
    %1407 = vmatmul.mubr.f32.gmra.mrb[0].mxu0 %v1127
    %v1408 = vpop.f32.mrb[0].mxu0
    %v1409 = vadd.f32 %v1072, %v1408
    %v1410 = vpop.f32.mrb[0].mxu0
    %v1411 = vadd.f32 %v1076, %v1410
    %1412 = vdwg.mxu0
    %1413 = vmatprep.subr.mxu0 %v986
    %1414 = vmatpush1.msra.mxu0 %v985
    %1415 = vmatprep.subr.mxu0 %v1002
    %1416 = vmatpush1.msra.mxu0 %v1001
    %1417 = vmatprep.subr.mxu0 %v1018
    %1418 = vmatpush1.msra.mxu0 %v1017
    %1419 = vmatprep.subr.mxu0 %v1034
    %1420 = vmatpush1.msra.mxu0 %v1033
    %1421 = vmatprep.subr.mxu0 0.0
    %1422 = vmatpush1.msra.mxu0 0.0
    %1423 = vmatprep.subr.mxu0 0.0
    %1424 = vmatpush1.msra.mxu0 0.0
    %1425 = vmatprep.subr.mxu0 0.0
    %1426 = vmatpush1.msra.mxu0 0.0
    %1427 = vmatprep.subr.mxu0 0.0
    %1428 = vmatpush1.msra.mxu0 0.0
    %1429 = vmatprep.subr.mxu0 0.0
    %1430 = vmatpush1.msra.mxu0 0.0
    %1431 = vmatprep.subr.mxu0 0.0
    %1432 = vmatpush1.msra.mxu0 0.0
    %1433 = vmatprep.subr.mxu0 0.0
    %1434 = vmatpush1.msra.mxu0 0.0
    %1435 = vmatprep.subr.mxu0 0.0
    %1436 = vmatpush1.msra.mxu0 0.0
    %1437 = vmatprep.subr.mxu0 0.0
    %1438 = vmatpush1.msra.mxu0 0.0
    %1439 = vmatprep.subr.mxu0 0.0
    %1440 = vmatpush1.msra.mxu0 0.0
    %1441 = vmatprep.subr.mxu0 0.0
    %1442 = vmatpush1.msra.mxu0 0.0
    %1443 = vmatprep.subr.mxu0 0.0
    %1444 = vmatpush1.msra.mxu0 0.0
    %1445 = vmatprep.subr.mxu0 0.0
    %1446 = vmatpush1.msra.mxu0 0.0
    %1447 = vmatprep.subr.mxu0 0.0
    %1448 = vmatpush1.msra.mxu0 0.0
    %1449 = vmatprep.subr.mxu0 0.0
    %1450 = vmatpush1.msra.mxu0 0.0
    %1451 = vmatprep.subr.mxu0 0.0
    %1452 = vmatpush1.msra.mxu0 0.0
    %1453 = vmatprep.subr.mxu0 0.0
    %1454 = vmatpush1.msra.mxu0 0.0
    %1455 = vmatprep.subr.mxu0 0.0
    %1456 = vmatpush1.msra.mxu0 0.0
    %1457 = vmatprep.subr.mxu0 0.0
    %1458 = vmatpush1.msra.mxu0 0.0
    %1459 = vmatprep.subr.mxu0 0.0
    %1460 = vmatpush1.msra.mxu0 0.0
    %1461 = vmatprep.subr.mxu0 0.0
    %1462 = vmatpush1.msra.mxu0 0.0
    %1463 = vmatprep.subr.mxu0 0.0
    %1464 = vmatpush1.msra.mxu0 0.0
    %1465 = vmatprep.subr.mxu0 0.0
    %1466 = vmatpush1.msra.mxu0 0.0
    %1467 = vmatprep.subr.mxu0 0.0
    %1468 = vmatpush1.msra.mxu0 0.0
    %1469 = vmatprep.subr.mxu0 0.0
    %1470 = vmatpush1.msra.mxu0 0.0
    %1471 = vmatprep.subr.mxu0 0.0
    %1472 = vmatpush1.msra.mxu0 0.0
    %1473 = vmatprep.subr.mxu0 0.0
    %1474 = vmatpush1.msra.mxu0 0.0
    %1475 = vmatprep.subr.mxu0 0.0
    %1476 = vmatpush1.msra.mxu0 0.0
    %1477 = vmatprep.mubr.f32.mxu0 0.0
    %1478 = vmatmul.mubr.f32.gmra.mrb[0].mxu0 %v1127
    %v1479 = vpop.f32.mrb[0].mxu0
    %v1480 = vadd.f32 %v1080, %v1479
    %v1481 = vpop.f32.mrb[0].mxu0
    %v1482 = vadd.f32 %v1084, %v1481
    %1483 = vdwg.mxu0
    %1484 = vmatprep.subr.mxu0 %v988
    %1485 = vmatpush1.msra.mxu0 %v987
    %1486 = vmatprep.subr.mxu0 %v1004
    %1487 = vmatpush1.msra.mxu0 %v1003
    %1488 = vmatprep.subr.mxu0 %v1020
    %1489 = vmatpush1.msra.mxu0 %v1019
    %1490 = vmatprep.subr.mxu0 %v1036
    %1491 = vmatpush1.msra.mxu0 %v1035
    %1492 = vmatprep.subr.mxu0 0.0
    %1493 = vmatpush1.msra.mxu0 0.0
    %1494 = vmatprep.subr.mxu0 0.0
    %1495 = vmatpush1.msra.mxu0 0.0
    %1496 = vmatprep.subr.mxu0 0.0
    %1497 = vmatpush1.msra.mxu0 0.0
    %1498 = vmatprep.subr.mxu0 0.0
    %1499 = vmatpush1.msra.mxu0 0.0
    %1500 = vmatprep.subr.mxu0 0.0
    %1501 = vmatpush1.msra.mxu0 0.0
    %1502 = vmatprep.subr.mxu0 0.0
    %1503 = vmatpush1.msra.mxu0 0.0
    %1504 = vmatprep.subr.mxu0 0.0
    %1505 = vmatpush1.msra.mxu0 0.0
    %1506 = vmatprep.subr.mxu0 0.0
    %1507 = vmatpush1.msra.mxu0 0.0
    %1508 = vmatprep.subr.mxu0 0.0
    %1509 = vmatpush1.msra.mxu0 0.0
    %1510 = vmatprep.subr.mxu0 0.0
    %1511 = vmatpush1.msra.mxu0 0.0
    %1512 = vmatprep.subr.mxu0 0.0
    %1513 = vmatpush1.msra.mxu0 0.0
    %1514 = vmatprep.subr.mxu0 0.0
    %1515 = vmatpush1.msra.mxu0 0.0
    %1516 = vmatprep.subr.mxu0 0.0
    %1517 = vmatpush1.msra.mxu0 0.0
    %1518 = vmatprep.subr.mxu0 0.0
    %1519 = vmatpush1.msra.mxu0 0.0
    %1520 = vmatprep.subr.mxu0 0.0
    %1521 = vmatpush1.msra.mxu0 0.0
    %1522 = vmatprep.subr.mxu0 0.0
    %1523 = vmatpush1.msra.mxu0 0.0
    %1524 = vmatprep.subr.mxu0 0.0
    %1525 = vmatpush1.msra.mxu0 0.0
    %1526 = vmatprep.subr.mxu0 0.0
    %1527 = vmatpush1.msra.mxu0 0.0
    %1528 = vmatprep.subr.mxu0 0.0
    %1529 = vmatpush1.msra.mxu0 0.0
    %1530 = vmatprep.subr.mxu0 0.0
    %1531 = vmatpush1.msra.mxu0 0.0
    %1532 = vmatprep.subr.mxu0 0.0
    %1533 = vmatpush1.msra.mxu0 0.0
    %1534 = vmatprep.subr.mxu0 0.0
    %1535 = vmatpush1.msra.mxu0 0.0
    %1536 = vmatprep.subr.mxu0 0.0
    %1537 = vmatpush1.msra.mxu0 0.0
    %1538 = vmatprep.subr.mxu0 0.0
    %1539 = vmatpush1.msra.mxu0 0.0
    %1540 = vmatprep.subr.mxu0 0.0
    %1541 = vmatpush1.msra.mxu0 0.0
    %1542 = vmatprep.subr.mxu0 0.0
    %1543 = vmatpush1.msra.mxu0 0.0
    %1544 = vmatprep.subr.mxu0 0.0
    %1545 = vmatpush1.msra.mxu0 0.0
    %1546 = vmatprep.subr.mxu0 0.0
    %1547 = vmatpush1.msra.mxu0 0.0
    %1548 = vmatprep.mubr.f32.mxu0 0.0
    %1549 = vmatmul.mubr.f32.gmra.mrb[0].mxu0 %v1127
    %v1550 = vpop.f32.mrb[0].mxu0
    %v1551 = vadd.f32 %v1088, %v1550
    %v1552 = vpop.f32.mrb[0].mxu0
    %v1553 = vadd.f32 %v1092, %v1552
    %1554 = vdwg.mxu0
    %1555 = vmatprep.subr.mxu0 %v990
    %1556 = vmatpush1.msra.mxu0 %v989
    %1557 = vmatprep.subr.mxu0 %v1006
    %1558 = vmatpush1.msra.mxu0 %v1005
    %1559 = vmatprep.subr.mxu0 %v1022
    %1560 = vmatpush1.msra.mxu0 %v1021
    %1561 = vmatprep.subr.mxu0 %v1038
    %1562 = vmatpush1.msra.mxu0 %v1037
    %1563 = vmatprep.subr.mxu0 0.0
    %1564 = vmatpush1.msra.mxu0 0.0
    %1565 = vmatprep.subr.mxu0 0.0
    %1566 = vmatpush1.msra.mxu0 0.0
    %1567 = vmatprep.subr.mxu0 0.0
    %1568 = vmatpush1.msra.mxu0 0.0
    %1569 = vmatprep.subr.mxu0 0.0
    %1570 = vmatpush1.msra.mxu0 0.0
    %1571 = vmatprep.subr.mxu0 0.0
    %1572 = vmatpush1.msra.mxu0 0.0
    %1573 = vmatprep.subr.mxu0 0.0
    %1574 = vmatpush1.msra.mxu0 0.0
    %1575 = vmatprep.subr.mxu0 0.0
    %1576 = vmatpush1.msra.mxu0 0.0
    %1577 = vmatprep.subr.mxu0 0.0
    %1578 = vmatpush1.msra.mxu0 0.0
    %1579 = vmatprep.subr.mxu0 0.0
    %1580 = vmatpush1.msra.mxu0 0.0
    %1581 = vmatprep.subr.mxu0 0.0
    %1582 = vmatpush1.msra.mxu0 0.0
    %1583 = vmatprep.subr.mxu0 0.0
    %1584 = vmatpush1.msra.mxu0 0.0
    %1585 = vmatprep.subr.mxu0 0.0
    %1586 = vmatpush1.msra.mxu0 0.0
    %1587 = vmatprep.subr.mxu0 0.0
    %1588 = vmatpush1.msra.mxu0 0.0
    %1589 = vmatprep.subr.mxu0 0.0
    %1590 = vmatpush1.msra.mxu0 0.0
    %1591 = vmatprep.subr.mxu0 0.0
    %1592 = vmatpush1.msra.mxu0 0.0
    %1593 = vmatprep.subr.mxu0 0.0
    %1594 = vmatpush1.msra.mxu0 0.0
    %1595 = vmatprep.subr.mxu0 0.0
    %1596 = vmatpush1.msra.mxu0 0.0
    %1597 = vmatprep.subr.mxu0 0.0
    %1598 = vmatpush1.msra.mxu0 0.0
    %1599 = vmatprep.subr.mxu0 0.0
    %1600 = vmatpush1.msra.mxu0 0.0
    %1601 = vmatprep.subr.mxu0 0.0
    %1602 = vmatpush1.msra.mxu0 0.0
    %1603 = vmatprep.subr.mxu0 0.0
    %1604 = vmatpush1.msra.mxu0 0.0
    %1605 = vmatprep.subr.mxu0 0.0
    %1606 = vmatpush1.msra.mxu0 0.0
    %1607 = vmatprep.subr.mxu0 0.0
    %1608 = vmatpush1.msra.mxu0 0.0
    %1609 = vmatprep.subr.mxu0 0.0
    %1610 = vmatpush1.msra.mxu0 0.0
    %1611 = vmatprep.subr.mxu0 0.0
    %1612 = vmatpush1.msra.mxu0 0.0
    %1613 = vmatprep.subr.mxu0 0.0
    %1614 = vmatpush1.msra.mxu0 0.0
    %1615 = vmatprep.subr.mxu0 0.0
    %1616 = vmatpush1.msra.mxu0 0.0
    %1617 = vmatprep.subr.mxu0 0.0
    %1618 = vmatpush1.msra.mxu0 0.0
    %1619 = vmatprep.mubr.f32.mxu0 0.0
    %1620 = vmatmul.mubr.f32.gmra.mrb[0].mxu0 %v1127
    %v1621 = vpop.f32.mrb[0].mxu0
    %v1622 = vadd.f32 %v1096, %v1621
    %v1623 = vpop.f32.mrb[0].mxu0
    %v1624 = vadd.f32 %v1100, %v1623
    %1625 = vdwg.mxu0
    %1626 = vmatprep.subr.mxu0 %v992
    %1627 = vmatpush1.msra.mxu0 %v991
    %1628 = vmatprep.subr.mxu0 %v1008
    %1629 = vmatpush1.msra.mxu0 %v1007
    %1630 = vmatprep.subr.mxu0 %v1024
    %1631 = vmatpush1.msra.mxu0 %v1023
    %1632 = vmatprep.subr.mxu0 %v1040
    %1633 = vmatpush1.msra.mxu0 %v1039
    %1634 = vmatprep.subr.mxu0 0.0
    %1635 = vmatpush1.msra.mxu0 0.0
    %1636 = vmatprep.subr.mxu0 0.0
    %1637 = vmatpush1.msra.mxu0 0.0
    %1638 = vmatprep.subr.mxu0 0.0
    %1639 = vmatpush1.msra.mxu0 0.0
    %1640 = vmatprep.subr.mxu0 0.0
    %1641 = vmatpush1.msra.mxu0 0.0
    %1642 = vmatprep.subr.mxu0 0.0
    %1643 = vmatpush1.msra.mxu0 0.0
    %1644 = vmatprep.subr.mxu0 0.0
    %1645 = vmatpush1.msra.mxu0 0.0
    %1646 = vmatprep.subr.mxu0 0.0
    %1647 = vmatpush1.msra.mxu0 0.0
    %1648 = vmatprep.subr.mxu0 0.0
    %1649 = vmatpush1.msra.mxu0 0.0
    %1650 = vmatprep.subr.mxu0 0.0
    %1651 = vmatpush1.msra.mxu0 0.0
    %1652 = vmatprep.subr.mxu0 0.0
    %1653 = vmatpush1.msra.mxu0 0.0
    %1654 = vmatprep.subr.mxu0 0.0
    %1655 = vmatpush1.msra.mxu0 0.0
    %1656 = vmatprep.subr.mxu0 0.0
    %1657 = vmatpush1.msra.mxu0 0.0
    %1658 = vmatprep.subr.mxu0 0.0
    %1659 = vmatpush1.msra.mxu0 0.0
    %1660 = vmatprep.subr.mxu0 0.0
    %1661 = vmatpush1.msra.mxu0 0.0
    %1662 = vmatprep.subr.mxu0 0.0
    %1663 = vmatpush1.msra.mxu0 0.0
    %1664 = vmatprep.subr.mxu0 0.0
    %1665 = vmatpush1.msra.mxu0 0.0
    %1666 = vmatprep.subr.mxu0 0.0
    %1667 = vmatpush1.msra.mxu0 0.0
    %1668 = vmatprep.subr.mxu0 0.0
    %1669 = vmatpush1.msra.mxu0 0.0
    %1670 = vmatprep.subr.mxu0 0.0
    %1671 = vmatpush1.msra.mxu0 0.0
    %1672 = vmatprep.subr.mxu0 0.0
    %1673 = vmatpush1.msra.mxu0 0.0
    %1674 = vmatprep.subr.mxu0 0.0
    %1675 = vmatpush1.msra.mxu0 0.0
    %1676 = vmatprep.subr.mxu0 0.0
    %1677 = vmatpush1.msra.mxu0 0.0
    %1678 = vmatprep.subr.mxu0 0.0
    %1679 = vmatpush1.msra.mxu0 0.0
    %1680 = vmatprep.subr.mxu0 0.0
    %1681 = vmatpush1.msra.mxu0 0.0
    %1682 = vmatprep.subr.mxu0 0.0
    %1683 = vmatpush1.msra.mxu0 0.0
    %1684 = vmatprep.subr.mxu0 0.0
    %1685 = vmatpush1.msra.mxu0 0.0
    %1686 = vmatprep.subr.mxu0 0.0
    %1687 = vmatpush1.msra.mxu0 0.0
    %1688 = vmatprep.subr.mxu0 0.0
    %1689 = vmatpush1.msra.mxu0 0.0
    %1690 = vmatprep.mubr.f32.mxu0 0.0
    %1691 = vmatmul.mubr.f32.gmra.mrb[0].mxu0 %v1127
    %v1692 = vpop.f32.mrb[0].mxu0
    %v1693 = vadd.f32 %v1104, %v1692
    %v1694 = vpop.f32.mrb[0].mxu0
    %v1695 = vadd.f32 %v1108, %v1694
    %1696 = vdwg.mxu0
    %v1697 = vmax.f32 %v1196, 0.0
    %v1698 = vmax.f32 %v1198, 0.0
    %v1699 = vmax.f32 %v1267, 0.0
    %v1700 = vmax.f32 %v1269, 0.0
    %v1701 = vmax.f32 %v1338, 0.0
    %v1702 = vmax.f32 %v1340, 0.0
    %v1703 = vmax.f32 %v1409, 0.0
    %v1704 = vmax.f32 %v1411, 0.0
    %v1705 = vmax.f32 %v1480, 0.0
    %v1706 = vmax.f32 %v1482, 0.0
    %v1707 = vmax.f32 %v1551, 0.0
    %v1708 = vmax.f32 %v1553, 0.0
    %v1709 = vmax.f32 %v1622, 0.0
    %v1710 = vmax.f32 %v1624, 0.0
    %v1711 = vmax.f32 %v1693, 0.0
    %v1712 = vmax.f32 %v1695, 0.0
    %1713 = vst [vmem:[%s6] sm:$0xff] %v1697
    %1714 = vst [vmem:[%s6 + $0x8] sm:$0xff] %v1698
    %1715 = vst [vmem:[%s6 + $0x10] sm:$0xff] %v1699
    %1716 = vst [vmem:[%s6 + $0x18] sm:$0xff] %v1700
    %1717 = vst [vmem:[%s6 + $0x20] sm:$0xff] %v1701
    %1718 = vst [vmem:[%s6 + $0x28] sm:$0xff] %v1702
    %1719 = vst [vmem:[%s6 + $0x30] sm:$0xff] %v1703
    %1720 = vst [vmem:[%s6 + $0x38] sm:$0xff] %v1704
    %1721 = vst [vmem:[%s6 + $0x40] sm:$0xff] %v1705
    %1722 = vst [vmem:[%s6 + $0x48] sm:$0xff] %v1706
    %1723 = vst [vmem:[%s6 + $0x50] sm:$0xff] %v1707
    %1724 = vst [vmem:[%s6 + $0x58] sm:$0xff] %v1708
    %1725 = vst [vmem:[%s6 + $0x60] sm:$0xff] %v1709
    %1726 = vst [vmem:[%s6 + $0x68] sm:$0xff] %v1710
    %1727 = vst [vmem:[%s6 + $0x70] sm:$0xff] %v1711
    %1728 = vst [vmem:[%s6 + $0x78] sm:$0xff] %v1712
    // Predicated region
    $region46: #{classifier_clr_forward.2} parent=1 // pred_check
      _
    $region47: #{classifier_clr_forward.2} parent=1 // pred_check_branch
      %1730 = sbr.rel (0) target = $region49
    $region48: #{classifier_clr_forward.2} parent=1 // pred_region
      _
    $region49: #{classifier_clr_forward.2} parent=1 // pred_fallthru
      _
    // Predicated region
    $region50: #{classifier_clr_forward.2} parent=1 // pred_check
      _
    $region51: #{classifier_clr_forward.2} parent=1 // pred_check_branch
      %1732 = sbr.rel (0) target = $region53
    $region52: #{classifier_clr_forward.2} parent=1 // pred_region
      _
    $region53: #{classifier_clr_forward.2} parent=1 // pred_fallthru
      _
    %1733 = vsyncpa [#allocation3], 1
    %1734 = vsyncpa [#allocation5], 1
    %1735 = vsyncpa [#allocation8], 1

// kernel: classifier_clr_forward.3
$region0: #{classifier_clr_forward.3}
  #allocation0 [shape = 'u32[]', space=smem, size = 0x4, offset = 0x4, fixed_abs, tag = 'smem constant byte address 0x4 - core index']
  #allocation1 [shape = 'u32[144,128]{1,0:T(1,128)}', space=vmem, size = 0x12000, scoped, tag = 'internal scratch']
  %s0 = inlined_call_operand.vmem [shape: f32[8,2048], index: 0, kind: input, shape index: {}]
  %s1 = inlined_call_operand.hbm [shape: bf16[2048,1024], index: 1, kind: input, shape index: {}]
  %s2 = inlined_call_operand.hbm [shape: f32[1,1024], index: 2, kind: input, shape index: {}]
  %s3 = inlined_call_operand.vmem [shape: f32[8,1024], index: 3, kind: output, shape index: {}]
  %s4 = sld [smem:[#allocation0]]
  $region53: #{classifier_clr_forward.3} parent=0
    _
  %s6 = ssub.s32 1, %s4
  %s7 = scalar_select 0, %s6, %s4
  $region1: #{classifier_clr_forward.3} parent=0
    #allocation2 [shape = 'u8[4194304]{0}', space=vmem, size = 0x400000, scoped, tag = 'input window, operand 1']
    #allocation3 [shape = 's32[2]{0}', space=sflag, size = 0x8, scoped, tag = 'scoped memory for classifier_clr_forward.3']
    #allocation4 [shape = 'u8[4096]{0}', space=vmem, size = 0x1000, scoped, tag = 'input window, operand 2']
    #allocation5 [shape = 's32[2]{0}', space=sflag, size = 0x8, scoped, tag = 'scoped memory for classifier_clr_forward.3']
    %8 = vsyncpa [#allocation3], 0
    %s9 = scalar_lea.sflag [#allocation3], 1
    %10 = vsyncpa %s9, 0
    %11 = vsyncpa [#allocation5], 0
    %s12 = scalar_lea.sflag [#allocation5], 1
    %13 = vsyncpa %s12, 0
    loop: start=0, step=1, limit=4
    $region2: #{classifier_clr_forward.3} parent=1 // loop_pre_header
      _
    $region3: #{classifier_clr_forward.3} parent=1 // loop_header
      %s15 = sphi 0, %s19
      %p16 = scmp.ge.s32.totalorder %s15, 4
      %s23 = sphi 0, %s23
      %s25 = sphi 0, %s23
      %s26 = sphi 0, %s25
      %s40 = sphi 0, %s26
      %s46 = sphi 0, %s48
      %s49 = sphi 0, %s46
      %s50 = sphi 0, %s49
      %s66 = sphi 0, %s50
      %s72 = sphi 0, %s74
      %s75 = sphi 0, %s72
      %s76 = sphi 0, %s75
      %s92 = sphi 0, %s76
      %s98 = sphi 0, %s100
      %s101 = sphi 0, %s98
      %s102 = sphi 0, %s101
      %s118 = sphi 0, %s102
    $region4: #{classifier_clr_forward.3} parent=1 // loop_header_branch
      %18 = sbr.rel (%p16) target = $region8
    $region5: #{classifier_clr_forward.3} parent=1 // loop_body
      %s20 = ssub.s32 %s15, 1
      %s21 = ssub.s32 %s15, 2
      %s22 = sadd.s32 %s15, 1
      %s24 = sadd.s32 %s23, 1
      %p27 = scmp.eq.s32.totalorder %s15, 1
      %p28 = scmp.ne.s32.totalorder %s23, %s25
      %p29 = scmp.eq.s32.totalorder %s15, 0
      %p30 = por %p28, %p29
      %p31 = scmp.ne.s32.totalorder %s23, %s25
      %p32 = scmp.eq.s32.totalorder %s20, 1
      %p33 = por %p31, %p32
      %p34 = scmp.ne.s32.totalorder %s25, %s26
      %p35 = scmp.eq.s32.totalorder %s20, 0
      %p36 = por %p34, %p35
      %p37 = scmp.ne.s32.totalorder %s25, %s26
      %p38 = scmp.eq.s32.totalorder %s21, 1
      %p39 = por %p37, %p38
      %p41 = scmp.ne.s32.totalorder %s26, %s40
      %p42 = scmp.eq.s32.totalorder %s21, 0
      %p43 = por %p41, %p42
      %s44 = ssub.s32 %s15, %s22
      %p45 = scmp.eq.s32.totalorder %s44, 0
      %s47 = sadd.s32 %s46, 1
      %s48 = scalar_select %p45, %s46, %s47
      %p51 = pneg %p45
      %p52 = scmp.eq.s32.totalorder %s15, 1
      %p53 = por %p51, %p52
      %p54 = scmp.ne.s32.totalorder %s46, %s49
      %p55 = scmp.eq.s32.totalorder %s15, 0
      %p56 = por %p54, %p55
      %p57 = scmp.ne.s32.totalorder %s46, %s49
      %p58 = scmp.eq.s32.totalorder %s20, 1
      %p59 = por %p57, %p58
      %p60 = scmp.ne.s32.totalorder %s49, %s50
      %p61 = scmp.eq.s32.totalorder %s20, 0
      %p62 = por %p60, %p61
      %p63 = scmp.ne.s32.totalorder %s49, %s50
      %p64 = scmp.eq.s32.totalorder %s21, 1
      %p65 = por %p63, %p64
      %p67 = scmp.ne.s32.totalorder %s50, %s66
      %p68 = scmp.eq.s32.totalorder %s21, 0
      %p69 = por %p67, %p68
      %s70 = ssub.s32 %s15, %s22
      %p71 = scmp.eq.s32.totalorder %s70, 0
      %s73 = sadd.s32 %s72, 1
      %s74 = scalar_select %p71, %s72, %s73
      %p77 = pneg %p71
      %p78 = scmp.eq.s32.totalorder %s15, 1
      %p79 = por %p77, %p78
      %p80 = scmp.ne.s32.totalorder %s72, %s75
      %p81 = scmp.eq.s32.totalorder %s15, 0
      %p82 = por %p80, %p81
      %p83 = scmp.ne.s32.totalorder %s72, %s75
      %p84 = scmp.eq.s32.totalorder %s20, 1
      %p85 = por %p83, %p84
      %p86 = scmp.ne.s32.totalorder %s75, %s76
      %p87 = scmp.eq.s32.totalorder %s20, 0
      %p88 = por %p86, %p87
      %p89 = scmp.ne.s32.totalorder %s75, %s76
      %p90 = scmp.eq.s32.totalorder %s21, 1
      %p91 = por %p89, %p90
      %p93 = scmp.ne.s32.totalorder %s76, %s92
      %p94 = scmp.eq.s32.totalorder %s21, 0
      %p95 = por %p93, %p94
      %s96 = ssub.s32 %s15, %s22
      %p97 = scmp.eq.s32.totalorder %s96, 0
      %s99 = sadd.s32 %s98, 1
      %s100 = scalar_select %p97, %s98, %s99
      %p103 = pneg %p97
      %p104 = scmp.eq.s32.totalorder %s15, 1
      %p105 = por %p103, %p104
      %p106 = scmp.ne.s32.totalorder %s98, %s101
      %p107 = scmp.eq.s32.totalorder %s15, 0
      %p108 = por %p106, %p107
      %p109 = scmp.ne.s32.totalorder %s98, %s101
      %p110 = scmp.eq.s32.totalorder %s20, 1
      %p111 = por %p109, %p110
      %p112 = scmp.ne.s32.totalorder %s101, %s102
      %p113 = scmp.eq.s32.totalorder %s20, 0
      %p114 = por %p112, %p113
      %p115 = scmp.ne.s32.totalorder %s101, %s102
      %p116 = scmp.eq.s32.totalorder %s21, 1
      %p117 = por %p115, %p116
      %p119 = scmp.ne.s32.totalorder %s102, %s118
      %p120 = scmp.eq.s32.totalorder %s21, 0
      %p121 = por %p119, %p120
      %p122 = scmp.le.s32.totalorder 1, %s15
      %p123 = scmp.lt.s32.totalorder %s15, 3
      %p124 = pnand %p122, %p123
      %p125 = pneg %p124
      // Predicated region
      $region9: #{classifier_clr_forward.3} parent=5 // pred_check
        _
      $region10: #{classifier_clr_forward.3} parent=5 // pred_check_branch
        %127 = sbr.rel (%p124) target = $region12
      $region11: #{classifier_clr_forward.3} parent=5 // pred_region
        %s128 = ssub.s32 %s15, 1
        // Predicated region
        $region13: #{classifier_clr_forward.3} parent=11 // pred_check
          %p129 = pneg %p36
        $region14: #{classifier_clr_forward.3} parent=11 // pred_check_branch
          %131 = sbr.rel (%p129) target = $region16
        $region15: #{classifier_clr_forward.3} parent=11 // pred_region
          _
        $region16: #{classifier_clr_forward.3} parent=11 // pred_fallthru
          _
      $region12: #{classifier_clr_forward.3} parent=5 // pred_fallthru
        _
      %p132 = scmp.lt.s32.totalorder %s15, 2
      // Predicated region
      $region17: #{classifier_clr_forward.3} parent=5 // pred_check
        %p133 = pneg %p132
      $region18: #{classifier_clr_forward.3} parent=5 // pred_check_branch
        %135 = sbr.rel (%p133) target = $region20
      $region19: #{classifier_clr_forward.3} parent=5 // pred_region
        // Predicated region
        $region21: #{classifier_clr_forward.3} parent=19 // pred_check
          %p136 = pneg %p56
        $region22: #{classifier_clr_forward.3} parent=19 // pred_check_branch
          %138 = sbr.rel (%p136) target = $region24
        $region23: #{classifier_clr_forward.3} parent=19 // pred_region
          %s139 = sand.u32 %s46, 1
          %s140 = scalar_lea.sflag [#allocation3], %s139
          %s141 = sand.u32 %s46, 1
          %s142 = smul.addr %s141, 4096
          %s143 = scalar_lea.vmem [#allocation2], %s142
          %s144 = smul.u32 4, %s15
          %s146 = ssub.s32 65536, 65536
          %147 = vsyncadd %s140, %s146
          %s148 = smul.addr %s144, 64
          %s149 = scalar_lea.hbm %s1, %s148
          %s150 = sshll.u32 %s143, 4
          %s151 = int_to_ptr.vmem [resolvable:$true] %s150
          %156 = dma.hbm_to_vmem [thread:$0]  %s149, 65536, %s151, %s140, 512, 256, 16
        $region24: #{classifier_clr_forward.3} parent=19 // pred_fallthru
          _
        // Predicated region
        $region25: #{classifier_clr_forward.3} parent=19 // pred_check
          %p157 = pneg %p82
        $region26: #{classifier_clr_forward.3} parent=19 // pred_check_branch
          %159 = sbr.rel (%p157) target = $region28
        $region27: #{classifier_clr_forward.3} parent=19 // pred_region
          %s160 = sand.u32 %s72, 1
          %s161 = scalar_lea.sflag [#allocation5], %s160
          %s162 = sand.u32 %s72, 1
          %s163 = smul.addr %s162, 4
          %s164 = scalar_lea.vmem [#allocation4], %s163
          %s165 = smul.u32 4, %s15
          %s167 = ssub.s32 64, 64
          %168 = vsyncadd %s161, %s167
          %s169 = smul.addr %s165, 16
          %s170 = scalar_lea.hbm %s2, %s169
          %s172 = sshll.u32 %s164, 4
          %s173 = int_to_ptr.vmem [resolvable:$true] %s172
          %175 = dma.hbm_to_vmem [thread:$0]  %s170, 64, %s173, %s161
        $region28: #{classifier_clr_forward.3} parent=19 // pred_fallthru
          _
      $region20: #{classifier_clr_forward.3} parent=5 // pred_fallthru
        _
      %p176 = scmp.le.s32.totalorder 1, %s15
      %p177 = scmp.lt.s32.totalorder %s15, 3
      %p178 = pnand %p176, %p177
      %p179 = pneg %p178
      // Predicated region
      $region29: #{classifier_clr_forward.3} parent=5 // pred_check
        _
      $region30: #{classifier_clr_forward.3} parent=5 // pred_check_branch
        %181 = sbr.rel (%p178) target = $region32
      $region31: #{classifier_clr_forward.3} parent=5 // pred_region
        %s182 = ssub.s32 %s15, 1
        %s183 = sand.u32 %s49, 1
        %s184 = scalar_lea.sflag [#allocation3], %s183
        %s185 = sand.u32 %s49, 1
        %s186 = smul.addr %s185, 4096
        %s187 = scalar_lea.vmem [#allocation2], %s186
        // Predicated region
        $region33: #{classifier_clr_forward.3} parent=31 // pred_check
          %p188 = pneg %p62
        $region34: #{classifier_clr_forward.3} parent=31 // pred_check_branch
          %190 = sbr.rel (%p188) target = $region36
        $region35: #{classifier_clr_forward.3} parent=31 // pred_region
          %191 = dma.done %s184, 65536
        $region36: #{classifier_clr_forward.3} parent=31 // pred_fallthru
          _
        %s192 = sand.u32 %s75, 1
        %s193 = scalar_lea.sflag [#allocation5], %s192
        %s194 = sand.u32 %s75, 1
        %s195 = smul.addr %s194, 4
        %s196 = scalar_lea.vmem [#allocation4], %s195
        // Predicated region
        $region37: #{classifier_clr_forward.3} parent=31 // pred_check
          %p197 = pneg %p88
        $region38: #{classifier_clr_forward.3} parent=31 // pred_check_branch
          %199 = sbr.rel (%p197) target = $region40
        $region39: #{classifier_clr_forward.3} parent=31 // pred_region
          %200 = dma.done %s193, 64
        $region40: #{classifier_clr_forward.3} parent=31 // pred_fallthru
          _
        %p201 = pneg %p36
        %p202 = pneg %p33
        %s203 = sand.u32 %s49, 1
        %s204 = scalar_lea.sflag [#allocation3], %s203
        %s205 = sand.u32 %s49, 1
        %s206 = smul.addr %s205, 4096
        %s207 = scalar_lea.vmem [#allocation2], %s206
        %p208 = pneg %p62
        %p209 = pneg %p59
        %s210 = sand.u32 %s75, 1
        %s211 = scalar_lea.sflag [#allocation5], %s210
        %s212 = sand.u32 %s75, 1
        %s213 = smul.addr %s212, 4
        %s214 = scalar_lea.vmem [#allocation4], %s213
        %p215 = pneg %p88
        %p216 = pneg %p85
        %p217 = pneg %p114
        %p218 = pneg %p111
        %s219 = smul.u32 4, %s20
        %p220 = scmp.lt.s32.totalorder %s219, 7
        %s221 = scalar_select %p220, %s219, 7
        %s222 = smul.addr %s221, 8
        %s223 = scalar_lea.vmem %s3, %s222
        %s224 = smul.u32 4, %s20
        %s225 = smul.u32 4, %s20
        %s226 = smul.u32 4, %s20
        %p227 = scmp.lt.s32.totalorder %s226, 7
        %s228 = scalar_select %p227, %s226, 7
        %s229 = smul.addr %s228, 8
        %s230 = scalar_lea.vmem %s3, %s229
        %s231 = smul.u32 4, %s20
        %v232 = vld [vmem:[%s0] sm:$0xff]
        %v233 = vld [vmem:[%s0 + $0x8] sm:$0xff]
        %v234 = vld [vmem:[%s0 + $0x10] sm:$0xff]
        %v235 = vld [vmem:[%s0 + $0x18] sm:$0xff]
        %v236 = vld [vmem:[%s0 + $0x20] sm:$0xff]
        %v237 = vld [vmem:[%s0 + $0x28] sm:$0xff]
        %v238 = vld [vmem:[%s0 + $0x30] sm:$0xff]
        %v239 = vld [vmem:[%s0 + $0x38] sm:$0xff]
        %v240 = vld [vmem:[%s0 + $0x40] sm:$0xff]
        %v241 = vld [vmem:[%s0 + $0x48] sm:$0xff]
        %v242 = vld [vmem:[%s0 + $0x50] sm:$0xff]
        %v243 = vld [vmem:[%s0 + $0x58] sm:$0xff]
        %v244 = vld [vmem:[%s0 + $0x60] sm:$0xff]
        %v245 = vld [vmem:[%s0 + $0x68] sm:$0xff]
        %v246 = vld [vmem:[%s0 + $0x70] sm:$0xff]
        %v247 = vld [vmem:[%s0 + $0x78] sm:$0xff]
        %v248 = vld [vmem:[%s187] sm:$0xff]
        %v249 = vld [vmem:[%s187 + $0x8] sm:$0xff]
        %v250 = vld [vmem:[%s187 + $0x10] sm:$0xff]
        %v251 = vld [vmem:[%s187 + $0x18] sm:$0xff]
        %v252 = vld [vmem:[%s187 + $0x20] sm:$0xff]
        %v253 = vld [vmem:[%s187 + $0x28] sm:$0xff]
        %v254 = vld [vmem:[%s187 + $0x30] sm:$0xff]
        %v255 = vld [vmem:[%s187 + $0x38] sm:$0xff]
        %v256 = vld [vmem:[%s187 + $0x40] sm:$0xff]
        %v257 = vld [vmem:[%s187 + $0x48] sm:$0xff]
        %v258 = vld [vmem:[%s187 + $0x50] sm:$0xff]
        %v259 = vld [vmem:[%s187 + $0x58] sm:$0xff]
        %v260 = vld [vmem:[%s187 + $0x60] sm:$0xff]
        %v261 = vld [vmem:[%s187 + $0x68] sm:$0xff]
        %v262 = vld [vmem:[%s187 + $0x70] sm:$0xff]
        %v263 = vld [vmem:[%s187 + $0x78] sm:$0xff]
        %v264 = vld [vmem:[%s187 + $0x80] sm:$0xff]
        %v265 = vld [vmem:[%s187 + $0x88] sm:$0xff]
        %v266 = vld [vmem:[%s187 + $0x90] sm:$0xff]
        %v267 = vld [vmem:[%s187 + $0x98] sm:$0xff]
        %v268 = vld [vmem:[%s187 + $0xa0] sm:$0xff]
        %v269 = vld [vmem:[%s187 + $0xa8] sm:$0xff]
        %v270 = vld [vmem:[%s187 + $0xb0] sm:$0xff]
        %v271 = vld [vmem:[%s187 + $0xb8] sm:$0xff]
        %v272 = vld [vmem:[%s187 + $0xc0] sm:$0xff]
        %v273 = vld [vmem:[%s187 + $0xc8] sm:$0xff]
        %v274 = vld [vmem:[%s187 + $0xd0] sm:$0xff]
        %v275 = vld [vmem:[%s187 + $0xd8] sm:$0xff]
        %v276 = vld [vmem:[%s187 + $0xe0] sm:$0xff]
        %v277 = vld [vmem:[%s187 + $0xe8] sm:$0xff]
        %v278 = vld [vmem:[%s187 + $0xf0] sm:$0xff]
        %v279 = vld [vmem:[%s187 + $0xf8] sm:$0xff]
        %v280 = vld [vmem:[%s187 + $0x100] sm:$0xff]
        %v281 = vld [vmem:[%s187 + $0x108] sm:$0xff]
        %v282 = vld [vmem:[%s187 + $0x110] sm:$0xff]
        %v283 = vld [vmem:[%s187 + $0x118] sm:$0xff]
        %v284 = vld [vmem:[%s187 + $0x120] sm:$0xff]
        %v285 = vld [vmem:[%s187 + $0x128] sm:$0xff]
        %v286 = vld [vmem:[%s187 + $0x130] sm:$0xff]
        %v287 = vld [vmem:[%s187 + $0x138] sm:$0xff]
        %v288 = vld [vmem:[%s187 + $0x140] sm:$0xff]
        %v289 = vld [vmem:[%s187 + $0x148] sm:$0xff]
        %v290 = vld [vmem:[%s187 + $0x150] sm:$0xff]
        %v291 = vld [vmem:[%s187 + $0x158] sm:$0xff]
        %v292 = vld [vmem:[%s187 + $0x160] sm:$0xff]
        %v293 = vld [vmem:[%s187 + $0x168] sm:$0xff]
        %v294 = vld [vmem:[%s187 + $0x170] sm:$0xff]
        %v295 = vld [vmem:[%s187 + $0x178] sm:$0xff]
        %v296 = vld [vmem:[%s187 + $0x180] sm:$0xff]
        %v297 = vld [vmem:[%s187 + $0x188] sm:$0xff]
        %v298 = vld [vmem:[%s187 + $0x190] sm:$0xff]
        %v299 = vld [vmem:[%s187 + $0x198] sm:$0xff]
        %v300 = vld [vmem:[%s187 + $0x1a0] sm:$0xff]
        %v301 = vld [vmem:[%s187 + $0x1a8] sm:$0xff]
        %v302 = vld [vmem:[%s187 + $0x1b0] sm:$0xff]
        %v303 = vld [vmem:[%s187 + $0x1b8] sm:$0xff]
        %v304 = vld [vmem:[%s187 + $0x1c0] sm:$0xff]
        %v305 = vld [vmem:[%s187 + $0x1c8] sm:$0xff]
        %v306 = vld [vmem:[%s187 + $0x1d0] sm:$0xff]
        %v307 = vld [vmem:[%s187 + $0x1d8] sm:$0xff]
        %v308 = vld [vmem:[%s187 + $0x1e0] sm:$0xff]
        %v309 = vld [vmem:[%s187 + $0x1e8] sm:$0xff]
        %v310 = vld [vmem:[%s187 + $0x1f0] sm:$0xff]
        %v311 = vld [vmem:[%s187 + $0x1f8] sm:$0xff]
        %v312 = vld [vmem:[%s187 + $0x200] sm:$0xff]
        %v313 = vld [vmem:[%s187 + $0x208] sm:$0xff]
        %v314 = vld [vmem:[%s187 + $0x210] sm:$0xff]
        %v315 = vld [vmem:[%s187 + $0x218] sm:$0xff]
        %v316 = vld [vmem:[%s187 + $0x220] sm:$0xff]
        %v317 = vld [vmem:[%s187 + $0x228] sm:$0xff]
        %v318 = vld [vmem:[%s187 + $0x230] sm:$0xff]
        %v319 = vld [vmem:[%s187 + $0x238] sm:$0xff]
        %v320 = vld [vmem:[%s187 + $0x240] sm:$0xff]
        %v321 = vld [vmem:[%s187 + $0x248] sm:$0xff]
        %v322 = vld [vmem:[%s187 + $0x250] sm:$0xff]
        %v323 = vld [vmem:[%s187 + $0x258] sm:$0xff]
        %v324 = vld [vmem:[%s187 + $0x260] sm:$0xff]
        %v325 = vld [vmem:[%s187 + $0x268] sm:$0xff]
        %v326 = vld [vmem:[%s187 + $0x270] sm:$0xff]
        %v327 = vld [vmem:[%s187 + $0x278] sm:$0xff]
        %v328 = vld [vmem:[%s187 + $0x280] sm:$0xff]
        %v329 = vld [vmem:[%s187 + $0x288] sm:$0xff]
        %v330 = vld [vmem:[%s187 + $0x290] sm:$0xff]
        %v331 = vld [vmem:[%s187 + $0x298] sm:$0xff]
        %v332 = vld [vmem:[%s187 + $0x2a0] sm:$0xff]
        %v333 = vld [vmem:[%s187 + $0x2a8] sm:$0xff]
        %v334 = vld [vmem:[%s187 + $0x2b0] sm:$0xff]
        %v335 = vld [vmem:[%s187 + $0x2b8] sm:$0xff]
        %v336 = vld [vmem:[%s187 + $0x2c0] sm:$0xff]
        %v337 = vld [vmem:[%s187 + $0x2c8] sm:$0xff]
        %v338 = vld [vmem:[%s187 + $0x2d0] sm:$0xff]
        %v339 = vld [vmem:[%s187 + $0x2d8] sm:$0xff]
        %v340 = vld [vmem:[%s187 + $0x2e0] sm:$0xff]
        %v341 = vld [vmem:[%s187 + $0x2e8] sm:$0xff]
        %v342 = vld [vmem:[%s187 + $0x2f0] sm:$0xff]
        %v343 = vld [vmem:[%s187 + $0x2f8] sm:$0xff]
        %v344 = vld [vmem:[%s187 + $0x300] sm:$0xff]
        %v345 = vld [vmem:[%s187 + $0x308] sm:$0xff]
        %v346 = vld [vmem:[%s187 + $0x310] sm:$0xff]
        %v347 = vld [vmem:[%s187 + $0x318] sm:$0xff]
        %v348 = vld [vmem:[%s187 + $0x320] sm:$0xff]
        %v349 = vld [vmem:[%s187 + $0x328] sm:$0xff]
        %v350 = vld [vmem:[%s187 + $0x330] sm:$0xff]
        %v351 = vld [vmem:[%s187 + $0x338] sm:$0xff]
        %v352 = vld [vmem:[%s187 + $0x340] sm:$0xff]
        %v353 = vld [vmem:[%s187 + $0x348] sm:$0xff]
        %v354 = vld [vmem:[%s187 + $0x350] sm:$0xff]
        %v355 = vld [vmem:[%s187 + $0x358] sm:$0xff]
        %v356 = vld [vmem:[%s187 + $0x360] sm:$0xff]
        %v357 = vld [vmem:[%s187 + $0x368] sm:$0xff]
        %v358 = vld [vmem:[%s187 + $0x370] sm:$0xff]
        %v359 = vld [vmem:[%s187 + $0x378] sm:$0xff]
        %v360 = vld [vmem:[%s187 + $0x380] sm:$0xff]
        %v361 = vld [vmem:[%s187 + $0x388] sm:$0xff]
        %v362 = vld [vmem:[%s187 + $0x390] sm:$0xff]
        %v363 = vld [vmem:[%s187 + $0x398] sm:$0xff]
        %v364 = vld [vmem:[%s187 + $0x3a0] sm:$0xff]
        %v365 = vld [vmem:[%s187 + $0x3a8] sm:$0xff]
        %v366 = vld [vmem:[%s187 + $0x3b0] sm:$0xff]
        %v367 = vld [vmem:[%s187 + $0x3b8] sm:$0xff]
        %v368 = vld [vmem:[%s187 + $0x3c0] sm:$0xff]
        %v369 = vld [vmem:[%s187 + $0x3c8] sm:$0xff]
        %v370 = vld [vmem:[%s187 + $0x3d0] sm:$0xff]
        %v371 = vld [vmem:[%s187 + $0x3d8] sm:$0xff]
        %v372 = vld [vmem:[%s187 + $0x3e0] sm:$0xff]
        %v373 = vld [vmem:[%s187 + $0x3e8] sm:$0xff]
        %v374 = vld [vmem:[%s187 + $0x3f0] sm:$0xff]
        %v375 = vld [vmem:[%s187 + $0x3f8] sm:$0xff]
        %v376 = vld [vmem:[%s187 + $0x400] sm:$0xff]
        %v377 = vld [vmem:[%s187 + $0x408] sm:$0xff]
        %v378 = vld [vmem:[%s187 + $0x410] sm:$0xff]
        %v379 = vld [vmem:[%s187 + $0x418] sm:$0xff]
        %v380 = vld [vmem:[%s187 + $0x420] sm:$0xff]
        %v381 = vld [vmem:[%s187 + $0x428] sm:$0xff]
        %v382 = vld [vmem:[%s187 + $0x430] sm:$0xff]
        %v383 = vld [vmem:[%s187 + $0x438] sm:$0xff]
        %v384 = vld [vmem:[%s187 + $0x440] sm:$0xff]
        %v385 = vld [vmem:[%s187 + $0x448] sm:$0xff]
        %v386 = vld [vmem:[%s187 + $0x450] sm:$0xff]
        %v387 = vld [vmem:[%s187 + $0x458] sm:$0xff]
        %v388 = vld [vmem:[%s187 + $0x460] sm:$0xff]
        %v389 = vld [vmem:[%s187 + $0x468] sm:$0xff]
        %v390 = vld [vmem:[%s187 + $0x470] sm:$0xff]
        %v391 = vld [vmem:[%s187 + $0x478] sm:$0xff]
        %v392 = vld [vmem:[%s187 + $0x480] sm:$0xff]
        %v393 = vld [vmem:[%s187 + $0x488] sm:$0xff]
        %v394 = vld [vmem:[%s187 + $0x490] sm:$0xff]
        %v395 = vld [vmem:[%s187 + $0x498] sm:$0xff]
        %v396 = vld [vmem:[%s187 + $0x4a0] sm:$0xff]
        %v397 = vld [vmem:[%s187 + $0x4a8] sm:$0xff]
        %v398 = vld [vmem:[%s187 + $0x4b0] sm:$0xff]
        %v399 = vld [vmem:[%s187 + $0x4b8] sm:$0xff]
        %v400 = vld [vmem:[%s187 + $0x4c0] sm:$0xff]
        %v401 = vld [vmem:[%s187 + $0x4c8] sm:$0xff]
        %v402 = vld [vmem:[%s187 + $0x4d0] sm:$0xff]
        %v403 = vld [vmem:[%s187 + $0x4d8] sm:$0xff]
        %v404 = vld [vmem:[%s187 + $0x4e0] sm:$0xff]
        %v405 = vld [vmem:[%s187 + $0x4e8] sm:$0xff]
        %v406 = vld [vmem:[%s187 + $0x4f0] sm:$0xff]
        %v407 = vld [vmem:[%s187 + $0x4f8] sm:$0xff]
        %v408 = vld [vmem:[%s187 + $0x500] sm:$0xff]
        %v409 = vld [vmem:[%s187 + $0x508] sm:$0xff]
        %v410 = vld [vmem:[%s187 + $0x510] sm:$0xff]
        %v411 = vld [vmem:[%s187 + $0x518] sm:$0xff]
        %v412 = vld [vmem:[%s187 + $0x520] sm:$0xff]
        %v413 = vld [vmem:[%s187 + $0x528] sm:$0xff]
        %v414 = vld [vmem:[%s187 + $0x530] sm:$0xff]
        %v415 = vld [vmem:[%s187 + $0x538] sm:$0xff]
        %v416 = vld [vmem:[%s187 + $0x540] sm:$0xff]
        %v417 = vld [vmem:[%s187 + $0x548] sm:$0xff]
        %v418 = vld [vmem:[%s187 + $0x550] sm:$0xff]
        %v419 = vld [vmem:[%s187 + $0x558] sm:$0xff]
        %v420 = vld [vmem:[%s187 + $0x560] sm:$0xff]
        %v421 = vld [vmem:[%s187 + $0x568] sm:$0xff]
        %v422 = vld [vmem:[%s187 + $0x570] sm:$0xff]
        %v423 = vld [vmem:[%s187 + $0x578] sm:$0xff]
        %v424 = vld [vmem:[%s187 + $0x580] sm:$0xff]
        %v425 = vld [vmem:[%s187 + $0x588] sm:$0xff]
        %v426 = vld [vmem:[%s187 + $0x590] sm:$0xff]
        %v427 = vld [vmem:[%s187 + $0x598] sm:$0xff]
        %v428 = vld [vmem:[%s187 + $0x5a0] sm:$0xff]
        %v429 = vld [vmem:[%s187 + $0x5a8] sm:$0xff]
        %v430 = vld [vmem:[%s187 + $0x5b0] sm:$0xff]
        %v431 = vld [vmem:[%s187 + $0x5b8] sm:$0xff]
        %v432 = vld [vmem:[%s187 + $0x5c0] sm:$0xff]
        %v433 = vld [vmem:[%s187 + $0x5c8] sm:$0xff]
        %v434 = vld [vmem:[%s187 + $0x5d0] sm:$0xff]
        %v435 = vld [vmem:[%s187 + $0x5d8] sm:$0xff]
        %v436 = vld [vmem:[%s187 + $0x5e0] sm:$0xff]
        %v437 = vld [vmem:[%s187 + $0x5e8] sm:$0xff]
        %v438 = vld [vmem:[%s187 + $0x5f0] sm:$0xff]
        %v439 = vld [vmem:[%s187 + $0x5f8] sm:$0xff]
        %v440 = vld [vmem:[%s187 + $0x600] sm:$0xff]
        %v441 = vld [vmem:[%s187 + $0x608] sm:$0xff]
        %v442 = vld [vmem:[%s187 + $0x610] sm:$0xff]
        %v443 = vld [vmem:[%s187 + $0x618] sm:$0xff]
        %v444 = vld [vmem:[%s187 + $0x620] sm:$0xff]
        %v445 = vld [vmem:[%s187 + $0x628] sm:$0xff]
        %v446 = vld [vmem:[%s187 + $0x630] sm:$0xff]
        %v447 = vld [vmem:[%s187 + $0x638] sm:$0xff]
        %v448 = vld [vmem:[%s187 + $0x640] sm:$0xff]
        %v449 = vld [vmem:[%s187 + $0x648] sm:$0xff]
        %v450 = vld [vmem:[%s187 + $0x650] sm:$0xff]
        %v451 = vld [vmem:[%s187 + $0x658] sm:$0xff]
        %v452 = vld [vmem:[%s187 + $0x660] sm:$0xff]
        %v453 = vld [vmem:[%s187 + $0x668] sm:$0xff]
        %v454 = vld [vmem:[%s187 + $0x670] sm:$0xff]
        %v455 = vld [vmem:[%s187 + $0x678] sm:$0xff]
        %v456 = vld [vmem:[%s187 + $0x680] sm:$0xff]
        %v457 = vld [vmem:[%s187 + $0x688] sm:$0xff]
        %v458 = vld [vmem:[%s187 + $0x690] sm:$0xff]
        %v459 = vld [vmem:[%s187 + $0x698] sm:$0xff]
        %v460 = vld [vmem:[%s187 + $0x6a0] sm:$0xff]
        %v461 = vld [vmem:[%s187 + $0x6a8] sm:$0xff]
        %v462 = vld [vmem:[%s187 + $0x6b0] sm:$0xff]
        %v463 = vld [vmem:[%s187 + $0x6b8] sm:$0xff]
        %v464 = vld [vmem:[%s187 + $0x6c0] sm:$0xff]
        %v465 = vld [vmem:[%s187 + $0x6c8] sm:$0xff]
        %v466 = vld [vmem:[%s187 + $0x6d0] sm:$0xff]
        %v467 = vld [vmem:[%s187 + $0x6d8] sm:$0xff]
        %v468 = vld [vmem:[%s187 + $0x6e0] sm:$0xff]
        %v469 = vld [vmem:[%s187 + $0x6e8] sm:$0xff]
        %v470 = vld [vmem:[%s187 + $0x6f0] sm:$0xff]
        %v471 = vld [vmem:[%s187 + $0x6f8] sm:$0xff]
        %v472 = vld [vmem:[%s187 + $0x700] sm:$0xff]
        %v473 = vld [vmem:[%s187 + $0x708] sm:$0xff]
        %v474 = vld [vmem:[%s187 + $0x710] sm:$0xff]
        %v475 = vld [vmem:[%s187 + $0x718] sm:$0xff]
        %v476 = vld [vmem:[%s187 + $0x720] sm:$0xff]
        %v477 = vld [vmem:[%s187 + $0x728] sm:$0xff]
        %v478 = vld [vmem:[%s187 + $0x730] sm:$0xff]
        %v479 = vld [vmem:[%s187 + $0x738] sm:$0xff]
        %v480 = vld [vmem:[%s187 + $0x740] sm:$0xff]
        %v481 = vld [vmem:[%s187 + $0x748] sm:$0xff]
        %v482 = vld [vmem:[%s187 + $0x750] sm:$0xff]
        %v483 = vld [vmem:[%s187 + $0x758] sm:$0xff]
        %v484 = vld [vmem:[%s187 + $0x760] sm:$0xff]
        %v485 = vld [vmem:[%s187 + $0x768] sm:$0xff]
        %v486 = vld [vmem:[%s187 + $0x770] sm:$0xff]
        %v487 = vld [vmem:[%s187 + $0x778] sm:$0xff]
        %v488 = vld [vmem:[%s187 + $0x780] sm:$0xff]
        %v489 = vld [vmem:[%s187 + $0x788] sm:$0xff]
        %v490 = vld [vmem:[%s187 + $0x790] sm:$0xff]
        %v491 = vld [vmem:[%s187 + $0x798] sm:$0xff]
        %v492 = vld [vmem:[%s187 + $0x7a0] sm:$0xff]
        %v493 = vld [vmem:[%s187 + $0x7a8] sm:$0xff]
        %v494 = vld [vmem:[%s187 + $0x7b0] sm:$0xff]
        %v495 = vld [vmem:[%s187 + $0x7b8] sm:$0xff]
        %v496 = vld [vmem:[%s187 + $0x7c0] sm:$0xff]
        %v497 = vld [vmem:[%s187 + $0x7c8] sm:$0xff]
        %v498 = vld [vmem:[%s187 + $0x7d0] sm:$0xff]
        %v499 = vld [vmem:[%s187 + $0x7d8] sm:$0xff]
        %v500 = vld [vmem:[%s187 + $0x7e0] sm:$0xff]
        %v501 = vld [vmem:[%s187 + $0x7e8] sm:$0xff]
        %v502 = vld [vmem:[%s187 + $0x7f0] sm:$0xff]
        %v503 = vld [vmem:[%s187 + $0x7f8] sm:$0xff]
        %v504 = vld [vmem:[%s187 + $0x800] sm:$0xff]
        %v505 = vld [vmem:[%s187 + $0x808] sm:$0xff]
        %v506 = vld [vmem:[%s187 + $0x810] sm:$0xff]
        %v507 = vld [vmem:[%s187 + $0x818] sm:$0xff]
        %v508 = vld [vmem:[%s187 + $0x820] sm:$0xff]
        %v509 = vld [vmem:[%s187 + $0x828] sm:$0xff]
        %v510 = vld [vmem:[%s187 + $0x830] sm:$0xff]
        %v511 = vld [vmem:[%s187 + $0x838] sm:$0xff]
        %v512 = vld [vmem:[%s187 + $0x840] sm:$0xff]
        %v513 = vld [vmem:[%s187 + $0x848] sm:$0xff]
        %v514 = vld [vmem:[%s187 + $0x850] sm:$0xff]
        %v515 = vld [vmem:[%s187 + $0x858] sm:$0xff]
        %v516 = vld [vmem:[%s187 + $0x860] sm:$0xff]
        %v517 = vld [vmem:[%s187 + $0x868] sm:$0xff]
        %v518 = vld [vmem:[%s187 + $0x870] sm:$0xff]
        %v519 = vld [vmem:[%s187 + $0x878] sm:$0xff]
        %v520 = vld [vmem:[%s187 + $0x880] sm:$0xff]
        %v521 = vld [vmem:[%s187 + $0x888] sm:$0xff]
        %v522 = vld [vmem:[%s187 + $0x890] sm:$0xff]
        %v523 = vld [vmem:[%s187 + $0x898] sm:$0xff]
        %v524 = vld [vmem:[%s187 + $0x8a0] sm:$0xff]
        %v525 = vld [vmem:[%s187 + $0x8a8] sm:$0xff]
        %v526 = vld [vmem:[%s187 + $0x8b0] sm:$0xff]
        %v527 = vld [vmem:[%s187 + $0x8b8] sm:$0xff]
        %v528 = vld [vmem:[%s187 + $0x8c0] sm:$0xff]
        %v529 = vld [vmem:[%s187 + $0x8c8] sm:$0xff]
        %v530 = vld [vmem:[%s187 + $0x8d0] sm:$0xff]
        %v531 = vld [vmem:[%s187 + $0x8d8] sm:$0xff]
        %v532 = vld [vmem:[%s187 + $0x8e0] sm:$0xff]
        %v533 = vld [vmem:[%s187 + $0x8e8] sm:$0xff]
        %v534 = vld [vmem:[%s187 + $0x8f0] sm:$0xff]
        %v535 = vld [vmem:[%s187 + $0x8f8] sm:$0xff]
        %v536 = vld [vmem:[%s187 + $0x900] sm:$0xff]
        %v537 = vld [vmem:[%s187 + $0x908] sm:$0xff]
        %v538 = vld [vmem:[%s187 + $0x910] sm:$0xff]
        %v539 = vld [vmem:[%s187 + $0x918] sm:$0xff]
        %v540 = vld [vmem:[%s187 + $0x920] sm:$0xff]
        %v541 = vld [vmem:[%s187 + $0x928] sm:$0xff]
        %v542 = vld [vmem:[%s187 + $0x930] sm:$0xff]
        %v543 = vld [vmem:[%s187 + $0x938] sm:$0xff]
        %v544 = vld [vmem:[%s187 + $0x940] sm:$0xff]
        %v545 = vld [vmem:[%s187 + $0x948] sm:$0xff]
        %v546 = vld [vmem:[%s187 + $0x950] sm:$0xff]
        %v547 = vld [vmem:[%s187 + $0x958] sm:$0xff]
        %v548 = vld [vmem:[%s187 + $0x960] sm:$0xff]
        %v549 = vld [vmem:[%s187 + $0x968] sm:$0xff]
        %v550 = vld [vmem:[%s187 + $0x970] sm:$0xff]
        %v551 = vld [vmem:[%s187 + $0x978] sm:$0xff]
        %v552 = vld [vmem:[%s187 + $0x980] sm:$0xff]
        %v553 = vld [vmem:[%s187 + $0x988] sm:$0xff]
        %v554 = vld [vmem:[%s187 + $0x990] sm:$0xff]
        %v555 = vld [vmem:[%s187 + $0x998] sm:$0xff]
        %v556 = vld [vmem:[%s187 + $0x9a0] sm:$0xff]
        %v557 = vld [vmem:[%s187 + $0x9a8] sm:$0xff]
        %v558 = vld [vmem:[%s187 + $0x9b0] sm:$0xff]
        %v559 = vld [vmem:[%s187 + $0x9b8] sm:$0xff]
        %v560 = vld [vmem:[%s187 + $0x9c0] sm:$0xff]
        %v561 = vld [vmem:[%s187 + $0x9c8] sm:$0xff]
        %v562 = vld [vmem:[%s187 + $0x9d0] sm:$0xff]
        %v563 = vld [vmem:[%s187 + $0x9d8] sm:$0xff]
        %v564 = vld [vmem:[%s187 + $0x9e0] sm:$0xff]
        %v565 = vld [vmem:[%s187 + $0x9e8] sm:$0xff]
        %v566 = vld [vmem:[%s187 + $0x9f0] sm:$0xff]
        %v567 = vld [vmem:[%s187 + $0x9f8] sm:$0xff]
        %v568 = vld [vmem:[%s187 + $0xa00] sm:$0xff]
        %v569 = vld [vmem:[%s187 + $0xa08] sm:$0xff]
        %v570 = vld [vmem:[%s187 + $0xa10] sm:$0xff]
        %v571 = vld [vmem:[%s187 + $0xa18] sm:$0xff]
        %v572 = vld [vmem:[%s187 + $0xa20] sm:$0xff]
        %v573 = vld [vmem:[%s187 + $0xa28] sm:$0xff]
        %v574 = vld [vmem:[%s187 + $0xa30] sm:$0xff]
        %v575 = vld [vmem:[%s187 + $0xa38] sm:$0xff]
        %v576 = vld [vmem:[%s187 + $0xa40] sm:$0xff]
        %v577 = vld [vmem:[%s187 + $0xa48] sm:$0xff]
        %v578 = vld [vmem:[%s187 + $0xa50] sm:$0xff]
        %v579 = vld [vmem:[%s187 + $0xa58] sm:$0xff]
        %v580 = vld [vmem:[%s187 + $0xa60] sm:$0xff]
        %v581 = vld [vmem:[%s187 + $0xa68] sm:$0xff]
        %v582 = vld [vmem:[%s187 + $0xa70] sm:$0xff]
        %v583 = vld [vmem:[%s187 + $0xa78] sm:$0xff]
        %v584 = vld [vmem:[%s187 + $0xa80] sm:$0xff]
        %v585 = vld [vmem:[%s187 + $0xa88] sm:$0xff]
        %v586 = vld [vmem:[%s187 + $0xa90] sm:$0xff]
        %v587 = vld [vmem:[%s187 + $0xa98] sm:$0xff]
        %v588 = vld [vmem:[%s187 + $0xaa0] sm:$0xff]
        %v589 = vld [vmem:[%s187 + $0xaa8] sm:$0xff]
        %v590 = vld [vmem:[%s187 + $0xab0] sm:$0xff]
        %v591 = vld [vmem:[%s187 + $0xab8] sm:$0xff]
        %v592 = vld [vmem:[%s187 + $0xac0] sm:$0xff]
        %v593 = vld [vmem:[%s187 + $0xac8] sm:$0xff]
        %v594 = vld [vmem:[%s187 + $0xad0] sm:$0xff]
        %v595 = vld [vmem:[%s187 + $0xad8] sm:$0xff]
        %v596 = vld [vmem:[%s187 + $0xae0] sm:$0xff]
        %v597 = vld [vmem:[%s187 + $0xae8] sm:$0xff]
        %v598 = vld [vmem:[%s187 + $0xaf0] sm:$0xff]
        %v599 = vld [vmem:[%s187 + $0xaf8] sm:$0xff]
        %v600 = vld [vmem:[%s187 + $0xb00] sm:$0xff]
        %v601 = vld [vmem:[%s187 + $0xb08] sm:$0xff]
        %v602 = vld [vmem:[%s187 + $0xb10] sm:$0xff]
        %v603 = vld [vmem:[%s187 + $0xb18] sm:$0xff]
        %v604 = vld [vmem:[%s187 + $0xb20] sm:$0xff]
        %v605 = vld [vmem:[%s187 + $0xb28] sm:$0xff]
        %v606 = vld [vmem:[%s187 + $0xb30] sm:$0xff]
        %v607 = vld [vmem:[%s187 + $0xb38] sm:$0xff]
        %v608 = vld [vmem:[%s187 + $0xb40] sm:$0xff]
        %v609 = vld [vmem:[%s187 + $0xb48] sm:$0xff]
        %v610 = vld [vmem:[%s187 + $0xb50] sm:$0xff]
        %v611 = vld [vmem:[%s187 + $0xb58] sm:$0xff]
        %v612 = vld [vmem:[%s187 + $0xb60] sm:$0xff]
        %v613 = vld [vmem:[%s187 + $0xb68] sm:$0xff]
        %v614 = vld [vmem:[%s187 + $0xb70] sm:$0xff]
        %v615 = vld [vmem:[%s187 + $0xb78] sm:$0xff]
        %v616 = vld [vmem:[%s187 + $0xb80] sm:$0xff]
        %v617 = vld [vmem:[%s187 + $0xb88] sm:$0xff]
        %v618 = vld [vmem:[%s187 + $0xb90] sm:$0xff]
        %v619 = vld [vmem:[%s187 + $0xb98] sm:$0xff]
        %v620 = vld [vmem:[%s187 + $0xba0] sm:$0xff]
        %v621 = vld [vmem:[%s187 + $0xba8] sm:$0xff]
        %v622 = vld [vmem:[%s187 + $0xbb0] sm:$0xff]
        %v623 = vld [vmem:[%s187 + $0xbb8] sm:$0xff]
        %v624 = vld [vmem:[%s187 + $0xbc0] sm:$0xff]
        %v625 = vld [vmem:[%s187 + $0xbc8] sm:$0xff]
        %v626 = vld [vmem:[%s187 + $0xbd0] sm:$0xff]
        %v627 = vld [vmem:[%s187 + $0xbd8] sm:$0xff]
        %v628 = vld [vmem:[%s187 + $0xbe0] sm:$0xff]
        %v629 = vld [vmem:[%s187 + $0xbe8] sm:$0xff]
        %v630 = vld [vmem:[%s187 + $0xbf0] sm:$0xff]
        %v631 = vld [vmem:[%s187 + $0xbf8] sm:$0xff]
        %v632 = vld [vmem:[%s187 + $0xc00] sm:$0xff]
        %v633 = vld [vmem:[%s187 + $0xc08] sm:$0xff]
        %v634 = vld [vmem:[%s187 + $0xc10] sm:$0xff]
        %v635 = vld [vmem:[%s187 + $0xc18] sm:$0xff]
        %v636 = vld [vmem:[%s187 + $0xc20] sm:$0xff]
        %v637 = vld [vmem:[%s187 + $0xc28] sm:$0xff]
        %v638 = vld [vmem:[%s187 + $0xc30] sm:$0xff]
        %v639 = vld [vmem:[%s187 + $0xc38] sm:$0xff]
        %v640 = vld [vmem:[%s187 + $0xc40] sm:$0xff]
        %v641 = vld [vmem:[%s187 + $0xc48] sm:$0xff]
        %v642 = vld [vmem:[%s187 + $0xc50] sm:$0xff]
        %v643 = vld [vmem:[%s187 + $0xc58] sm:$0xff]
        %v644 = vld [vmem:[%s187 + $0xc60] sm:$0xff]
        %v645 = vld [vmem:[%s187 + $0xc68] sm:$0xff]
        %v646 = vld [vmem:[%s187 + $0xc70] sm:$0xff]
        %v647 = vld [vmem:[%s187 + $0xc78] sm:$0xff]
        %v648 = vld [vmem:[%s187 + $0xc80] sm:$0xff]
        %v649 = vld [vmem:[%s187 + $0xc88] sm:$0xff]
        %v650 = vld [vmem:[%s187 + $0xc90] sm:$0xff]
        %v651 = vld [vmem:[%s187 + $0xc98] sm:$0xff]
        %v652 = vld [vmem:[%s187 + $0xca0] sm:$0xff]
        %v653 = vld [vmem:[%s187 + $0xca8] sm:$0xff]
        %v654 = vld [vmem:[%s187 + $0xcb0] sm:$0xff]
        %v655 = vld [vmem:[%s187 + $0xcb8] sm:$0xff]
        %v656 = vld [vmem:[%s187 + $0xcc0] sm:$0xff]
        %v657 = vld [vmem:[%s187 + $0xcc8] sm:$0xff]
        %v658 = vld [vmem:[%s187 + $0xcd0] sm:$0xff]
        %v659 = vld [vmem:[%s187 + $0xcd8] sm:$0xff]
        %v660 = vld [vmem:[%s187 + $0xce0] sm:$0xff]
        %v661 = vld [vmem:[%s187 + $0xce8] sm:$0xff]
        %v662 = vld [vmem:[%s187 + $0xcf0] sm:$0xff]
        %v663 = vld [vmem:[%s187 + $0xcf8] sm:$0xff]
        %v664 = vld [vmem:[%s187 + $0xd00] sm:$0xff]
        %v665 = vld [vmem:[%s187 + $0xd08] sm:$0xff]
        %v666 = vld [vmem:[%s187 + $0xd10] sm:$0xff]
        %v667 = vld [vmem:[%s187 + $0xd18] sm:$0xff]
        %v668 = vld [vmem:[%s187 + $0xd20] sm:$0xff]
        %v669 = vld [vmem:[%s187 + $0xd28] sm:$0xff]
        %v670 = vld [vmem:[%s187 + $0xd30] sm:$0xff]
        %v671 = vld [vmem:[%s187 + $0xd38] sm:$0xff]
        %v672 = vld [vmem:[%s187 + $0xd40] sm:$0xff]
        %v673 = vld [vmem:[%s187 + $0xd48] sm:$0xff]
        %v674 = vld [vmem:[%s187 + $0xd50] sm:$0xff]
        %v675 = vld [vmem:[%s187 + $0xd58] sm:$0xff]
        %v676 = vld [vmem:[%s187 + $0xd60] sm:$0xff]
        %v677 = vld [vmem:[%s187 + $0xd68] sm:$0xff]
        %v678 = vld [vmem:[%s187 + $0xd70] sm:$0xff]
        %v679 = vld [vmem:[%s187 + $0xd78] sm:$0xff]
        %v680 = vld [vmem:[%s187 + $0xd80] sm:$0xff]
        %v681 = vld [vmem:[%s187 + $0xd88] sm:$0xff]
        %v682 = vld [vmem:[%s187 + $0xd90] sm:$0xff]
        %v683 = vld [vmem:[%s187 + $0xd98] sm:$0xff]
        %v684 = vld [vmem:[%s187 + $0xda0] sm:$0xff]
        %v685 = vld [vmem:[%s187 + $0xda8] sm:$0xff]
        %v686 = vld [vmem:[%s187 + $0xdb0] sm:$0xff]
        %v687 = vld [vmem:[%s187 + $0xdb8] sm:$0xff]
        %v688 = vld [vmem:[%s187 + $0xdc0] sm:$0xff]
        %v689 = vld [vmem:[%s187 + $0xdc8] sm:$0xff]
        %v690 = vld [vmem:[%s187 + $0xdd0] sm:$0xff]
        %v691 = vld [vmem:[%s187 + $0xdd8] sm:$0xff]
        %v692 = vld [vmem:[%s187 + $0xde0] sm:$0xff]
        %v693 = vld [vmem:[%s187 + $0xde8] sm:$0xff]
        %v694 = vld [vmem:[%s187 + $0xdf0] sm:$0xff]
        %v695 = vld [vmem:[%s187 + $0xdf8] sm:$0xff]
        %v696 = vld [vmem:[%s187 + $0xe00] sm:$0xff]
        %v697 = vld [vmem:[%s187 + $0xe08] sm:$0xff]
        %v698 = vld [vmem:[%s187 + $0xe10] sm:$0xff]
        %v699 = vld [vmem:[%s187 + $0xe18] sm:$0xff]
        %v700 = vld [vmem:[%s187 + $0xe20] sm:$0xff]
        %v701 = vld [vmem:[%s187 + $0xe28] sm:$0xff]
        %v702 = vld [vmem:[%s187 + $0xe30] sm:$0xff]
        %v703 = vld [vmem:[%s187 + $0xe38] sm:$0xff]
        %v704 = vld [vmem:[%s187 + $0xe40] sm:$0xff]
        %v705 = vld [vmem:[%s187 + $0xe48] sm:$0xff]
        %v706 = vld [vmem:[%s187 + $0xe50] sm:$0xff]
        %v707 = vld [vmem:[%s187 + $0xe58] sm:$0xff]
        %v708 = vld [vmem:[%s187 + $0xe60] sm:$0xff]
        %v709 = vld [vmem:[%s187 + $0xe68] sm:$0xff]
        %v710 = vld [vmem:[%s187 + $0xe70] sm:$0xff]
        %v711 = vld [vmem:[%s187 + $0xe78] sm:$0xff]
        %v712 = vld [vmem:[%s187 + $0xe80] sm:$0xff]
        %v713 = vld [vmem:[%s187 + $0xe88] sm:$0xff]
        %v714 = vld [vmem:[%s187 + $0xe90] sm:$0xff]
        %v715 = vld [vmem:[%s187 + $0xe98] sm:$0xff]
        %v716 = vld [vmem:[%s187 + $0xea0] sm:$0xff]
        %v717 = vld [vmem:[%s187 + $0xea8] sm:$0xff]
        %v718 = vld [vmem:[%s187 + $0xeb0] sm:$0xff]
        %v719 = vld [vmem:[%s187 + $0xeb8] sm:$0xff]
        %v720 = vld [vmem:[%s187 + $0xec0] sm:$0xff]
        %v721 = vld [vmem:[%s187 + $0xec8] sm:$0xff]
        %v722 = vld [vmem:[%s187 + $0xed0] sm:$0xff]
        %v723 = vld [vmem:[%s187 + $0xed8] sm:$0xff]
        %v724 = vld [vmem:[%s187 + $0xee0] sm:$0xff]
        %v725 = vld [vmem:[%s187 + $0xee8] sm:$0xff]
        %v726 = vld [vmem:[%s187 + $0xef0] sm:$0xff]
        %v727 = vld [vmem:[%s187 + $0xef8] sm:$0xff]
        %v728 = vld [vmem:[%s187 + $0xf00] sm:$0xff]
        %v729 = vld [vmem:[%s187 + $0xf08] sm:$0xff]
        %v730 = vld [vmem:[%s187 + $0xf10] sm:$0xff]
        %v731 = vld [vmem:[%s187 + $0xf18] sm:$0xff]
        %v732 = vld [vmem:[%s187 + $0xf20] sm:$0xff]
        %v733 = vld [vmem:[%s187 + $0xf28] sm:$0xff]
        %v734 = vld [vmem:[%s187 + $0xf30] sm:$0xff]
        %v735 = vld [vmem:[%s187 + $0xf38] sm:$0xff]
        %v736 = vld [vmem:[%s187 + $0xf40] sm:$0xff]
        %v737 = vld [vmem:[%s187 + $0xf48] sm:$0xff]
        %v738 = vld [vmem:[%s187 + $0xf50] sm:$0xff]
        %v739 = vld [vmem:[%s187 + $0xf58] sm:$0xff]
        %v740 = vld [vmem:[%s187 + $0xf60] sm:$0xff]
        %v741 = vld [vmem:[%s187 + $0xf68] sm:$0xff]
        %v742 = vld [vmem:[%s187 + $0xf70] sm:$0xff]
        %v743 = vld [vmem:[%s187 + $0xf78] sm:$0xff]
        %v744 = vld [vmem:[%s187 + $0xf80] sm:$0xff]
        %v745 = vld [vmem:[%s187 + $0xf88] sm:$0xff]
        %v746 = vld [vmem:[%s187 + $0xf90] sm:$0xff]
        %v747 = vld [vmem:[%s187 + $0xf98] sm:$0xff]
        %v748 = vld [vmem:[%s187 + $0xfa0] sm:$0xff]
        %v749 = vld [vmem:[%s187 + $0xfa8] sm:$0xff]
        %v750 = vld [vmem:[%s187 + $0xfb0] sm:$0xff]
        %v751 = vld [vmem:[%s187 + $0xfb8] sm:$0xff]
        %v752 = vld [vmem:[%s187 + $0xfc0] sm:$0xff]
        %v753 = vld [vmem:[%s187 + $0xfc8] sm:$0xff]
        %v754 = vld [vmem:[%s187 + $0xfd0] sm:$0xff]
        %v755 = vld [vmem:[%s187 + $0xfd8] sm:$0xff]
        %v756 = vld [vmem:[%s187 + $0xfe0] sm:$0xff]
        %v757 = vld [vmem:[%s187 + $0xfe8] sm:$0xff]
        %v758 = vld [vmem:[%s187 + $0xff0] sm:$0xff]
        %v759 = vld [vmem:[%s187 + $0xff8] sm:$0xff]
        %v760 = vunpack.c.l.bf16 %v248
        %v761 = vunpack.c.h.bf16 %v248
        %v762 = vunpack.c.l.bf16 %v249
        %v763 = vunpack.c.h.bf16 %v249
        %v764 = vunpack.c.l.bf16 %v250
        %v765 = vunpack.c.h.bf16 %v250
        %v766 = vunpack.c.l.bf16 %v251
        %v767 = vunpack.c.h.bf16 %v251
        %v768 = vunpack.c.l.bf16 %v252
        %v769 = vunpack.c.h.bf16 %v252
        %v770 = vunpack.c.l.bf16 %v253
        %v771 = vunpack.c.h.bf16 %v253
        %v772 = vunpack.c.l.bf16 %v254
        %v773 = vunpack.c.h.bf16 %v254
        %v774 = vunpack.c.l.bf16 %v255
        %v775 = vunpack.c.h.bf16 %v255
        %v776 = vunpack.c.l.bf16 %v256
        %v777 = vunpack.c.h.bf16 %v256
        %v778 = vunpack.c.l.bf16 %v257
        %v779 = vunpack.c.h.bf16 %v257
        %v780 = vunpack.c.l.bf16 %v258
        %v781 = vunpack.c.h.bf16 %v258
        %v782 = vunpack.c.l.bf16 %v259
        %v783 = vunpack.c.h.bf16 %v259
        %v784 = vunpack.c.l.bf16 %v260
        %v785 = vunpack.c.h.bf16 %v260
        %v786 = vunpack.c.l.bf16 %v261
        %v787 = vunpack.c.h.bf16 %v261
        %v788 = vunpack.c.l.bf16 %v262
        %v789 = vunpack.c.h.bf16 %v262
        %v790 = vunpack.c.l.bf16 %v263
        %v791 = vunpack.c.h.bf16 %v263
        %v792 = vunpack.c.l.bf16 %v264
        %v793 = vunpack.c.h.bf16 %v264
        %v794 = vunpack.c.l.bf16 %v265
        %v795 = vunpack.c.h.bf16 %v265
        %v796 = vunpack.c.l.bf16 %v266
        %v797 = vunpack.c.h.bf16 %v266
        %v798 = vunpack.c.l.bf16 %v267
        %v799 = vunpack.c.h.bf16 %v267
        %v800 = vunpack.c.l.bf16 %v268
        %v801 = vunpack.c.h.bf16 %v268
        %v802 = vunpack.c.l.bf16 %v269
        %v803 = vunpack.c.h.bf16 %v269
        %v804 = vunpack.c.l.bf16 %v270
        %v805 = vunpack.c.h.bf16 %v270
        %v806 = vunpack.c.l.bf16 %v271
        %v807 = vunpack.c.h.bf16 %v271
        %v808 = vunpack.c.l.bf16 %v272
        %v809 = vunpack.c.h.bf16 %v272
        %v810 = vunpack.c.l.bf16 %v273
        %v811 = vunpack.c.h.bf16 %v273
        %v812 = vunpack.c.l.bf16 %v274
        %v813 = vunpack.c.h.bf16 %v274
        %v814 = vunpack.c.l.bf16 %v275
        %v815 = vunpack.c.h.bf16 %v275
        %v816 = vunpack.c.l.bf16 %v276
        %v817 = vunpack.c.h.bf16 %v276
        %v818 = vunpack.c.l.bf16 %v277
        %v819 = vunpack.c.h.bf16 %v277
        %v820 = vunpack.c.l.bf16 %v278
        %v821 = vunpack.c.h.bf16 %v278
        %v822 = vunpack.c.l.bf16 %v279
        %v823 = vunpack.c.h.bf16 %v279
        %v824 = vunpack.c.l.bf16 %v280
        %v825 = vunpack.c.h.bf16 %v280
        %v826 = vunpack.c.l.bf16 %v281
        %v827 = vunpack.c.h.bf16 %v281
        %v828 = vunpack.c.l.bf16 %v282
        %v829 = vunpack.c.h.bf16 %v282
        %v830 = vunpack.c.l.bf16 %v283
        %v831 = vunpack.c.h.bf16 %v283
        %v832 = vunpack.c.l.bf16 %v284
        %v833 = vunpack.c.h.bf16 %v284
        %v834 = vunpack.c.l.bf16 %v285
        %v835 = vunpack.c.h.bf16 %v285
        %v836 = vunpack.c.l.bf16 %v286
        %v837 = vunpack.c.h.bf16 %v286
        %v838 = vunpack.c.l.bf16 %v287
        %v839 = vunpack.c.h.bf16 %v287
        %v840 = vunpack.c.l.bf16 %v288
        %v841 = vunpack.c.h.bf16 %v288
        %v842 = vunpack.c.l.bf16 %v289
        %v843 = vunpack.c.h.bf16 %v289
        %v844 = vunpack.c.l.bf16 %v290
        %v845 = vunpack.c.h.bf16 %v290
        %v846 = vunpack.c.l.bf16 %v291
        %v847 = vunpack.c.h.bf16 %v291
        %v848 = vunpack.c.l.bf16 %v292
        %v849 = vunpack.c.h.bf16 %v292
        %v850 = vunpack.c.l.bf16 %v293
        %v851 = vunpack.c.h.bf16 %v293
        %v852 = vunpack.c.l.bf16 %v294
        %v853 = vunpack.c.h.bf16 %v294
        %v854 = vunpack.c.l.bf16 %v295
        %v855 = vunpack.c.h.bf16 %v295
        %v856 = vunpack.c.l.bf16 %v296
        %v857 = vunpack.c.h.bf16 %v296
        %v858 = vunpack.c.l.bf16 %v297
        %v859 = vunpack.c.h.bf16 %v297
        %v860 = vunpack.c.l.bf16 %v298
        %v861 = vunpack.c.h.bf16 %v298
        %v862 = vunpack.c.l.bf16 %v299
        %v863 = vunpack.c.h.bf16 %v299
        %v864 = vunpack.c.l.bf16 %v300
        %v865 = vunpack.c.h.bf16 %v300
        %v866 = vunpack.c.l.bf16 %v301
        %v867 = vunpack.c.h.bf16 %v301
        %v868 = vunpack.c.l.bf16 %v302
        %v869 = vunpack.c.h.bf16 %v302
        %v870 = vunpack.c.l.bf16 %v303
        %v871 = vunpack.c.h.bf16 %v303
        %v872 = vunpack.c.l.bf16 %v304
        %v873 = vunpack.c.h.bf16 %v304
        %v874 = vunpack.c.l.bf16 %v305
        %v875 = vunpack.c.h.bf16 %v305
        %v876 = vunpack.c.l.bf16 %v306
        %v877 = vunpack.c.h.bf16 %v306
        %v878 = vunpack.c.l.bf16 %v307
        %v879 = vunpack.c.h.bf16 %v307
        %v880 = vunpack.c.l.bf16 %v308
        %v881 = vunpack.c.h.bf16 %v308
        %v882 = vunpack.c.l.bf16 %v309
        %v883 = vunpack.c.h.bf16 %v309
        %v884 = vunpack.c.l.bf16 %v310
        %v885 = vunpack.c.h.bf16 %v310
        %v886 = vunpack.c.l.bf16 %v311
        %v887 = vunpack.c.h.bf16 %v311
        %v888 = vunpack.c.l.bf16 %v312
        %v889 = vunpack.c.h.bf16 %v312
        %v890 = vunpack.c.l.bf16 %v313
        %v891 = vunpack.c.h.bf16 %v313
        %v892 = vunpack.c.l.bf16 %v314
        %v893 = vunpack.c.h.bf16 %v314
        %v894 = vunpack.c.l.bf16 %v315
        %v895 = vunpack.c.h.bf16 %v315
        %v896 = vunpack.c.l.bf16 %v316
        %v897 = vunpack.c.h.bf16 %v316
        %v898 = vunpack.c.l.bf16 %v317
        %v899 = vunpack.c.h.bf16 %v317
        %v900 = vunpack.c.l.bf16 %v318
        %v901 = vunpack.c.h.bf16 %v318
        %v902 = vunpack.c.l.bf16 %v319
        %v903 = vunpack.c.h.bf16 %v319
        %v904 = vunpack.c.l.bf16 %v320
        %v905 = vunpack.c.h.bf16 %v320
        %v906 = vunpack.c.l.bf16 %v321
        %v907 = vunpack.c.h.bf16 %v321
        %v908 = vunpack.c.l.bf16 %v322
        %v909 = vunpack.c.h.bf16 %v322
        %v910 = vunpack.c.l.bf16 %v323
        %v911 = vunpack.c.h.bf16 %v323
        %v912 = vunpack.c.l.bf16 %v324
        %v913 = vunpack.c.h.bf16 %v324
        %v914 = vunpack.c.l.bf16 %v325
        %v915 = vunpack.c.h.bf16 %v325
        %v916 = vunpack.c.l.bf16 %v326
        %v917 = vunpack.c.h.bf16 %v326
        %v918 = vunpack.c.l.bf16 %v327
        %v919 = vunpack.c.h.bf16 %v327
        %v920 = vunpack.c.l.bf16 %v328
        %v921 = vunpack.c.h.bf16 %v328
        %v922 = vunpack.c.l.bf16 %v329
        %v923 = vunpack.c.h.bf16 %v329
        %v924 = vunpack.c.l.bf16 %v330
        %v925 = vunpack.c.h.bf16 %v330
        %v926 = vunpack.c.l.bf16 %v331
        %v927 = vunpack.c.h.bf16 %v331
        %v928 = vunpack.c.l.bf16 %v332
        %v929 = vunpack.c.h.bf16 %v332
        %v930 = vunpack.c.l.bf16 %v333
        %v931 = vunpack.c.h.bf16 %v333
        %v932 = vunpack.c.l.bf16 %v334
        %v933 = vunpack.c.h.bf16 %v334
        %v934 = vunpack.c.l.bf16 %v335
        %v935 = vunpack.c.h.bf16 %v335
        %v936 = vunpack.c.l.bf16 %v336
        %v937 = vunpack.c.h.bf16 %v336
        %v938 = vunpack.c.l.bf16 %v337
        %v939 = vunpack.c.h.bf16 %v337
        %v940 = vunpack.c.l.bf16 %v338
        %v941 = vunpack.c.h.bf16 %v338
        %v942 = vunpack.c.l.bf16 %v339
        %v943 = vunpack.c.h.bf16 %v339
        %v944 = vunpack.c.l.bf16 %v340
        %v945 = vunpack.c.h.bf16 %v340
        %v946 = vunpack.c.l.bf16 %v341
        %v947 = vunpack.c.h.bf16 %v341
        %v948 = vunpack.c.l.bf16 %v342
        %v949 = vunpack.c.h.bf16 %v342
        %v950 = vunpack.c.l.bf16 %v343
        %v951 = vunpack.c.h.bf16 %v343
        %v952 = vunpack.c.l.bf16 %v344
        %v953 = vunpack.c.h.bf16 %v344
        %v954 = vunpack.c.l.bf16 %v345
        %v955 = vunpack.c.h.bf16 %v345
        %v956 = vunpack.c.l.bf16 %v346
        %v957 = vunpack.c.h.bf16 %v346
        %v958 = vunpack.c.l.bf16 %v347
        %v959 = vunpack.c.h.bf16 %v347
        %v960 = vunpack.c.l.bf16 %v348
        %v961 = vunpack.c.h.bf16 %v348
        %v962 = vunpack.c.l.bf16 %v349
        %v963 = vunpack.c.h.bf16 %v349
        %v964 = vunpack.c.l.bf16 %v350
        %v965 = vunpack.c.h.bf16 %v350
        %v966 = vunpack.c.l.bf16 %v351
        %v967 = vunpack.c.h.bf16 %v351
        %v968 = vunpack.c.l.bf16 %v352
        %v969 = vunpack.c.h.bf16 %v352
        %v970 = vunpack.c.l.bf16 %v353
        %v971 = vunpack.c.h.bf16 %v353
        %v972 = vunpack.c.l.bf16 %v354
        %v973 = vunpack.c.h.bf16 %v354
        %v974 = vunpack.c.l.bf16 %v355
        %v975 = vunpack.c.h.bf16 %v355
        %v976 = vunpack.c.l.bf16 %v356
        %v977 = vunpack.c.h.bf16 %v356
        %v978 = vunpack.c.l.bf16 %v357
        %v979 = vunpack.c.h.bf16 %v357
        %v980 = vunpack.c.l.bf16 %v358
        %v981 = vunpack.c.h.bf16 %v358
        %v982 = vunpack.c.l.bf16 %v359
        %v983 = vunpack.c.h.bf16 %v359
        %v984 = vunpack.c.l.bf16 %v360
        %v985 = vunpack.c.h.bf16 %v360
        %v986 = vunpack.c.l.bf16 %v361
        %v987 = vunpack.c.h.bf16 %v361
        %v988 = vunpack.c.l.bf16 %v362
        %v989 = vunpack.c.h.bf16 %v362
        %v990 = vunpack.c.l.bf16 %v363
        %v991 = vunpack.c.h.bf16 %v363
        %v992 = vunpack.c.l.bf16 %v364
        %v993 = vunpack.c.h.bf16 %v364
        %v994 = vunpack.c.l.bf16 %v365
        %v995 = vunpack.c.h.bf16 %v365
        %v996 = vunpack.c.l.bf16 %v366
        %v997 = vunpack.c.h.bf16 %v366
        %v998 = vunpack.c.l.bf16 %v367
        %v999 = vunpack.c.h.bf16 %v367
        %v1000 = vunpack.c.l.bf16 %v368
        %v1001 = vunpack.c.h.bf16 %v368
        %v1002 = vunpack.c.l.bf16 %v369
        %v1003 = vunpack.c.h.bf16 %v369
        %v1004 = vunpack.c.l.bf16 %v370
        %v1005 = vunpack.c.h.bf16 %v370
        %v1006 = vunpack.c.l.bf16 %v371
        %v1007 = vunpack.c.h.bf16 %v371
        %v1008 = vunpack.c.l.bf16 %v372
        %v1009 = vunpack.c.h.bf16 %v372
        %v1010 = vunpack.c.l.bf16 %v373
        %v1011 = vunpack.c.h.bf16 %v373
        %v1012 = vunpack.c.l.bf16 %v374
        %v1013 = vunpack.c.h.bf16 %v374
        %v1014 = vunpack.c.l.bf16 %v375
        %v1015 = vunpack.c.h.bf16 %v375
        %v1016 = vunpack.c.l.bf16 %v376
        %v1017 = vunpack.c.h.bf16 %v376
        %v1018 = vunpack.c.l.bf16 %v377
        %v1019 = vunpack.c.h.bf16 %v377
        %v1020 = vunpack.c.l.bf16 %v378
        %v1021 = vunpack.c.h.bf16 %v378
        %v1022 = vunpack.c.l.bf16 %v379
        %v1023 = vunpack.c.h.bf16 %v379
        %v1024 = vunpack.c.l.bf16 %v380
        %v1025 = vunpack.c.h.bf16 %v380
        %v1026 = vunpack.c.l.bf16 %v381
        %v1027 = vunpack.c.h.bf16 %v381
        %v1028 = vunpack.c.l.bf16 %v382
        %v1029 = vunpack.c.h.bf16 %v382
        %v1030 = vunpack.c.l.bf16 %v383
        %v1031 = vunpack.c.h.bf16 %v383
        %v1032 = vunpack.c.l.bf16 %v384
        %v1033 = vunpack.c.h.bf16 %v384
        %v1034 = vunpack.c.l.bf16 %v385
        %v1035 = vunpack.c.h.bf16 %v385
        %v1036 = vunpack.c.l.bf16 %v386
        %v1037 = vunpack.c.h.bf16 %v386
        %v1038 = vunpack.c.l.bf16 %v387
        %v1039 = vunpack.c.h.bf16 %v387
        %v1040 = vunpack.c.l.bf16 %v388
        %v1041 = vunpack.c.h.bf16 %v388
        %v1042 = vunpack.c.l.bf16 %v389
        %v1043 = vunpack.c.h.bf16 %v389
        %v1044 = vunpack.c.l.bf16 %v390
        %v1045 = vunpack.c.h.bf16 %v390
        %v1046 = vunpack.c.l.bf16 %v391
        %v1047 = vunpack.c.h.bf16 %v391
        %v1048 = vunpack.c.l.bf16 %v392
        %v1049 = vunpack.c.h.bf16 %v392
        %v1050 = vunpack.c.l.bf16 %v393
        %v1051 = vunpack.c.h.bf16 %v393
        %v1052 = vunpack.c.l.bf16 %v394
        %v1053 = vunpack.c.h.bf16 %v394
        %v1054 = vunpack.c.l.bf16 %v395
        %v1055 = vunpack.c.h.bf16 %v395
        %v1056 = vunpack.c.l.bf16 %v396
        %v1057 = vunpack.c.h.bf16 %v396
        %v1058 = vunpack.c.l.bf16 %v397
        %v1059 = vunpack.c.h.bf16 %v397
        %v1060 = vunpack.c.l.bf16 %v398
        %v1061 = vunpack.c.h.bf16 %v398
        %v1062 = vunpack.c.l.bf16 %v399
        %v1063 = vunpack.c.h.bf16 %v399
        %v1064 = vunpack.c.l.bf16 %v400
        %v1065 = vunpack.c.h.bf16 %v400
        %v1066 = vunpack.c.l.bf16 %v401
        %v1067 = vunpack.c.h.bf16 %v401
        %v1068 = vunpack.c.l.bf16 %v402
        %v1069 = vunpack.c.h.bf16 %v402
        %v1070 = vunpack.c.l.bf16 %v403
        %v1071 = vunpack.c.h.bf16 %v403
        %v1072 = vunpack.c.l.bf16 %v404
        %v1073 = vunpack.c.h.bf16 %v404
        %v1074 = vunpack.c.l.bf16 %v405
        %v1075 = vunpack.c.h.bf16 %v405
        %v1076 = vunpack.c.l.bf16 %v406
        %v1077 = vunpack.c.h.bf16 %v406
        %v1078 = vunpack.c.l.bf16 %v407
        %v1079 = vunpack.c.h.bf16 %v407
        %v1080 = vunpack.c.l.bf16 %v408
        %v1081 = vunpack.c.h.bf16 %v408
        %v1082 = vunpack.c.l.bf16 %v409
        %v1083 = vunpack.c.h.bf16 %v409
        %v1084 = vunpack.c.l.bf16 %v410
        %v1085 = vunpack.c.h.bf16 %v410
        %v1086 = vunpack.c.l.bf16 %v411
        %v1087 = vunpack.c.h.bf16 %v411
        %v1088 = vunpack.c.l.bf16 %v412
        %v1089 = vunpack.c.h.bf16 %v412
        %v1090 = vunpack.c.l.bf16 %v413
        %v1091 = vunpack.c.h.bf16 %v413
        %v1092 = vunpack.c.l.bf16 %v414
        %v1093 = vunpack.c.h.bf16 %v414
        %v1094 = vunpack.c.l.bf16 %v415
        %v1095 = vunpack.c.h.bf16 %v415
        %v1096 = vunpack.c.l.bf16 %v416
        %v1097 = vunpack.c.h.bf16 %v416
        %v1098 = vunpack.c.l.bf16 %v417
        %v1099 = vunpack.c.h.bf16 %v417
        %v1100 = vunpack.c.l.bf16 %v418
        %v1101 = vunpack.c.h.bf16 %v418
        %v1102 = vunpack.c.l.bf16 %v419
        %v1103 = vunpack.c.h.bf16 %v419
        %v1104 = vunpack.c.l.bf16 %v420
        %v1105 = vunpack.c.h.bf16 %v420
        %v1106 = vunpack.c.l.bf16 %v421
        %v1107 = vunpack.c.h.bf16 %v421
        %v1108 = vunpack.c.l.bf16 %v422
        %v1109 = vunpack.c.h.bf16 %v422
        %v1110 = vunpack.c.l.bf16 %v423
        %v1111 = vunpack.c.h.bf16 %v423
        %v1112 = vunpack.c.l.bf16 %v424
        %v1113 = vunpack.c.h.bf16 %v424
        %v1114 = vunpack.c.l.bf16 %v425
        %v1115 = vunpack.c.h.bf16 %v425
        %v1116 = vunpack.c.l.bf16 %v426
        %v1117 = vunpack.c.h.bf16 %v426
        %v1118 = vunpack.c.l.bf16 %v427
        %v1119 = vunpack.c.h.bf16 %v427
        %v1120 = vunpack.c.l.bf16 %v428
        %v1121 = vunpack.c.h.bf16 %v428
        %v1122 = vunpack.c.l.bf16 %v429
        %v1123 = vunpack.c.h.bf16 %v429
        %v1124 = vunpack.c.l.bf16 %v430
        %v1125 = vunpack.c.h.bf16 %v430
        %v1126 = vunpack.c.l.bf16 %v431
        %v1127 = vunpack.c.h.bf16 %v431
        %v1128 = vunpack.c.l.bf16 %v432
        %v1129 = vunpack.c.h.bf16 %v432
        %v1130 = vunpack.c.l.bf16 %v433
        %v1131 = vunpack.c.h.bf16 %v433
        %v1132 = vunpack.c.l.bf16 %v434
        %v1133 = vunpack.c.h.bf16 %v434
        %v1134 = vunpack.c.l.bf16 %v435
        %v1135 = vunpack.c.h.bf16 %v435
        %v1136 = vunpack.c.l.bf16 %v436
        %v1137 = vunpack.c.h.bf16 %v436
        %v1138 = vunpack.c.l.bf16 %v437
        %v1139 = vunpack.c.h.bf16 %v437
        %v1140 = vunpack.c.l.bf16 %v438
        %v1141 = vunpack.c.h.bf16 %v438
        %v1142 = vunpack.c.l.bf16 %v439
        %v1143 = vunpack.c.h.bf16 %v439
        %v1144 = vunpack.c.l.bf16 %v440
        %v1145 = vunpack.c.h.bf16 %v440
        %v1146 = vunpack.c.l.bf16 %v441
        %v1147 = vunpack.c.h.bf16 %v441
        %v1148 = vunpack.c.l.bf16 %v442
        %v1149 = vunpack.c.h.bf16 %v442
        %v1150 = vunpack.c.l.bf16 %v443
        %v1151 = vunpack.c.h.bf16 %v443
        %v1152 = vunpack.c.l.bf16 %v444
        %v1153 = vunpack.c.h.bf16 %v444
        %v1154 = vunpack.c.l.bf16 %v445
        %v1155 = vunpack.c.h.bf16 %v445
        %v1156 = vunpack.c.l.bf16 %v446
        %v1157 = vunpack.c.h.bf16 %v446
        %v1158 = vunpack.c.l.bf16 %v447
        %v1159 = vunpack.c.h.bf16 %v447
        %v1160 = vunpack.c.l.bf16 %v448
        %v1161 = vunpack.c.h.bf16 %v448
        %v1162 = vunpack.c.l.bf16 %v449
        %v1163 = vunpack.c.h.bf16 %v449
        %v1164 = vunpack.c.l.bf16 %v450
        %v1165 = vunpack.c.h.bf16 %v450
        %v1166 = vunpack.c.l.bf16 %v451
        %v1167 = vunpack.c.h.bf16 %v451
        %v1168 = vunpack.c.l.bf16 %v452
        %v1169 = vunpack.c.h.bf16 %v452
        %v1170 = vunpack.c.l.bf16 %v453
        %v1171 = vunpack.c.h.bf16 %v453
        %v1172 = vunpack.c.l.bf16 %v454
        %v1173 = vunpack.c.h.bf16 %v454
        %v1174 = vunpack.c.l.bf16 %v455
        %v1175 = vunpack.c.h.bf16 %v455
        %v1176 = vunpack.c.l.bf16 %v456
        %v1177 = vunpack.c.h.bf16 %v456
        %v1178 = vunpack.c.l.bf16 %v457
        %v1179 = vunpack.c.h.bf16 %v457
        %v1180 = vunpack.c.l.bf16 %v458
        %v1181 = vunpack.c.h.bf16 %v458
        %v1182 = vunpack.c.l.bf16 %v459
        %v1183 = vunpack.c.h.bf16 %v459
        %v1184 = vunpack.c.l.bf16 %v460
        %v1185 = vunpack.c.h.bf16 %v460
        %v1186 = vunpack.c.l.bf16 %v461
        %v1187 = vunpack.c.h.bf16 %v461
        %v1188 = vunpack.c.l.bf16 %v462
        %v1189 = vunpack.c.h.bf16 %v462
        %v1190 = vunpack.c.l.bf16 %v463
        %v1191 = vunpack.c.h.bf16 %v463
        %v1192 = vunpack.c.l.bf16 %v464
        %v1193 = vunpack.c.h.bf16 %v464
        %v1194 = vunpack.c.l.bf16 %v465
        %v1195 = vunpack.c.h.bf16 %v465
        %v1196 = vunpack.c.l.bf16 %v466
        %v1197 = vunpack.c.h.bf16 %v466
        %v1198 = vunpack.c.l.bf16 %v467
        %v1199 = vunpack.c.h.bf16 %v467
        %v1200 = vunpack.c.l.bf16 %v468
        %v1201 = vunpack.c.h.bf16 %v468
        %v1202 = vunpack.c.l.bf16 %v469
        %v1203 = vunpack.c.h.bf16 %v469
        %v1204 = vunpack.c.l.bf16 %v470
        %v1205 = vunpack.c.h.bf16 %v470
        %v1206 = vunpack.c.l.bf16 %v471
        %v1207 = vunpack.c.h.bf16 %v471
        %v1208 = vunpack.c.l.bf16 %v472
        %v1209 = vunpack.c.h.bf16 %v472
        %v1210 = vunpack.c.l.bf16 %v473
        %v1211 = vunpack.c.h.bf16 %v473
        %v1212 = vunpack.c.l.bf16 %v474
        %v1213 = vunpack.c.h.bf16 %v474
        %v1214 = vunpack.c.l.bf16 %v475
        %v1215 = vunpack.c.h.bf16 %v475
        %v1216 = vunpack.c.l.bf16 %v476
        %v1217 = vunpack.c.h.bf16 %v476
        %v1218 = vunpack.c.l.bf16 %v477
        %v1219 = vunpack.c.h.bf16 %v477
        %v1220 = vunpack.c.l.bf16 %v478
        %v1221 = vunpack.c.h.bf16 %v478
        %v1222 = vunpack.c.l.bf16 %v479
        %v1223 = vunpack.c.h.bf16 %v479
        %v1224 = vunpack.c.l.bf16 %v480
        %v1225 = vunpack.c.h.bf16 %v480
        %v1226 = vunpack.c.l.bf16 %v481
        %v1227 = vunpack.c.h.bf16 %v481
        %v1228 = vunpack.c.l.bf16 %v482
        %v1229 = vunpack.c.h.bf16 %v482
        %v1230 = vunpack.c.l.bf16 %v483
        %v1231 = vunpack.c.h.bf16 %v483
        %v1232 = vunpack.c.l.bf16 %v484
        %v1233 = vunpack.c.h.bf16 %v484
        %v1234 = vunpack.c.l.bf16 %v485
        %v1235 = vunpack.c.h.bf16 %v485
        %v1236 = vunpack.c.l.bf16 %v486
        %v1237 = vunpack.c.h.bf16 %v486
        %v1238 = vunpack.c.l.bf16 %v487
        %v1239 = vunpack.c.h.bf16 %v487
        %v1240 = vunpack.c.l.bf16 %v488
        %v1241 = vunpack.c.h.bf16 %v488
        %v1242 = vunpack.c.l.bf16 %v489
        %v1243 = vunpack.c.h.bf16 %v489
        %v1244 = vunpack.c.l.bf16 %v490
        %v1245 = vunpack.c.h.bf16 %v490
        %v1246 = vunpack.c.l.bf16 %v491
        %v1247 = vunpack.c.h.bf16 %v491
        %v1248 = vunpack.c.l.bf16 %v492
        %v1249 = vunpack.c.h.bf16 %v492
        %v1250 = vunpack.c.l.bf16 %v493
        %v1251 = vunpack.c.h.bf16 %v493
        %v1252 = vunpack.c.l.bf16 %v494
        %v1253 = vunpack.c.h.bf16 %v494
        %v1254 = vunpack.c.l.bf16 %v495
        %v1255 = vunpack.c.h.bf16 %v495
        %v1256 = vunpack.c.l.bf16 %v496
        %v1257 = vunpack.c.h.bf16 %v496
        %v1258 = vunpack.c.l.bf16 %v497
        %v1259 = vunpack.c.h.bf16 %v497
        %v1260 = vunpack.c.l.bf16 %v498
        %v1261 = vunpack.c.h.bf16 %v498
        %v1262 = vunpack.c.l.bf16 %v499
        %v1263 = vunpack.c.h.bf16 %v499
        %v1264 = vunpack.c.l.bf16 %v500
        %v1265 = vunpack.c.h.bf16 %v500
        %v1266 = vunpack.c.l.bf16 %v501
        %v1267 = vunpack.c.h.bf16 %v501
        %v1268 = vunpack.c.l.bf16 %v502
        %v1269 = vunpack.c.h.bf16 %v502
        %v1270 = vunpack.c.l.bf16 %v503
        %v1271 = vunpack.c.h.bf16 %v503
        %v1272 = vunpack.c.l.bf16 %v504
        %v1273 = vunpack.c.h.bf16 %v504
        %v1274 = vunpack.c.l.bf16 %v505
        %v1275 = vunpack.c.h.bf16 %v505
        %v1276 = vunpack.c.l.bf16 %v506
        %v1277 = vunpack.c.h.bf16 %v506
        %v1278 = vunpack.c.l.bf16 %v507
        %v1279 = vunpack.c.h.bf16 %v507
        %v1280 = vunpack.c.l.bf16 %v508
        %v1281 = vunpack.c.h.bf16 %v508
        %v1282 = vunpack.c.l.bf16 %v509
        %v1283 = vunpack.c.h.bf16 %v509
        %v1284 = vunpack.c.l.bf16 %v510
        %v1285 = vunpack.c.h.bf16 %v510
        %v1286 = vunpack.c.l.bf16 %v511
        %v1287 = vunpack.c.h.bf16 %v511
        %v1288 = vunpack.c.l.bf16 %v512
        %v1289 = vunpack.c.h.bf16 %v512
        %v1290 = vunpack.c.l.bf16 %v513
        %v1291 = vunpack.c.h.bf16 %v513
        %v1292 = vunpack.c.l.bf16 %v514
        %v1293 = vunpack.c.h.bf16 %v514
        %v1294 = vunpack.c.l.bf16 %v515
        %v1295 = vunpack.c.h.bf16 %v515
        %v1296 = vunpack.c.l.bf16 %v516
        %v1297 = vunpack.c.h.bf16 %v516
        %v1298 = vunpack.c.l.bf16 %v517
        %v1299 = vunpack.c.h.bf16 %v517
        %v1300 = vunpack.c.l.bf16 %v518
        %v1301 = vunpack.c.h.bf16 %v518
        %v1302 = vunpack.c.l.bf16 %v519
        %v1303 = vunpack.c.h.bf16 %v519
        %v1304 = vunpack.c.l.bf16 %v520
        %v1305 = vunpack.c.h.bf16 %v520
        %v1306 = vunpack.c.l.bf16 %v521
        %v1307 = vunpack.c.h.bf16 %v521
        %v1308 = vunpack.c.l.bf16 %v522
        %v1309 = vunpack.c.h.bf16 %v522
        %v1310 = vunpack.c.l.bf16 %v523
        %v1311 = vunpack.c.h.bf16 %v523
        %v1312 = vunpack.c.l.bf16 %v524
        %v1313 = vunpack.c.h.bf16 %v524
        %v1314 = vunpack.c.l.bf16 %v525
        %v1315 = vunpack.c.h.bf16 %v525
        %v1316 = vunpack.c.l.bf16 %v526
        %v1317 = vunpack.c.h.bf16 %v526
        %v1318 = vunpack.c.l.bf16 %v527
        %v1319 = vunpack.c.h.bf16 %v527
        %v1320 = vunpack.c.l.bf16 %v528
        %v1321 = vunpack.c.h.bf16 %v528
        %v1322 = vunpack.c.l.bf16 %v529
        %v1323 = vunpack.c.h.bf16 %v529
        %v1324 = vunpack.c.l.bf16 %v530
        %v1325 = vunpack.c.h.bf16 %v530
        %v1326 = vunpack.c.l.bf16 %v531
        %v1327 = vunpack.c.h.bf16 %v531
        %v1328 = vunpack.c.l.bf16 %v532
        %v1329 = vunpack.c.h.bf16 %v532
        %v1330 = vunpack.c.l.bf16 %v533
        %v1331 = vunpack.c.h.bf16 %v533
        %v1332 = vunpack.c.l.bf16 %v534
        %v1333 = vunpack.c.h.bf16 %v534
        %v1334 = vunpack.c.l.bf16 %v535
        %v1335 = vunpack.c.h.bf16 %v535
        %v1336 = vunpack.c.l.bf16 %v536
        %v1337 = vunpack.c.h.bf16 %v536
        %v1338 = vunpack.c.l.bf16 %v537
        %v1339 = vunpack.c.h.bf16 %v537
        %v1340 = vunpack.c.l.bf16 %v538
        %v1341 = vunpack.c.h.bf16 %v538
        %v1342 = vunpack.c.l.bf16 %v539
        %v1343 = vunpack.c.h.bf16 %v539
        %v1344 = vunpack.c.l.bf16 %v540
        %v1345 = vunpack.c.h.bf16 %v540
        %v1346 = vunpack.c.l.bf16 %v541
        %v1347 = vunpack.c.h.bf16 %v541
        %v1348 = vunpack.c.l.bf16 %v542
        %v1349 = vunpack.c.h.bf16 %v542
        %v1350 = vunpack.c.l.bf16 %v543
        %v1351 = vunpack.c.h.bf16 %v543
        %v1352 = vunpack.c.l.bf16 %v544
        %v1353 = vunpack.c.h.bf16 %v544
        %v1354 = vunpack.c.l.bf16 %v545
        %v1355 = vunpack.c.h.bf16 %v545
        %v1356 = vunpack.c.l.bf16 %v546
        %v1357 = vunpack.c.h.bf16 %v546
        %v1358 = vunpack.c.l.bf16 %v547
        %v1359 = vunpack.c.h.bf16 %v547
        %v1360 = vunpack.c.l.bf16 %v548
        %v1361 = vunpack.c.h.bf16 %v548
        %v1362 = vunpack.c.l.bf16 %v549
        %v1363 = vunpack.c.h.bf16 %v549
        %v1364 = vunpack.c.l.bf16 %v550
        %v1365 = vunpack.c.h.bf16 %v550
        %v1366 = vunpack.c.l.bf16 %v551
        %v1367 = vunpack.c.h.bf16 %v551
        %v1368 = vunpack.c.l.bf16 %v552
        %v1369 = vunpack.c.h.bf16 %v552
        %v1370 = vunpack.c.l.bf16 %v553
        %v1371 = vunpack.c.h.bf16 %v553
        %v1372 = vunpack.c.l.bf16 %v554
        %v1373 = vunpack.c.h.bf16 %v554
        %v1374 = vunpack.c.l.bf16 %v555
        %v1375 = vunpack.c.h.bf16 %v555
        %v1376 = vunpack.c.l.bf16 %v556
        %v1377 = vunpack.c.h.bf16 %v556
        %v1378 = vunpack.c.l.bf16 %v557
        %v1379 = vunpack.c.h.bf16 %v557
        %v1380 = vunpack.c.l.bf16 %v558
        %v1381 = vunpack.c.h.bf16 %v558
        %v1382 = vunpack.c.l.bf16 %v559
        %v1383 = vunpack.c.h.bf16 %v559
        %v1384 = vunpack.c.l.bf16 %v560
        %v1385 = vunpack.c.h.bf16 %v560
        %v1386 = vunpack.c.l.bf16 %v561
        %v1387 = vunpack.c.h.bf16 %v561
        %v1388 = vunpack.c.l.bf16 %v562
        %v1389 = vunpack.c.h.bf16 %v562
        %v1390 = vunpack.c.l.bf16 %v563
        %v1391 = vunpack.c.h.bf16 %v563
        %v1392 = vunpack.c.l.bf16 %v564
        %v1393 = vunpack.c.h.bf16 %v564
        %v1394 = vunpack.c.l.bf16 %v565
        %v1395 = vunpack.c.h.bf16 %v565
        %v1396 = vunpack.c.l.bf16 %v566
        %v1397 = vunpack.c.h.bf16 %v566
        %v1398 = vunpack.c.l.bf16 %v567
        %v1399 = vunpack.c.h.bf16 %v567
        %v1400 = vunpack.c.l.bf16 %v568
        %v1401 = vunpack.c.h.bf16 %v568
        %v1402 = vunpack.c.l.bf16 %v569
        %v1403 = vunpack.c.h.bf16 %v569
        %v1404 = vunpack.c.l.bf16 %v570
        %v1405 = vunpack.c.h.bf16 %v570
        %v1406 = vunpack.c.l.bf16 %v571
        %v1407 = vunpack.c.h.bf16 %v571
        %v1408 = vunpack.c.l.bf16 %v572
        %v1409 = vunpack.c.h.bf16 %v572
        %v1410 = vunpack.c.l.bf16 %v573
        %v1411 = vunpack.c.h.bf16 %v573
        %v1412 = vunpack.c.l.bf16 %v574
        %v1413 = vunpack.c.h.bf16 %v574
        %v1414 = vunpack.c.l.bf16 %v575
        %v1415 = vunpack.c.h.bf16 %v575
        %v1416 = vunpack.c.l.bf16 %v576
        %v1417 = vunpack.c.h.bf16 %v576
        %v1418 = vunpack.c.l.bf16 %v577
        %v1419 = vunpack.c.h.bf16 %v577
        %v1420 = vunpack.c.l.bf16 %v578
        %v1421 = vunpack.c.h.bf16 %v578
        %v1422 = vunpack.c.l.bf16 %v579
        %v1423 = vunpack.c.h.bf16 %v579
        %v1424 = vunpack.c.l.bf16 %v580
        %v1425 = vunpack.c.h.bf16 %v580
        %v1426 = vunpack.c.l.bf16 %v581
        %v1427 = vunpack.c.h.bf16 %v581
        %v1428 = vunpack.c.l.bf16 %v582
        %v1429 = vunpack.c.h.bf16 %v582
        %v1430 = vunpack.c.l.bf16 %v583
        %v1431 = vunpack.c.h.bf16 %v583
        %v1432 = vunpack.c.l.bf16 %v584
        %v1433 = vunpack.c.h.bf16 %v584
        %v1434 = vunpack.c.l.bf16 %v585
        %v1435 = vunpack.c.h.bf16 %v585
        %v1436 = vunpack.c.l.bf16 %v586
        %v1437 = vunpack.c.h.bf16 %v586
        %v1438 = vunpack.c.l.bf16 %v587
        %v1439 = vunpack.c.h.bf16 %v587
        %v1440 = vunpack.c.l.bf16 %v588
        %v1441 = vunpack.c.h.bf16 %v588
        %v1442 = vunpack.c.l.bf16 %v589
        %v1443 = vunpack.c.h.bf16 %v589
        %v1444 = vunpack.c.l.bf16 %v590
        %v1445 = vunpack.c.h.bf16 %v590
        %v1446 = vunpack.c.l.bf16 %v591
        %v1447 = vunpack.c.h.bf16 %v591
        %v1448 = vunpack.c.l.bf16 %v592
        %v1449 = vunpack.c.h.bf16 %v592
        %v1450 = vunpack.c.l.bf16 %v593
        %v1451 = vunpack.c.h.bf16 %v593
        %v1452 = vunpack.c.l.bf16 %v594
        %v1453 = vunpack.c.h.bf16 %v594
        %v1454 = vunpack.c.l.bf16 %v595
        %v1455 = vunpack.c.h.bf16 %v595
        %v1456 = vunpack.c.l.bf16 %v596
        %v1457 = vunpack.c.h.bf16 %v596
        %v1458 = vunpack.c.l.bf16 %v597
        %v1459 = vunpack.c.h.bf16 %v597
        %v1460 = vunpack.c.l.bf16 %v598
        %v1461 = vunpack.c.h.bf16 %v598
        %v1462 = vunpack.c.l.bf16 %v599
        %v1463 = vunpack.c.h.bf16 %v599
        %v1464 = vunpack.c.l.bf16 %v600
        %v1465 = vunpack.c.h.bf16 %v600
        %v1466 = vunpack.c.l.bf16 %v601
        %v1467 = vunpack.c.h.bf16 %v601
        %v1468 = vunpack.c.l.bf16 %v602
        %v1469 = vunpack.c.h.bf16 %v602
        %v1470 = vunpack.c.l.bf16 %v603
        %v1471 = vunpack.c.h.bf16 %v603
        %v1472 = vunpack.c.l.bf16 %v604
        %v1473 = vunpack.c.h.bf16 %v604
        %v1474 = vunpack.c.l.bf16 %v605
        %v1475 = vunpack.c.h.bf16 %v605
        %v1476 = vunpack.c.l.bf16 %v606
        %v1477 = vunpack.c.h.bf16 %v606
        %v1478 = vunpack.c.l.bf16 %v607
        %v1479 = vunpack.c.h.bf16 %v607
        %v1480 = vunpack.c.l.bf16 %v608
        %v1481 = vunpack.c.h.bf16 %v608
        %v1482 = vunpack.c.l.bf16 %v609
        %v1483 = vunpack.c.h.bf16 %v609
        %v1484 = vunpack.c.l.bf16 %v610
        %v1485 = vunpack.c.h.bf16 %v610
        %v1486 = vunpack.c.l.bf16 %v611
        %v1487 = vunpack.c.h.bf16 %v611
        %v1488 = vunpack.c.l.bf16 %v612
        %v1489 = vunpack.c.h.bf16 %v612
        %v1490 = vunpack.c.l.bf16 %v613
        %v1491 = vunpack.c.h.bf16 %v613
        %v1492 = vunpack.c.l.bf16 %v614
        %v1493 = vunpack.c.h.bf16 %v614
        %v1494 = vunpack.c.l.bf16 %v615
        %v1495 = vunpack.c.h.bf16 %v615
        %v1496 = vunpack.c.l.bf16 %v616
        %v1497 = vunpack.c.h.bf16 %v616
        %v1498 = vunpack.c.l.bf16 %v617
        %v1499 = vunpack.c.h.bf16 %v617
        %v1500 = vunpack.c.l.bf16 %v618
        %v1501 = vunpack.c.h.bf16 %v618
        %v1502 = vunpack.c.l.bf16 %v619
        %v1503 = vunpack.c.h.bf16 %v619
        %v1504 = vunpack.c.l.bf16 %v620
        %v1505 = vunpack.c.h.bf16 %v620
        %v1506 = vunpack.c.l.bf16 %v621
        %v1507 = vunpack.c.h.bf16 %v621
        %v1508 = vunpack.c.l.bf16 %v622
        %v1509 = vunpack.c.h.bf16 %v622
        %v1510 = vunpack.c.l.bf16 %v623
        %v1511 = vunpack.c.h.bf16 %v623
        %v1512 = vunpack.c.l.bf16 %v624
        %v1513 = vunpack.c.h.bf16 %v624
        %v1514 = vunpack.c.l.bf16 %v625
        %v1515 = vunpack.c.h.bf16 %v625
        %v1516 = vunpack.c.l.bf16 %v626
        %v1517 = vunpack.c.h.bf16 %v626
        %v1518 = vunpack.c.l.bf16 %v627
        %v1519 = vunpack.c.h.bf16 %v627
        %v1520 = vunpack.c.l.bf16 %v628
        %v1521 = vunpack.c.h.bf16 %v628
        %v1522 = vunpack.c.l.bf16 %v629
        %v1523 = vunpack.c.h.bf16 %v629
        %v1524 = vunpack.c.l.bf16 %v630
        %v1525 = vunpack.c.h.bf16 %v630
        %v1526 = vunpack.c.l.bf16 %v631
        %v1527 = vunpack.c.h.bf16 %v631
        %v1528 = vunpack.c.l.bf16 %v632
        %v1529 = vunpack.c.h.bf16 %v632
        %v1530 = vunpack.c.l.bf16 %v633
        %v1531 = vunpack.c.h.bf16 %v633
        %v1532 = vunpack.c.l.bf16 %v634
        %v1533 = vunpack.c.h.bf16 %v634
        %v1534 = vunpack.c.l.bf16 %v635
        %v1535 = vunpack.c.h.bf16 %v635
        %v1536 = vunpack.c.l.bf16 %v636
        %v1537 = vunpack.c.h.bf16 %v636
        %v1538 = vunpack.c.l.bf16 %v637
        %v1539 = vunpack.c.h.bf16 %v637
        %v1540 = vunpack.c.l.bf16 %v638
        %v1541 = vunpack.c.h.bf16 %v638
        %v1542 = vunpack.c.l.bf16 %v639
        %v1543 = vunpack.c.h.bf16 %v639
        %v1544 = vunpack.c.l.bf16 %v640
        %v1545 = vunpack.c.h.bf16 %v640
        %v1546 = vunpack.c.l.bf16 %v641
        %v1547 = vunpack.c.h.bf16 %v641
        %v1548 = vunpack.c.l.bf16 %v642
        %v1549 = vunpack.c.h.bf16 %v642
        %v1550 = vunpack.c.l.bf16 %v643
        %v1551 = vunpack.c.h.bf16 %v643
        %v1552 = vunpack.c.l.bf16 %v644
        %v1553 = vunpack.c.h.bf16 %v644
        %v1554 = vunpack.c.l.bf16 %v645
        %v1555 = vunpack.c.h.bf16 %v645
        %v1556 = vunpack.c.l.bf16 %v646
        %v1557 = vunpack.c.h.bf16 %v646
        %v1558 = vunpack.c.l.bf16 %v647
        %v1559 = vunpack.c.h.bf16 %v647
        %v1560 = vunpack.c.l.bf16 %v648
        %v1561 = vunpack.c.h.bf16 %v648
        %v1562 = vunpack.c.l.bf16 %v649
        %v1563 = vunpack.c.h.bf16 %v649
        %v1564 = vunpack.c.l.bf16 %v650
        %v1565 = vunpack.c.h.bf16 %v650
        %v1566 = vunpack.c.l.bf16 %v651
        %v1567 = vunpack.c.h.bf16 %v651
        %v1568 = vunpack.c.l.bf16 %v652
        %v1569 = vunpack.c.h.bf16 %v652
        %v1570 = vunpack.c.l.bf16 %v653
        %v1571 = vunpack.c.h.bf16 %v653
        %v1572 = vunpack.c.l.bf16 %v654
        %v1573 = vunpack.c.h.bf16 %v654
        %v1574 = vunpack.c.l.bf16 %v655
        %v1575 = vunpack.c.h.bf16 %v655
        %v1576 = vunpack.c.l.bf16 %v656
        %v1577 = vunpack.c.h.bf16 %v656
        %v1578 = vunpack.c.l.bf16 %v657
        %v1579 = vunpack.c.h.bf16 %v657
        %v1580 = vunpack.c.l.bf16 %v658
        %v1581 = vunpack.c.h.bf16 %v658
        %v1582 = vunpack.c.l.bf16 %v659
        %v1583 = vunpack.c.h.bf16 %v659
        %v1584 = vunpack.c.l.bf16 %v660
        %v1585 = vunpack.c.h.bf16 %v660
        %v1586 = vunpack.c.l.bf16 %v661
        %v1587 = vunpack.c.h.bf16 %v661
        %v1588 = vunpack.c.l.bf16 %v662
        %v1589 = vunpack.c.h.bf16 %v662
        %v1590 = vunpack.c.l.bf16 %v663
        %v1591 = vunpack.c.h.bf16 %v663
        %v1592 = vunpack.c.l.bf16 %v664
        %v1593 = vunpack.c.h.bf16 %v664
        %v1594 = vunpack.c.l.bf16 %v665
        %v1595 = vunpack.c.h.bf16 %v665
        %v1596 = vunpack.c.l.bf16 %v666
        %v1597 = vunpack.c.h.bf16 %v666
        %v1598 = vunpack.c.l.bf16 %v667
        %v1599 = vunpack.c.h.bf16 %v667
        %v1600 = vunpack.c.l.bf16 %v668
        %v1601 = vunpack.c.h.bf16 %v668
        %v1602 = vunpack.c.l.bf16 %v669
        %v1603 = vunpack.c.h.bf16 %v669
        %v1604 = vunpack.c.l.bf16 %v670
        %v1605 = vunpack.c.h.bf16 %v670
        %v1606 = vunpack.c.l.bf16 %v671
        %v1607 = vunpack.c.h.bf16 %v671
        %v1608 = vunpack.c.l.bf16 %v672
        %v1609 = vunpack.c.h.bf16 %v672
        %v1610 = vunpack.c.l.bf16 %v673
        %v1611 = vunpack.c.h.bf16 %v673
        %v1612 = vunpack.c.l.bf16 %v674
        %v1613 = vunpack.c.h.bf16 %v674
        %v1614 = vunpack.c.l.bf16 %v675
        %v1615 = vunpack.c.h.bf16 %v675
        %v1616 = vunpack.c.l.bf16 %v676
        %v1617 = vunpack.c.h.bf16 %v676
        %v1618 = vunpack.c.l.bf16 %v677
        %v1619 = vunpack.c.h.bf16 %v677
        %v1620 = vunpack.c.l.bf16 %v678
        %v1621 = vunpack.c.h.bf16 %v678
        %v1622 = vunpack.c.l.bf16 %v679
        %v1623 = vunpack.c.h.bf16 %v679
        %v1624 = vunpack.c.l.bf16 %v680
        %v1625 = vunpack.c.h.bf16 %v680
        %v1626 = vunpack.c.l.bf16 %v681
        %v1627 = vunpack.c.h.bf16 %v681
        %v1628 = vunpack.c.l.bf16 %v682
        %v1629 = vunpack.c.h.bf16 %v682
        %v1630 = vunpack.c.l.bf16 %v683
        %v1631 = vunpack.c.h.bf16 %v683
        %v1632 = vunpack.c.l.bf16 %v684
        %v1633 = vunpack.c.h.bf16 %v684
        %v1634 = vunpack.c.l.bf16 %v685
        %v1635 = vunpack.c.h.bf16 %v685
        %v1636 = vunpack.c.l.bf16 %v686
        %v1637 = vunpack.c.h.bf16 %v686
        %v1638 = vunpack.c.l.bf16 %v687
        %v1639 = vunpack.c.h.bf16 %v687
        %v1640 = vunpack.c.l.bf16 %v688
        %v1641 = vunpack.c.h.bf16 %v688
        %v1642 = vunpack.c.l.bf16 %v689
        %v1643 = vunpack.c.h.bf16 %v689
        %v1644 = vunpack.c.l.bf16 %v690
        %v1645 = vunpack.c.h.bf16 %v690
        %v1646 = vunpack.c.l.bf16 %v691
        %v1647 = vunpack.c.h.bf16 %v691
        %v1648 = vunpack.c.l.bf16 %v692
        %v1649 = vunpack.c.h.bf16 %v692
        %v1650 = vunpack.c.l.bf16 %v693
        %v1651 = vunpack.c.h.bf16 %v693
        %v1652 = vunpack.c.l.bf16 %v694
        %v1653 = vunpack.c.h.bf16 %v694
        %v1654 = vunpack.c.l.bf16 %v695
        %v1655 = vunpack.c.h.bf16 %v695
        %v1656 = vunpack.c.l.bf16 %v696
        %v1657 = vunpack.c.h.bf16 %v696
        %v1658 = vunpack.c.l.bf16 %v697
        %v1659 = vunpack.c.h.bf16 %v697
        %v1660 = vunpack.c.l.bf16 %v698
        %v1661 = vunpack.c.h.bf16 %v698
        %v1662 = vunpack.c.l.bf16 %v699
        %v1663 = vunpack.c.h.bf16 %v699
        %v1664 = vunpack.c.l.bf16 %v700
        %v1665 = vunpack.c.h.bf16 %v700
        %v1666 = vunpack.c.l.bf16 %v701
        %v1667 = vunpack.c.h.bf16 %v701
        %v1668 = vunpack.c.l.bf16 %v702
        %v1669 = vunpack.c.h.bf16 %v702
        %v1670 = vunpack.c.l.bf16 %v703
        %v1671 = vunpack.c.h.bf16 %v703
        %v1672 = vunpack.c.l.bf16 %v704
        %v1673 = vunpack.c.h.bf16 %v704
        %v1674 = vunpack.c.l.bf16 %v705
        %v1675 = vunpack.c.h.bf16 %v705
        %v1676 = vunpack.c.l.bf16 %v706
        %v1677 = vunpack.c.h.bf16 %v706
        %v1678 = vunpack.c.l.bf16 %v707
        %v1679 = vunpack.c.h.bf16 %v707
        %v1680 = vunpack.c.l.bf16 %v708
        %v1681 = vunpack.c.h.bf16 %v708
        %v1682 = vunpack.c.l.bf16 %v709
        %v1683 = vunpack.c.h.bf16 %v709
        %v1684 = vunpack.c.l.bf16 %v710
        %v1685 = vunpack.c.h.bf16 %v710
        %v1686 = vunpack.c.l.bf16 %v711
        %v1687 = vunpack.c.h.bf16 %v711
        %v1688 = vunpack.c.l.bf16 %v712
        %v1689 = vunpack.c.h.bf16 %v712
        %v1690 = vunpack.c.l.bf16 %v713
        %v1691 = vunpack.c.h.bf16 %v713
        %v1692 = vunpack.c.l.bf16 %v714
        %v1693 = vunpack.c.h.bf16 %v714
        %v1694 = vunpack.c.l.bf16 %v715
        %v1695 = vunpack.c.h.bf16 %v715
        %v1696 = vunpack.c.l.bf16 %v716
        %v1697 = vunpack.c.h.bf16 %v716
        %v1698 = vunpack.c.l.bf16 %v717
        %v1699 = vunpack.c.h.bf16 %v717
        %v1700 = vunpack.c.l.bf16 %v718
        %v1701 = vunpack.c.h.bf16 %v718
        %v1702 = vunpack.c.l.bf16 %v719
        %v1703 = vunpack.c.h.bf16 %v719
        %v1704 = vunpack.c.l.bf16 %v720
        %v1705 = vunpack.c.h.bf16 %v720
        %v1706 = vunpack.c.l.bf16 %v721
        %v1707 = vunpack.c.h.bf16 %v721
        %v1708 = vunpack.c.l.bf16 %v722
        %v1709 = vunpack.c.h.bf16 %v722
        %v1710 = vunpack.c.l.bf16 %v723
        %v1711 = vunpack.c.h.bf16 %v723
        %v1712 = vunpack.c.l.bf16 %v724
        %v1713 = vunpack.c.h.bf16 %v724
        %v1714 = vunpack.c.l.bf16 %v725
        %v1715 = vunpack.c.h.bf16 %v725
        %v1716 = vunpack.c.l.bf16 %v726
        %v1717 = vunpack.c.h.bf16 %v726
        %v1718 = vunpack.c.l.bf16 %v727
        %v1719 = vunpack.c.h.bf16 %v727
        %v1720 = vunpack.c.l.bf16 %v728
        %v1721 = vunpack.c.h.bf16 %v728
        %v1722 = vunpack.c.l.bf16 %v729
        %v1723 = vunpack.c.h.bf16 %v729
        %v1724 = vunpack.c.l.bf16 %v730
        %v1725 = vunpack.c.h.bf16 %v730
        %v1726 = vunpack.c.l.bf16 %v731
        %v1727 = vunpack.c.h.bf16 %v731
        %v1728 = vunpack.c.l.bf16 %v732
        %v1729 = vunpack.c.h.bf16 %v732
        %v1730 = vunpack.c.l.bf16 %v733
        %v1731 = vunpack.c.h.bf16 %v733
        %v1732 = vunpack.c.l.bf16 %v734
        %v1733 = vunpack.c.h.bf16 %v734
        %v1734 = vunpack.c.l.bf16 %v735
        %v1735 = vunpack.c.h.bf16 %v735
        %v1736 = vunpack.c.l.bf16 %v736
        %v1737 = vunpack.c.h.bf16 %v736
        %v1738 = vunpack.c.l.bf16 %v737
        %v1739 = vunpack.c.h.bf16 %v737
        %v1740 = vunpack.c.l.bf16 %v738
        %v1741 = vunpack.c.h.bf16 %v738
        %v1742 = vunpack.c.l.bf16 %v739
        %v1743 = vunpack.c.h.bf16 %v739
        %v1744 = vunpack.c.l.bf16 %v740
        %v1745 = vunpack.c.h.bf16 %v740
        %v1746 = vunpack.c.l.bf16 %v741
        %v1747 = vunpack.c.h.bf16 %v741
        %v1748 = vunpack.c.l.bf16 %v742
        %v1749 = vunpack.c.h.bf16 %v742
        %v1750 = vunpack.c.l.bf16 %v743
        %v1751 = vunpack.c.h.bf16 %v743
        %v1752 = vunpack.c.l.bf16 %v744
        %v1753 = vunpack.c.h.bf16 %v744
        %v1754 = vunpack.c.l.bf16 %v745
        %v1755 = vunpack.c.h.bf16 %v745
        %v1756 = vunpack.c.l.bf16 %v746
        %v1757 = vunpack.c.h.bf16 %v746
        %v1758 = vunpack.c.l.bf16 %v747
        %v1759 = vunpack.c.h.bf16 %v747
        %v1760 = vunpack.c.l.bf16 %v748
        %v1761 = vunpack.c.h.bf16 %v748
        %v1762 = vunpack.c.l.bf16 %v749
        %v1763 = vunpack.c.h.bf16 %v749
        %v1764 = vunpack.c.l.bf16 %v750
        %v1765 = vunpack.c.h.bf16 %v750
        %v1766 = vunpack.c.l.bf16 %v751
        %v1767 = vunpack.c.h.bf16 %v751
        %v1768 = vunpack.c.l.bf16 %v752
        %v1769 = vunpack.c.h.bf16 %v752
        %v1770 = vunpack.c.l.bf16 %v753
        %v1771 = vunpack.c.h.bf16 %v753
        %v1772 = vunpack.c.l.bf16 %v754
        %v1773 = vunpack.c.h.bf16 %v754
        %v1774 = vunpack.c.l.bf16 %v755
        %v1775 = vunpack.c.h.bf16 %v755
        %v1776 = vunpack.c.l.bf16 %v756
        %v1777 = vunpack.c.h.bf16 %v756
        %v1778 = vunpack.c.l.bf16 %v757
        %v1779 = vunpack.c.h.bf16 %v757
        %v1780 = vunpack.c.l.bf16 %v758
        %v1781 = vunpack.c.h.bf16 %v758
        %v1782 = vunpack.c.l.bf16 %v759
        %v1783 = vunpack.c.h.bf16 %v759
        %v1784 = vld [vmem:[%s196] sm:$0xf]
        %v1786 = vlaneseq
        %v1787 = vshrl.u32 %v1786, 7
        %v1788 = vsub.s32 0, %v1787
        %v1789 = vrot.slane %v1784, %v1788
        %v1790 = vlaneseq
        %v1791 = vshrl.u32 %v1790, 7
        %v1792 = vsub.s32 1, %v1791
        %v1793 = vrot.slane %v1784, %v1792
        %v1794 = vlaneseq
        %v1795 = vshrl.u32 %v1794, 7
        %v1796 = vsub.s32 2, %v1795
        %v1797 = vrot.slane %v1784, %v1796
        %v1798 = vlaneseq
        %v1799 = vshrl.u32 %v1798, 7
        %v1800 = vsub.s32 3, %v1799
        %v1801 = vrot.slane %v1784, %v1800
        %1806 = vmatprep.subr.mxu0 %v761
        %1807 = vmatpush1.msra.mxu0 %v760
        %1808 = vmatprep.subr.mxu0 %v765
        %1809 = vmatpush1.msra.mxu0 %v764
        %1810 = vmatprep.subr.mxu0 %v769
        %1811 = vmatpush1.msra.mxu0 %v768
        %1812 = vmatprep.subr.mxu0 %v773
        %1813 = vmatpush1.msra.mxu0 %v772
        %1814 = vmatprep.subr.mxu0 %v777
        %1815 = vmatpush1.msra.mxu0 %v776
        %1816 = vmatprep.subr.mxu0 %v781
        %1817 = vmatpush1.msra.mxu0 %v780
        %1818 = vmatprep.subr.mxu0 %v785
        %1819 = vmatpush1.msra.mxu0 %v784
        %1820 = vmatprep.subr.mxu0 %v789
        %1821 = vmatpush1.msra.mxu0 %v788
        %1822 = vmatprep.subr.mxu0 %v793
        %1823 = vmatpush1.msra.mxu0 %v792
        %1824 = vmatprep.subr.mxu0 %v797
        %1825 = vmatpush1.msra.mxu0 %v796
        %1826 = vmatprep.subr.mxu0 %v801
        %1827 = vmatpush1.msra.mxu0 %v800
        %1828 = vmatprep.subr.mxu0 %v805
        %1829 = vmatpush1.msra.mxu0 %v804
        %1830 = vmatprep.subr.mxu0 %v809
        %1831 = vmatpush1.msra.mxu0 %v808
        %1832 = vmatprep.subr.mxu0 %v813
        %1833 = vmatpush1.msra.mxu0 %v812
        %1834 = vmatprep.subr.mxu0 %v817
        %1835 = vmatpush1.msra.mxu0 %v816
        %1836 = vmatprep.subr.mxu0 %v821
        %1837 = vmatpush1.msra.mxu0 %v820
        %1838 = vmatprep.subr.mxu0 %v825
        %1839 = vmatpush1.msra.mxu0 %v824
        %1840 = vmatprep.subr.mxu0 %v829
        %1841 = vmatpush1.msra.mxu0 %v828
        %1842 = vmatprep.subr.mxu0 %v833
        %1843 = vmatpush1.msra.mxu0 %v832
        %1844 = vmatprep.subr.mxu0 %v837
        %1845 = vmatpush1.msra.mxu0 %v836
        %1846 = vmatprep.subr.mxu0 %v841
        %1847 = vmatpush1.msra.mxu0 %v840
        %1848 = vmatprep.subr.mxu0 %v845
        %1849 = vmatpush1.msra.mxu0 %v844
        %1850 = vmatprep.subr.mxu0 %v849
        %1851 = vmatpush1.msra.mxu0 %v848
        %1852 = vmatprep.subr.mxu0 %v853
        %1853 = vmatpush1.msra.mxu0 %v852
        %1854 = vmatprep.subr.mxu0 %v857
        %1855 = vmatpush1.msra.mxu0 %v856
        %1856 = vmatprep.subr.mxu0 %v861
        %1857 = vmatpush1.msra.mxu0 %v860
        %1858 = vmatprep.subr.mxu0 %v865
        %1859 = vmatpush1.msra.mxu0 %v864
        %1860 = vmatprep.subr.mxu0 %v869
        %1861 = vmatpush1.msra.mxu0 %v868
        %1862 = vmatprep.subr.mxu0 %v873
        %1863 = vmatpush1.msra.mxu0 %v872
        %1864 = vmatprep.subr.mxu0 %v877
        %1865 = vmatpush1.msra.mxu0 %v876
        %1866 = vmatprep.subr.mxu0 %v881
        %1867 = vmatpush1.msra.mxu0 %v880
        %1868 = vmatprep.subr.mxu0 %v885
        %1869 = vmatpush1.msra.mxu0 %v884
        %1870 = vmatprep.mubr.f32.mxu0 %v233
        %1871 = vmatmul.mubr.f32.gmra.mrb[0].mxu0 %v232
        %v1872 = vpop.f32.mrb[0].mxu0
        %v1873 = vadd.f32 %v1789, %v1872
        %v1874 = vpop.f32.mrb[0].mxu0
        %v1875 = vadd.f32 %v1793, %v1874
        %1876 = vdwg.mxu0
        %1877 = vmatprep.subr.mxu0 %v889
        %1878 = vmatpush1.msra.mxu0 %v888
        %1879 = vmatprep.subr.mxu0 %v893
        %1880 = vmatpush1.msra.mxu0 %v892
        %1881 = vmatprep.subr.mxu0 %v897
        %1882 = vmatpush1.msra.mxu0 %v896
        %1883 = vmatprep.subr.mxu0 %v901
        %1884 = vmatpush1.msra.mxu0 %v900
        %1885 = vmatprep.subr.mxu0 %v905
        %1886 = vmatpush1.msra.mxu0 %v904
        %1887 = vmatprep.subr.mxu0 %v909
        %1888 = vmatpush1.msra.mxu0 %v908
        %1889 = vmatprep.subr.mxu0 %v913
        %1890 = vmatpush1.msra.mxu0 %v912
        %1891 = vmatprep.subr.mxu0 %v917
        %1892 = vmatpush1.msra.mxu0 %v916
        %1893 = vmatprep.subr.mxu0 %v921
        %1894 = vmatpush1.msra.mxu0 %v920
        %1895 = vmatprep.subr.mxu0 %v925
        %1896 = vmatpush1.msra.mxu0 %v924
        %1897 = vmatprep.subr.mxu0 %v929
        %1898 = vmatpush1.msra.mxu0 %v928
        %1899 = vmatprep.subr.mxu0 %v933
        %1900 = vmatpush1.msra.mxu0 %v932
        %1901 = vmatprep.subr.mxu0 %v937
        %1902 = vmatpush1.msra.mxu0 %v936
        %1903 = vmatprep.subr.mxu0 %v941
        %1904 = vmatpush1.msra.mxu0 %v940
        %1905 = vmatprep.subr.mxu0 %v945
        %1906 = vmatpush1.msra.mxu0 %v944
        %1907 = vmatprep.subr.mxu0 %v949
        %1908 = vmatpush1.msra.mxu0 %v948
        %1909 = vmatprep.subr.mxu0 %v953
        %1910 = vmatpush1.msra.mxu0 %v952
        %1911 = vmatprep.subr.mxu0 %v957
        %1912 = vmatpush1.msra.mxu0 %v956
        %1913 = vmatprep.subr.mxu0 %v961
        %1914 = vmatpush1.msra.mxu0 %v960
        %1915 = vmatprep.subr.mxu0 %v965
        %1916 = vmatpush1.msra.mxu0 %v964
        %1917 = vmatprep.subr.mxu0 %v969
        %1918 = vmatpush1.msra.mxu0 %v968
        %1919 = vmatprep.subr.mxu0 %v973
        %1920 = vmatpush1.msra.mxu0 %v972
        %1921 = vmatprep.subr.mxu0 %v977
        %1922 = vmatpush1.msra.mxu0 %v976
        %1923 = vmatprep.subr.mxu0 %v981
        %1924 = vmatpush1.msra.mxu0 %v980
        %1925 = vmatprep.subr.mxu0 %v985
        %1926 = vmatpush1.msra.mxu0 %v984
        %1927 = vmatprep.subr.mxu0 %v989
        %1928 = vmatpush1.msra.mxu0 %v988
        %1929 = vmatprep.subr.mxu0 %v993
        %1930 = vmatpush1.msra.mxu0 %v992
        %1931 = vmatprep.subr.mxu0 %v997
        %1932 = vmatpush1.msra.mxu0 %v996
        %1933 = vmatprep.subr.mxu0 %v1001
        %1934 = vmatpush1.msra.mxu0 %v1000
        %1935 = vmatprep.subr.mxu0 %v1005
        %1936 = vmatpush1.msra.mxu0 %v1004
        %1937 = vmatprep.subr.mxu0 %v1009
        %1938 = vmatpush1.msra.mxu0 %v1008
        %1939 = vmatprep.subr.mxu0 %v1013
        %1940 = vmatpush1.msra.mxu0 %v1012
        %1941 = vmatprep.mubr.f32.mxu0 %v235
        %1942 = vmatmul.mubr.f32.gmra.mrb[0].mxu0 %v234
        %v1943 = vpop.f32.mrb[0].mxu0
        %v1944 = vadd.f32 %v1873, %v1943
        %v1945 = vpop.f32.mrb[0].mxu0
        %v1946 = vadd.f32 %v1875, %v1945
        %1947 = vdwg.mxu0
        %1948 = vmatprep.subr.mxu0 %v1017
        %1949 = vmatpush1.msra.mxu0 %v1016
        %1950 = vmatprep.subr.mxu0 %v1021
        %1951 = vmatpush1.msra.mxu0 %v1020
        %1952 = vmatprep.subr.mxu0 %v1025
        %1953 = vmatpush1.msra.mxu0 %v1024
        %1954 = vmatprep.subr.mxu0 %v1029
        %1955 = vmatpush1.msra.mxu0 %v1028
        %1956 = vmatprep.subr.mxu0 %v1033
        %1957 = vmatpush1.msra.mxu0 %v1032
        %1958 = vmatprep.subr.mxu0 %v1037
        %1959 = vmatpush1.msra.mxu0 %v1036
        %1960 = vmatprep.subr.mxu0 %v1041
        %1961 = vmatpush1.msra.mxu0 %v1040
        %1962 = vmatprep.subr.mxu0 %v1045
        %1963 = vmatpush1.msra.mxu0 %v1044
        %1964 = vmatprep.subr.mxu0 %v1049
        %1965 = vmatpush1.msra.mxu0 %v1048
        %1966 = vmatprep.subr.mxu0 %v1053
        %1967 = vmatpush1.msra.mxu0 %v1052
        %1968 = vmatprep.subr.mxu0 %v1057
        %1969 = vmatpush1.msra.mxu0 %v1056
        %1970 = vmatprep.subr.mxu0 %v1061
        %1971 = vmatpush1.msra.mxu0 %v1060
        %1972 = vmatprep.subr.mxu0 %v1065
        %1973 = vmatpush1.msra.mxu0 %v1064
        %1974 = vmatprep.subr.mxu0 %v1069
        %1975 = vmatpush1.msra.mxu0 %v1068
        %1976 = vmatprep.subr.mxu0 %v1073
        %1977 = vmatpush1.msra.mxu0 %v1072
        %1978 = vmatprep.subr.mxu0 %v1077
        %1979 = vmatpush1.msra.mxu0 %v1076
        %1980 = vmatprep.subr.mxu0 %v1081
        %1981 = vmatpush1.msra.mxu0 %v1080
        %1982 = vmatprep.subr.mxu0 %v1085
        %1983 = vmatpush1.msra.mxu0 %v1084
        %1984 = vmatprep.subr.mxu0 %v1089
        %1985 = vmatpush1.msra.mxu0 %v1088
        %1986 = vmatprep.subr.mxu0 %v1093
        %1987 = vmatpush1.msra.mxu0 %v1092
        %1988 = vmatprep.subr.mxu0 %v1097
        %1989 = vmatpush1.msra.mxu0 %v1096
        %1990 = vmatprep.subr.mxu0 %v1101
        %1991 = vmatpush1.msra.mxu0 %v1100
        %1992 = vmatprep.subr.mxu0 %v1105
        %1993 = vmatpush1.msra.mxu0 %v1104
        %1994 = vmatprep.subr.mxu0 %v1109
        %1995 = vmatpush1.msra.mxu0 %v1108
        %1996 = vmatprep.subr.mxu0 %v1113
        %1997 = vmatpush1.msra.mxu0 %v1112
        %1998 = vmatprep.subr.mxu0 %v1117
        %1999 = vmatpush1.msra.mxu0 %v1116
        %2000 = vmatprep.subr.mxu0 %v1121
        %2001 = vmatpush1.msra.mxu0 %v1120
        %2002 = vmatprep.subr.mxu0 %v1125
        %2003 = vmatpush1.msra.mxu0 %v1124
        %2004 = vmatprep.subr.mxu0 %v1129
        %2005 = vmatpush1.msra.mxu0 %v1128
        %2006 = vmatprep.subr.mxu0 %v1133
        %2007 = vmatpush1.msra.mxu0 %v1132
        %2008 = vmatprep.subr.mxu0 %v1137
        %2009 = vmatpush1.msra.mxu0 %v1136
        %2010 = vmatprep.subr.mxu0 %v1141
        %2011 = vmatpush1.msra.mxu0 %v1140
        %2012 = vmatprep.mubr.f32.mxu0 %v237
        %2013 = vmatmul.mubr.f32.gmra.mrb[0].mxu0 %v236
        %v2014 = vpop.f32.mrb[0].mxu0
        %v2015 = vadd.f32 %v1944, %v2014
        %v2016 = vpop.f32.mrb[0].mxu0
        %v2017 = vadd.f32 %v1946, %v2016
        %2018 = vdwg.mxu0
        %2019 = vmatprep.subr.mxu0 %v1145
        %2020 = vmatpush1.msra.mxu0 %v1144
        %2021 = vmatprep.subr.mxu0 %v1149
        %2022 = vmatpush1.msra.mxu0 %v1148
        %2023 = vmatprep.subr.mxu0 %v1153
        %2024 = vmatpush1.msra.mxu0 %v1152
        %2025 = vmatprep.subr.mxu0 %v1157
        %2026 = vmatpush1.msra.mxu0 %v1156
        %2027 = vmatprep.subr.mxu0 %v1161
        %2028 = vmatpush1.msra.mxu0 %v1160
        %2029 = vmatprep.subr.mxu0 %v1165
        %2030 = vmatpush1.msra.mxu0 %v1164
        %2031 = vmatprep.subr.mxu0 %v1169
        %2032 = vmatpush1.msra.mxu0 %v1168
        %2033 = vmatprep.subr.mxu0 %v1173
        %2034 = vmatpush1.msra.mxu0 %v1172
        %2035 = vmatprep.subr.mxu0 %v1177
        %2036 = vmatpush1.msra.mxu0 %v1176
        %2037 = vmatprep.subr.mxu0 %v1181
        %2038 = vmatpush1.msra.mxu0 %v1180
        %2039 = vmatprep.subr.mxu0 %v1185
        %2040 = vmatpush1.msra.mxu0 %v1184
        %2041 = vmatprep.subr.mxu0 %v1189
        %2042 = vmatpush1.msra.mxu0 %v1188
        %2043 = vmatprep.subr.mxu0 %v1193
        %2044 = vmatpush1.msra.mxu0 %v1192
        %2045 = vmatprep.subr.mxu0 %v1197
        %2046 = vmatpush1.msra.mxu0 %v1196
        %2047 = vmatprep.subr.mxu0 %v1201
        %2048 = vmatpush1.msra.mxu0 %v1200
        %2049 = vmatprep.subr.mxu0 %v1205
        %2050 = vmatpush1.msra.mxu0 %v1204
        %2051 = vmatprep.subr.mxu0 %v1209
        %2052 = vmatpush1.msra.mxu0 %v1208
        %2053 = vmatprep.subr.mxu0 %v1213
        %2054 = vmatpush1.msra.mxu0 %v1212
        %2055 = vmatprep.subr.mxu0 %v1217
        %2056 = vmatpush1.msra.mxu0 %v1216
        %2057 = vmatprep.subr.mxu0 %v1221
        %2058 = vmatpush1.msra.mxu0 %v1220
        %2059 = vmatprep.subr.mxu0 %v1225
        %2060 = vmatpush1.msra.mxu0 %v1224
        %2061 = vmatprep.subr.mxu0 %v1229
        %2062 = vmatpush1.msra.mxu0 %v1228
        %2063 = vmatprep.subr.mxu0 %v1233
        %2064 = vmatpush1.msra.mxu0 %v1232
        %2065 = vmatprep.subr.mxu0 %v1237
        %2066 = vmatpush1.msra.mxu0 %v1236
        %2067 = vmatprep.subr.mxu0 %v1241
        %2068 = vmatpush1.msra.mxu0 %v1240
        %2069 = vmatprep.subr.mxu0 %v1245
        %2070 = vmatpush1.msra.mxu0 %v1244
        %2071 = vmatprep.subr.mxu0 %v1249
        %2072 = vmatpush1.msra.mxu0 %v1248
        %2073 = vmatprep.subr.mxu0 %v1253
        %2074 = vmatpush1.msra.mxu0 %v1252
        %2075 = vmatprep.subr.mxu0 %v1257
        %2076 = vmatpush1.msra.mxu0 %v1256
        %2077 = vmatprep.subr.mxu0 %v1261
        %2078 = vmatpush1.msra.mxu0 %v1260
        %2079 = vmatprep.subr.mxu0 %v1265
        %2080 = vmatpush1.msra.mxu0 %v1264
        %2081 = vmatprep.subr.mxu0 %v1269
        %2082 = vmatpush1.msra.mxu0 %v1268
        %2083 = vmatprep.mubr.f32.mxu0 %v239
        %2084 = vmatmul.mubr.f32.gmra.mrb[0].mxu0 %v238
        %v2085 = vpop.f32.mrb[0].mxu0
        %v2086 = vadd.f32 %v2015, %v2085
        %v2087 = vpop.f32.mrb[0].mxu0
        %v2088 = vadd.f32 %v2017, %v2087
        %2089 = vdwg.mxu0
        %2090 = vmatprep.subr.mxu0 %v1273
        %2091 = vmatpush1.msra.mxu0 %v1272
        %2092 = vmatprep.subr.mxu0 %v1277
        %2093 = vmatpush1.msra.mxu0 %v1276
        %2094 = vmatprep.subr.mxu0 %v1281
        %2095 = vmatpush1.msra.mxu0 %v1280
        %2096 = vmatprep.subr.mxu0 %v1285
        %2097 = vmatpush1.msra.mxu0 %v1284
        %2098 = vmatprep.subr.mxu0 %v1289
        %2099 = vmatpush1.msra.mxu0 %v1288
        %2100 = vmatprep.subr.mxu0 %v1293
        %2101 = vmatpush1.msra.mxu0 %v1292
        %2102 = vmatprep.subr.mxu0 %v1297
        %2103 = vmatpush1.msra.mxu0 %v1296
        %2104 = vmatprep.subr.mxu0 %v1301
        %2105 = vmatpush1.msra.mxu0 %v1300
        %2106 = vmatprep.subr.mxu0 %v1305
        %2107 = vmatpush1.msra.mxu0 %v1304
        %2108 = vmatprep.subr.mxu0 %v1309
        %2109 = vmatpush1.msra.mxu0 %v1308
        %2110 = vmatprep.subr.mxu0 %v1313
        %2111 = vmatpush1.msra.mxu0 %v1312
        %2112 = vmatprep.subr.mxu0 %v1317
        %2113 = vmatpush1.msra.mxu0 %v1316
        %2114 = vmatprep.subr.mxu0 %v1321
        %2115 = vmatpush1.msra.mxu0 %v1320
        %2116 = vmatprep.subr.mxu0 %v1325
        %2117 = vmatpush1.msra.mxu0 %v1324
        %2118 = vmatprep.subr.mxu0 %v1329
        %2119 = vmatpush1.msra.mxu0 %v1328
        %2120 = vmatprep.subr.mxu0 %v1333
        %2121 = vmatpush1.msra.mxu0 %v1332
        %2122 = vmatprep.subr.mxu0 %v1337
        %2123 = vmatpush1.msra.mxu0 %v1336
        %2124 = vmatprep.subr.mxu0 %v1341
        %2125 = vmatpush1.msra.mxu0 %v1340
        %2126 = vmatprep.subr.mxu0 %v1345
        %2127 = vmatpush1.msra.mxu0 %v1344
        %2128 = vmatprep.subr.mxu0 %v1349
        %2129 = vmatpush1.msra.mxu0 %v1348
        %2130 = vmatprep.subr.mxu0 %v1353
        %2131 = vmatpush1.msra.mxu0 %v1352
        %2132 = vmatprep.subr.mxu0 %v1357
        %2133 = vmatpush1.msra.mxu0 %v1356
        %2134 = vmatprep.subr.mxu0 %v1361
        %2135 = vmatpush1.msra.mxu0 %v1360
        %2136 = vmatprep.subr.mxu0 %v1365
        %2137 = vmatpush1.msra.mxu0 %v1364
        %2138 = vmatprep.subr.mxu0 %v1369
        %2139 = vmatpush1.msra.mxu0 %v1368
        %2140 = vmatprep.subr.mxu0 %v1373
        %2141 = vmatpush1.msra.mxu0 %v1372
        %2142 = vmatprep.subr.mxu0 %v1377
        %2143 = vmatpush1.msra.mxu0 %v1376
        %2144 = vmatprep.subr.mxu0 %v1381
        %2145 = vmatpush1.msra.mxu0 %v1380
        %2146 = vmatprep.subr.mxu0 %v1385
        %2147 = vmatpush1.msra.mxu0 %v1384
        %2148 = vmatprep.subr.mxu0 %v1389
        %2149 = vmatpush1.msra.mxu0 %v1388
        %2150 = vmatprep.subr.mxu0 %v1393
        %2151 = vmatpush1.msra.mxu0 %v1392
        %2152 = vmatprep.subr.mxu0 %v1397
        %2153 = vmatpush1.msra.mxu0 %v1396
        %2154 = vmatprep.mubr.f32.mxu0 %v241
        %2155 = vmatmul.mubr.f32.gmra.mrb[0].mxu0 %v240
        %v2156 = vpop.f32.mrb[0].mxu0
        %v2157 = vadd.f32 %v2086, %v2156
        %v2158 = vpop.f32.mrb[0].mxu0
        %v2159 = vadd.f32 %v2088, %v2158
        %2160 = vdwg.mxu0
        %2161 = vmatprep.subr.mxu0 %v1401
        %2162 = vmatpush1.msra.mxu0 %v1400
        %2163 = vmatprep.subr.mxu0 %v1405
        %2164 = vmatpush1.msra.mxu0 %v1404
        %2165 = vmatprep.subr.mxu0 %v1409
        %2166 = vmatpush1.msra.mxu0 %v1408
        %2167 = vmatprep.subr.mxu0 %v1413
        %2168 = vmatpush1.msra.mxu0 %v1412
        %2169 = vmatprep.subr.mxu0 %v1417
        %2170 = vmatpush1.msra.mxu0 %v1416
        %2171 = vmatprep.subr.mxu0 %v1421
        %2172 = vmatpush1.msra.mxu0 %v1420
        %2173 = vmatprep.subr.mxu0 %v1425
        %2174 = vmatpush1.msra.mxu0 %v1424
        %2175 = vmatprep.subr.mxu0 %v1429
        %2176 = vmatpush1.msra.mxu0 %v1428
        %2177 = vmatprep.subr.mxu0 %v1433
        %2178 = vmatpush1.msra.mxu0 %v1432
        %2179 = vmatprep.subr.mxu0 %v1437
        %2180 = vmatpush1.msra.mxu0 %v1436
        %2181 = vmatprep.subr.mxu0 %v1441
        %2182 = vmatpush1.msra.mxu0 %v1440
        %2183 = vmatprep.subr.mxu0 %v1445
        %2184 = vmatpush1.msra.mxu0 %v1444
        %2185 = vmatprep.subr.mxu0 %v1449
        %2186 = vmatpush1.msra.mxu0 %v1448
        %2187 = vmatprep.subr.mxu0 %v1453
        %2188 = vmatpush1.msra.mxu0 %v1452
        %2189 = vmatprep.subr.mxu0 %v1457
        %2190 = vmatpush1.msra.mxu0 %v1456
        %2191 = vmatprep.subr.mxu0 %v1461
        %2192 = vmatpush1.msra.mxu0 %v1460
        %2193 = vmatprep.subr.mxu0 %v1465
        %2194 = vmatpush1.msra.mxu0 %v1464
        %2195 = vmatprep.subr.mxu0 %v1469
        %2196 = vmatpush1.msra.mxu0 %v1468
        %2197 = vmatprep.subr.mxu0 %v1473
        %2198 = vmatpush1.msra.mxu0 %v1472
        %2199 = vmatprep.subr.mxu0 %v1477
        %2200 = vmatpush1.msra.mxu0 %v1476
        %2201 = vmatprep.subr.mxu0 %v1481
        %2202 = vmatpush1.msra.mxu0 %v1480
        %2203 = vmatprep.subr.mxu0 %v1485
        %2204 = vmatpush1.msra.mxu0 %v1484
        %2205 = vmatprep.subr.mxu0 %v1489
        %2206 = vmatpush1.msra.mxu0 %v1488
        %2207 = vmatprep.subr.mxu0 %v1493
        %2208 = vmatpush1.msra.mxu0 %v1492
        %2209 = vmatprep.subr.mxu0 %v1497
        %2210 = vmatpush1.msra.mxu0 %v1496
        %2211 = vmatprep.subr.mxu0 %v1501
        %2212 = vmatpush1.msra.mxu0 %v1500
        %2213 = vmatprep.subr.mxu0 %v1505
        %2214 = vmatpush1.msra.mxu0 %v1504
        %2215 = vmatprep.subr.mxu0 %v1509
        %2216 = vmatpush1.msra.mxu0 %v1508
        %2217 = vmatprep.subr.mxu0 %v1513
        %2218 = vmatpush1.msra.mxu0 %v1512
        %2219 = vmatprep.subr.mxu0 %v1517
        %2220 = vmatpush1.msra.mxu0 %v1516
        %2221 = vmatprep.subr.mxu0 %v1521
        %2222 = vmatpush1.msra.mxu0 %v1520
        %2223 = vmatprep.subr.mxu0 %v1525
        %2224 = vmatpush1.msra.mxu0 %v1524
        %2225 = vmatprep.mubr.f32.mxu0 %v243
        %2226 = vmatmul.mubr.f32.gmra.mrb[0].mxu0 %v242
        %v2227 = vpop.f32.mrb[0].mxu0
        %v2228 = vadd.f32 %v2157, %v2227
        %v2229 = vpop.f32.mrb[0].mxu0
        %v2230 = vadd.f32 %v2159, %v2229
        %2231 = vdwg.mxu0
        %2232 = vmatprep.subr.mxu0 %v1529
        %2233 = vmatpush1.msra.mxu0 %v1528
        %2234 = vmatprep.subr.mxu0 %v1533
        %2235 = vmatpush1.msra.mxu0 %v1532
        %2236 = vmatprep.subr.mxu0 %v1537
        %2237 = vmatpush1.msra.mxu0 %v1536
        %2238 = vmatprep.subr.mxu0 %v1541
        %2239 = vmatpush1.msra.mxu0 %v1540
        %2240 = vmatprep.subr.mxu0 %v1545
        %2241 = vmatpush1.msra.mxu0 %v1544
        %2242 = vmatprep.subr.mxu0 %v1549
        %2243 = vmatpush1.msra.mxu0 %v1548
        %2244 = vmatprep.subr.mxu0 %v1553
        %2245 = vmatpush1.msra.mxu0 %v1552
        %2246 = vmatprep.subr.mxu0 %v1557
        %2247 = vmatpush1.msra.mxu0 %v1556
        %2248 = vmatprep.subr.mxu0 %v1561
        %2249 = vmatpush1.msra.mxu0 %v1560
        %2250 = vmatprep.subr.mxu0 %v1565
        %2251 = vmatpush1.msra.mxu0 %v1564
        %2252 = vmatprep.subr.mxu0 %v1569
        %2253 = vmatpush1.msra.mxu0 %v1568
        %2254 = vmatprep.subr.mxu0 %v1573
        %2255 = vmatpush1.msra.mxu0 %v1572
        %2256 = vmatprep.subr.mxu0 %v1577
        %2257 = vmatpush1.msra.mxu0 %v1576
        %2258 = vmatprep.subr.mxu0 %v1581
        %2259 = vmatpush1.msra.mxu0 %v1580
        %2260 = vmatprep.subr.mxu0 %v1585
        %2261 = vmatpush1.msra.mxu0 %v1584
        %2262 = vmatprep.subr.mxu0 %v1589
        %2263 = vmatpush1.msra.mxu0 %v1588
        %2264 = vmatprep.subr.mxu0 %v1593
        %2265 = vmatpush1.msra.mxu0 %v1592
        %2266 = vmatprep.subr.mxu0 %v1597
        %2267 = vmatpush1.msra.mxu0 %v1596
        %2268 = vmatprep.subr.mxu0 %v1601
        %2269 = vmatpush1.msra.mxu0 %v1600
        %2270 = vmatprep.subr.mxu0 %v1605
        %2271 = vmatpush1.msra.mxu0 %v1604
        %2272 = vmatprep.subr.mxu0 %v1609
        %2273 = vmatpush1.msra.mxu0 %v1608
        %2274 = vmatprep.subr.mxu0 %v1613
        %2275 = vmatpush1.msra.mxu0 %v1612
        %2276 = vmatprep.subr.mxu0 %v1617
        %2277 = vmatpush1.msra.mxu0 %v1616
        %2278 = vmatprep.subr.mxu0 %v1621
        %2279 = vmatpush1.msra.mxu0 %v1620
        %2280 = vmatprep.subr.mxu0 %v1625
        %2281 = vmatpush1.msra.mxu0 %v1624
        %2282 = vmatprep.subr.mxu0 %v1629
        %2283 = vmatpush1.msra.mxu0 %v1628
        %2284 = vmatprep.subr.mxu0 %v1633
        %2285 = vmatpush1.msra.mxu0 %v1632
        %2286 = vmatprep.subr.mxu0 %v1637
        %2287 = vmatpush1.msra.mxu0 %v1636
        %2288 = vmatprep.subr.mxu0 %v1641
        %2289 = vmatpush1.msra.mxu0 %v1640
        %2290 = vmatprep.subr.mxu0 %v1645
        %2291 = vmatpush1.msra.mxu0 %v1644
        %2292 = vmatprep.subr.mxu0 %v1649
        %2293 = vmatpush1.msra.mxu0 %v1648
        %2294 = vmatprep.subr.mxu0 %v1653
        %2295 = vmatpush1.msra.mxu0 %v1652
        %2296 = vmatprep.mubr.f32.mxu0 %v245
        %2297 = vmatmul.mubr.f32.gmra.mrb[0].mxu0 %v244
        %v2298 = vpop.f32.mrb[0].mxu0
        %v2299 = vadd.f32 %v2228, %v2298
        %v2300 = vpop.f32.mrb[0].mxu0
        %v2301 = vadd.f32 %v2230, %v2300
        %2302 = vdwg.mxu0
        %2303 = vmatprep.subr.mxu0 %v1657
        %2304 = vmatpush1.msra.mxu0 %v1656
        %2305 = vmatprep.subr.mxu0 %v1661
        %2306 = vmatpush1.msra.mxu0 %v1660
        %2307 = vmatprep.subr.mxu0 %v1665
        %2308 = vmatpush1.msra.mxu0 %v1664
        %2309 = vmatprep.subr.mxu0 %v1669
        %2310 = vmatpush1.msra.mxu0 %v1668
        %2311 = vmatprep.subr.mxu0 %v1673
        %2312 = vmatpush1.msra.mxu0 %v1672
        %2313 = vmatprep.subr.mxu0 %v1677
        %2314 = vmatpush1.msra.mxu0 %v1676
        %2315 = vmatprep.subr.mxu0 %v1681
        %2316 = vmatpush1.msra.mxu0 %v1680
        %2317 = vmatprep.subr.mxu0 %v1685
        %2318 = vmatpush1.msra.mxu0 %v1684
        %2319 = vmatprep.subr.mxu0 %v1689
        %2320 = vmatpush1.msra.mxu0 %v1688
        %2321 = vmatprep.subr.mxu0 %v1693
        %2322 = vmatpush1.msra.mxu0 %v1692
        %2323 = vmatprep.subr.mxu0 %v1697
        %2324 = vmatpush1.msra.mxu0 %v1696
        %2325 = vmatprep.subr.mxu0 %v1701
        %2326 = vmatpush1.msra.mxu0 %v1700
        %2327 = vmatprep.subr.mxu0 %v1705
        %2328 = vmatpush1.msra.mxu0 %v1704
        %2329 = vmatprep.subr.mxu0 %v1709
        %2330 = vmatpush1.msra.mxu0 %v1708
        %2331 = vmatprep.subr.mxu0 %v1713
        %2332 = vmatpush1.msra.mxu0 %v1712
        %2333 = vmatprep.subr.mxu0 %v1717
        %2334 = vmatpush1.msra.mxu0 %v1716
        %2335 = vmatprep.subr.mxu0 %v1721
        %2336 = vmatpush1.msra.mxu0 %v1720
        %2337 = vmatprep.subr.mxu0 %v1725
        %2338 = vmatpush1.msra.mxu0 %v1724
        %2339 = vmatprep.subr.mxu0 %v1729
        %2340 = vmatpush1.msra.mxu0 %v1728
        %2341 = vmatprep.subr.mxu0 %v1733
        %2342 = vmatpush1.msra.mxu0 %v1732
        %2343 = vmatprep.subr.mxu0 %v1737
        %2344 = vmatpush1.msra.mxu0 %v1736
        %2345 = vmatprep.subr.mxu0 %v1741
        %2346 = vmatpush1.msra.mxu0 %v1740
        %2347 = vmatprep.subr.mxu0 %v1745
        %2348 = vmatpush1.msra.mxu0 %v1744
        %2349 = vmatprep.subr.mxu0 %v1749
        %2350 = vmatpush1.msra.mxu0 %v1748
        %2351 = vmatprep.subr.mxu0 %v1753
        %2352 = vmatpush1.msra.mxu0 %v1752
        %2353 = vmatprep.subr.mxu0 %v1757
        %2354 = vmatpush1.msra.mxu0 %v1756
        %2355 = vmatprep.subr.mxu0 %v1761
        %2356 = vmatpush1.msra.mxu0 %v1760
        %2357 = vmatprep.subr.mxu0 %v1765
        %2358 = vmatpush1.msra.mxu0 %v1764
        %2359 = vmatprep.subr.mxu0 %v1769
        %2360 = vmatpush1.msra.mxu0 %v1768
        %2361 = vmatprep.subr.mxu0 %v1773
        %2362 = vmatpush1.msra.mxu0 %v1772
        %2363 = vmatprep.subr.mxu0 %v1777
        %2364 = vmatpush1.msra.mxu0 %v1776
        %2365 = vmatprep.subr.mxu0 %v1781
        %2366 = vmatpush1.msra.mxu0 %v1780
        %2367 = vmatprep.mubr.f32.mxu0 %v247
        %2368 = vmatmul.mubr.f32.gmra.mrb[0].mxu0 %v246
        %v2369 = vpop.f32.mrb[0].mxu0
        %v2370 = vadd.f32 %v2299, %v2369
        %v2371 = vpop.f32.mrb[0].mxu0
        %v2372 = vadd.f32 %v2301, %v2371
        %2373 = vdwg.mxu0
        %2374 = vmatprep.subr.mxu0 %v763
        %2375 = vmatpush1.msra.mxu0 %v762
        %2376 = vmatprep.subr.mxu0 %v767
        %2377 = vmatpush1.msra.mxu0 %v766
        %2378 = vmatprep.subr.mxu0 %v771
        %2379 = vmatpush1.msra.mxu0 %v770
        %2380 = vmatprep.subr.mxu0 %v775
        %2381 = vmatpush1.msra.mxu0 %v774
        %2382 = vmatprep.subr.mxu0 %v779
        %2383 = vmatpush1.msra.mxu0 %v778
        %2384 = vmatprep.subr.mxu0 %v783
        %2385 = vmatpush1.msra.mxu0 %v782
        %2386 = vmatprep.subr.mxu0 %v787
        %2387 = vmatpush1.msra.mxu0 %v786
        %2388 = vmatprep.subr.mxu0 %v791
        %2389 = vmatpush1.msra.mxu0 %v790
        %2390 = vmatprep.subr.mxu0 %v795
        %2391 = vmatpush1.msra.mxu0 %v794
        %2392 = vmatprep.subr.mxu0 %v799
        %2393 = vmatpush1.msra.mxu0 %v798
        %2394 = vmatprep.subr.mxu0 %v803
        %2395 = vmatpush1.msra.mxu0 %v802
        %2396 = vmatprep.subr.mxu0 %v807
        %2397 = vmatpush1.msra.mxu0 %v806
        %2398 = vmatprep.subr.mxu0 %v811
        %2399 = vmatpush1.msra.mxu0 %v810
        %2400 = vmatprep.subr.mxu0 %v815
        %2401 = vmatpush1.msra.mxu0 %v814
        %2402 = vmatprep.subr.mxu0 %v819
        %2403 = vmatpush1.msra.mxu0 %v818
        %2404 = vmatprep.subr.mxu0 %v823
        %2405 = vmatpush1.msra.mxu0 %v822
        %2406 = vmatprep.subr.mxu0 %v827
        %2407 = vmatpush1.msra.mxu0 %v826
        %2408 = vmatprep.subr.mxu0 %v831
        %2409 = vmatpush1.msra.mxu0 %v830
        %2410 = vmatprep.subr.mxu0 %v835
        %2411 = vmatpush1.msra.mxu0 %v834
        %2412 = vmatprep.subr.mxu0 %v839
        %2413 = vmatpush1.msra.mxu0 %v838
        %2414 = vmatprep.subr.mxu0 %v843
        %2415 = vmatpush1.msra.mxu0 %v842
        %2416 = vmatprep.subr.mxu0 %v847
        %2417 = vmatpush1.msra.mxu0 %v846
        %2418 = vmatprep.subr.mxu0 %v851
        %2419 = vmatpush1.msra.mxu0 %v850
        %2420 = vmatprep.subr.mxu0 %v855
        %2421 = vmatpush1.msra.mxu0 %v854
        %2422 = vmatprep.subr.mxu0 %v859
        %2423 = vmatpush1.msra.mxu0 %v858
        %2424 = vmatprep.subr.mxu0 %v863
        %2425 = vmatpush1.msra.mxu0 %v862
        %2426 = vmatprep.subr.mxu0 %v867
        %2427 = vmatpush1.msra.mxu0 %v866
        %2428 = vmatprep.subr.mxu0 %v871
        %2429 = vmatpush1.msra.mxu0 %v870
        %2430 = vmatprep.subr.mxu0 %v875
        %2431 = vmatpush1.msra.mxu0 %v874
        %2432 = vmatprep.subr.mxu0 %v879
        %2433 = vmatpush1.msra.mxu0 %v878
        %2434 = vmatprep.subr.mxu0 %v883
        %2435 = vmatpush1.msra.mxu0 %v882
        %2436 = vmatprep.subr.mxu0 %v887
        %2437 = vmatpush1.msra.mxu0 %v886
        %2438 = vmatprep.mubr.f32.mxu0 %v233
        %2439 = vmatmul.mubr.f32.gmra.mrb[0].mxu0 %v232
        %v2440 = vpop.f32.mrb[0].mxu0
        %v2441 = vadd.f32 %v1797, %v2440
        %v2442 = vpop.f32.mrb[0].mxu0
        %v2443 = vadd.f32 %v1801, %v2442
        %2444 = vdwg.mxu0
        %2445 = vmatprep.subr.mxu0 %v891
        %2446 = vmatpush1.msra.mxu0 %v890
        %2447 = vmatprep.subr.mxu0 %v895
        %2448 = vmatpush1.msra.mxu0 %v894
        %2449 = vmatprep.subr.mxu0 %v899
        %2450 = vmatpush1.msra.mxu0 %v898
        %2451 = vmatprep.subr.mxu0 %v903
        %2452 = vmatpush1.msra.mxu0 %v902
        %2453 = vmatprep.subr.mxu0 %v907
        %2454 = vmatpush1.msra.mxu0 %v906
        %2455 = vmatprep.subr.mxu0 %v911
        %2456 = vmatpush1.msra.mxu0 %v910
        %2457 = vmatprep.subr.mxu0 %v915
        %2458 = vmatpush1.msra.mxu0 %v914
        %2459 = vmatprep.subr.mxu0 %v919
        %2460 = vmatpush1.msra.mxu0 %v918
        %2461 = vmatprep.subr.mxu0 %v923
        %2462 = vmatpush1.msra.mxu0 %v922
        %2463 = vmatprep.subr.mxu0 %v927
        %2464 = vmatpush1.msra.mxu0 %v926
        %2465 = vmatprep.subr.mxu0 %v931
        %2466 = vmatpush1.msra.mxu0 %v930
        %2467 = vmatprep.subr.mxu0 %v935
        %2468 = vmatpush1.msra.mxu0 %v934
        %2469 = vmatprep.subr.mxu0 %v939
        %2470 = vmatpush1.msra.mxu0 %v938
        %2471 = vmatprep.subr.mxu0 %v943
        %2472 = vmatpush1.msra.mxu0 %v942
        %2473 = vmatprep.subr.mxu0 %v947
        %2474 = vmatpush1.msra.mxu0 %v946
        %2475 = vmatprep.subr.mxu0 %v951
        %2476 = vmatpush1.msra.mxu0 %v950
        %2477 = vmatprep.subr.mxu0 %v955
        %2478 = vmatpush1.msra.mxu0 %v954
        %2479 = vmatprep.subr.mxu0 %v959
        %2480 = vmatpush1.msra.mxu0 %v958
        %2481 = vmatprep.subr.mxu0 %v963
        %2482 = vmatpush1.msra.mxu0 %v962
        %2483 = vmatprep.subr.mxu0 %v967
        %2484 = vmatpush1.msra.mxu0 %v966
        %2485 = vmatprep.subr.mxu0 %v971
        %2486 = vmatpush1.msra.mxu0 %v970
        %2487 = vmatprep.subr.mxu0 %v975
        %2488 = vmatpush1.msra.mxu0 %v974
        %2489 = vmatprep.subr.mxu0 %v979
        %2490 = vmatpush1.msra.mxu0 %v978
        %2491 = vmatprep.subr.mxu0 %v983
        %2492 = vmatpush1.msra.mxu0 %v982
        %2493 = vmatprep.subr.mxu0 %v987
        %2494 = vmatpush1.msra.mxu0 %v986
        %2495 = vmatprep.subr.mxu0 %v991
        %2496 = vmatpush1.msra.mxu0 %v990
        %2497 = vmatprep.subr.mxu0 %v995
        %2498 = vmatpush1.msra.mxu0 %v994
        %2499 = vmatprep.subr.mxu0 %v999
        %2500 = vmatpush1.msra.mxu0 %v998
        %2501 = vmatprep.subr.mxu0 %v1003
        %2502 = vmatpush1.msra.mxu0 %v1002
        %2503 = vmatprep.subr.mxu0 %v1007
        %2504 = vmatpush1.msra.mxu0 %v1006
        %2505 = vmatprep.subr.mxu0 %v1011
        %2506 = vmatpush1.msra.mxu0 %v1010
        %2507 = vmatprep.subr.mxu0 %v1015
        %2508 = vmatpush1.msra.mxu0 %v1014
        %2509 = vmatprep.mubr.f32.mxu0 %v235
        %2510 = vmatmul.mubr.f32.gmra.mrb[0].mxu0 %v234
        %v2511 = vpop.f32.mrb[0].mxu0
        %v2512 = vadd.f32 %v2441, %v2511
        %v2513 = vpop.f32.mrb[0].mxu0
        %v2514 = vadd.f32 %v2443, %v2513
        %2515 = vdwg.mxu0
        %2516 = vmatprep.subr.mxu0 %v1019
        %2517 = vmatpush1.msra.mxu0 %v1018
        %2518 = vmatprep.subr.mxu0 %v1023
        %2519 = vmatpush1.msra.mxu0 %v1022
        %2520 = vmatprep.subr.mxu0 %v1027
        %2521 = vmatpush1.msra.mxu0 %v1026
        %2522 = vmatprep.subr.mxu0 %v1031
        %2523 = vmatpush1.msra.mxu0 %v1030
        %2524 = vmatprep.subr.mxu0 %v1035
        %2525 = vmatpush1.msra.mxu0 %v1034
        %2526 = vmatprep.subr.mxu0 %v1039
        %2527 = vmatpush1.msra.mxu0 %v1038
        %2528 = vmatprep.subr.mxu0 %v1043
        %2529 = vmatpush1.msra.mxu0 %v1042
        %2530 = vmatprep.subr.mxu0 %v1047
        %2531 = vmatpush1.msra.mxu0 %v1046
        %2532 = vmatprep.subr.mxu0 %v1051
        %2533 = vmatpush1.msra.mxu0 %v1050
        %2534 = vmatprep.subr.mxu0 %v1055
        %2535 = vmatpush1.msra.mxu0 %v1054
        %2536 = vmatprep.subr.mxu0 %v1059
        %2537 = vmatpush1.msra.mxu0 %v1058
        %2538 = vmatprep.subr.mxu0 %v1063
        %2539 = vmatpush1.msra.mxu0 %v1062
        %2540 = vmatprep.subr.mxu0 %v1067
        %2541 = vmatpush1.msra.mxu0 %v1066
        %2542 = vmatprep.subr.mxu0 %v1071
        %2543 = vmatpush1.msra.mxu0 %v1070
        %2544 = vmatprep.subr.mxu0 %v1075
        %2545 = vmatpush1.msra.mxu0 %v1074
        %2546 = vmatprep.subr.mxu0 %v1079
        %2547 = vmatpush1.msra.mxu0 %v1078
        %2548 = vmatprep.subr.mxu0 %v1083
        %2549 = vmatpush1.msra.mxu0 %v1082
        %2550 = vmatprep.subr.mxu0 %v1087
        %2551 = vmatpush1.msra.mxu0 %v1086
        %2552 = vmatprep.subr.mxu0 %v1091
        %2553 = vmatpush1.msra.mxu0 %v1090
        %2554 = vmatprep.subr.mxu0 %v1095
        %2555 = vmatpush1.msra.mxu0 %v1094
        %2556 = vmatprep.subr.mxu0 %v1099
        %2557 = vmatpush1.msra.mxu0 %v1098
        %2558 = vmatprep.subr.mxu0 %v1103
        %2559 = vmatpush1.msra.mxu0 %v1102
        %2560 = vmatprep.subr.mxu0 %v1107
        %2561 = vmatpush1.msra.mxu0 %v1106
        %2562 = vmatprep.subr.mxu0 %v1111
        %2563 = vmatpush1.msra.mxu0 %v1110
        %2564 = vmatprep.subr.mxu0 %v1115
        %2565 = vmatpush1.msra.mxu0 %v1114
        %2566 = vmatprep.subr.mxu0 %v1119
        %2567 = vmatpush1.msra.mxu0 %v1118
        %2568 = vmatprep.subr.mxu0 %v1123
        %2569 = vmatpush1.msra.mxu0 %v1122
        %2570 = vmatprep.subr.mxu0 %v1127
        %2571 = vmatpush1.msra.mxu0 %v1126
        %2572 = vmatprep.subr.mxu0 %v1131
        %2573 = vmatpush1.msra.mxu0 %v1130
        %2574 = vmatprep.subr.mxu0 %v1135
        %2575 = vmatpush1.msra.mxu0 %v1134
        %2576 = vmatprep.subr.mxu0 %v1139
        %2577 = vmatpush1.msra.mxu0 %v1138
        %2578 = vmatprep.subr.mxu0 %v1143
        %2579 = vmatpush1.msra.mxu0 %v1142
        %2580 = vmatprep.mubr.f32.mxu0 %v237
        %2581 = vmatmul.mubr.f32.gmra.mrb[0].mxu0 %v236
        %v2582 = vpop.f32.mrb[0].mxu0
        %v2583 = vadd.f32 %v2512, %v2582
        %v2584 = vpop.f32.mrb[0].mxu0
        %v2585 = vadd.f32 %v2514, %v2584
        %2586 = vdwg.mxu0
        %2587 = vmatprep.subr.mxu0 %v1147
        %2588 = vmatpush1.msra.mxu0 %v1146
        %2589 = vmatprep.subr.mxu0 %v1151
        %2590 = vmatpush1.msra.mxu0 %v1150
        %2591 = vmatprep.subr.mxu0 %v1155
        %2592 = vmatpush1.msra.mxu0 %v1154
        %2593 = vmatprep.subr.mxu0 %v1159
        %2594 = vmatpush1.msra.mxu0 %v1158
        %2595 = vmatprep.subr.mxu0 %v1163
        %2596 = vmatpush1.msra.mxu0 %v1162
        %2597 = vmatprep.subr.mxu0 %v1167
        %2598 = vmatpush1.msra.mxu0 %v1166
        %2599 = vmatprep.subr.mxu0 %v1171
        %2600 = vmatpush1.msra.mxu0 %v1170
        %2601 = vmatprep.subr.mxu0 %v1175
        %2602 = vmatpush1.msra.mxu0 %v1174
        %2603 = vmatprep.subr.mxu0 %v1179
        %2604 = vmatpush1.msra.mxu0 %v1178
        %2605 = vmatprep.subr.mxu0 %v1183
        %2606 = vmatpush1.msra.mxu0 %v1182
        %2607 = vmatprep.subr.mxu0 %v1187
        %2608 = vmatpush1.msra.mxu0 %v1186
        %2609 = vmatprep.subr.mxu0 %v1191
        %2610 = vmatpush1.msra.mxu0 %v1190
        %2611 = vmatprep.subr.mxu0 %v1195
        %2612 = vmatpush1.msra.mxu0 %v1194
        %2613 = vmatprep.subr.mxu0 %v1199
        %2614 = vmatpush1.msra.mxu0 %v1198
        %2615 = vmatprep.subr.mxu0 %v1203
        %2616 = vmatpush1.msra.mxu0 %v1202
        %2617 = vmatprep.subr.mxu0 %v1207
        %2618 = vmatpush1.msra.mxu0 %v1206
        %2619 = vmatprep.subr.mxu0 %v1211
        %2620 = vmatpush1.msra.mxu0 %v1210
        %2621 = vmatprep.subr.mxu0 %v1215
        %2622 = vmatpush1.msra.mxu0 %v1214
        %2623 = vmatprep.subr.mxu0 %v1219
        %2624 = vmatpush1.msra.mxu0 %v1218
        %2625 = vmatprep.subr.mxu0 %v1223
        %2626 = vmatpush1.msra.mxu0 %v1222
        %2627 = vmatprep.subr.mxu0 %v1227
        %2628 = vmatpush1.msra.mxu0 %v1226
        %2629 = vmatprep.subr.mxu0 %v1231
        %2630 = vmatpush1.msra.mxu0 %v1230
        %2631 = vmatprep.subr.mxu0 %v1235
        %2632 = vmatpush1.msra.mxu0 %v1234
        %2633 = vmatprep.subr.mxu0 %v1239
        %2634 = vmatpush1.msra.mxu0 %v1238
        %2635 = vmatprep.subr.mxu0 %v1243
        %2636 = vmatpush1.msra.mxu0 %v1242
        %2637 = vmatprep.subr.mxu0 %v1247
        %2638 = vmatpush1.msra.mxu0 %v1246
        %2639 = vmatprep.subr.mxu0 %v1251
        %2640 = vmatpush1.msra.mxu0 %v1250
        %2641 = vmatprep.subr.mxu0 %v1255
        %2642 = vmatpush1.msra.mxu0 %v1254
        %2643 = vmatprep.subr.mxu0 %v1259
        %2644 = vmatpush1.msra.mxu0 %v1258
        %2645 = vmatprep.subr.mxu0 %v1263
        %2646 = vmatpush1.msra.mxu0 %v1262
        %2647 = vmatprep.subr.mxu0 %v1267
        %2648 = vmatpush1.msra.mxu0 %v1266
        %2649 = vmatprep.subr.mxu0 %v1271
        %2650 = vmatpush1.msra.mxu0 %v1270
        %2651 = vmatprep.mubr.f32.mxu0 %v239
        %2652 = vmatmul.mubr.f32.gmra.mrb[0].mxu0 %v238
        %v2653 = vpop.f32.mrb[0].mxu0
        %v2654 = vadd.f32 %v2583, %v2653
        %v2655 = vpop.f32.mrb[0].mxu0
        %v2656 = vadd.f32 %v2585, %v2655
        %2657 = vdwg.mxu0
        %2658 = vmatprep.subr.mxu0 %v1275
        %2659 = vmatpush1.msra.mxu0 %v1274
        %2660 = vmatprep.subr.mxu0 %v1279
        %2661 = vmatpush1.msra.mxu0 %v1278
        %2662 = vmatprep.subr.mxu0 %v1283
        %2663 = vmatpush1.msra.mxu0 %v1282
        %2664 = vmatprep.subr.mxu0 %v1287
        %2665 = vmatpush1.msra.mxu0 %v1286
        %2666 = vmatprep.subr.mxu0 %v1291
        %2667 = vmatpush1.msra.mxu0 %v1290
        %2668 = vmatprep.subr.mxu0 %v1295
        %2669 = vmatpush1.msra.mxu0 %v1294
        %2670 = vmatprep.subr.mxu0 %v1299
        %2671 = vmatpush1.msra.mxu0 %v1298
        %2672 = vmatprep.subr.mxu0 %v1303
        %2673 = vmatpush1.msra.mxu0 %v1302
        %2674 = vmatprep.subr.mxu0 %v1307
        %2675 = vmatpush1.msra.mxu0 %v1306
        %2676 = vmatprep.subr.mxu0 %v1311
        %2677 = vmatpush1.msra.mxu0 %v1310
        %2678 = vmatprep.subr.mxu0 %v1315
        %2679 = vmatpush1.msra.mxu0 %v1314
        %2680 = vmatprep.subr.mxu0 %v1319
        %2681 = vmatpush1.msra.mxu0 %v1318
        %2682 = vmatprep.subr.mxu0 %v1323
        %2683 = vmatpush1.msra.mxu0 %v1322
        %2684 = vmatprep.subr.mxu0 %v1327
        %2685 = vmatpush1.msra.mxu0 %v1326
        %2686 = vmatprep.subr.mxu0 %v1331
        %2687 = vmatpush1.msra.mxu0 %v1330
        %2688 = vmatprep.subr.mxu0 %v1335
        %2689 = vmatpush1.msra.mxu0 %v1334
        %2690 = vmatprep.subr.mxu0 %v1339
        %2691 = vmatpush1.msra.mxu0 %v1338
        %2692 = vmatprep.subr.mxu0 %v1343
        %2693 = vmatpush1.msra.mxu0 %v1342
        %2694 = vmatprep.subr.mxu0 %v1347
        %2695 = vmatpush1.msra.mxu0 %v1346
        %2696 = vmatprep.subr.mxu0 %v1351
        %2697 = vmatpush1.msra.mxu0 %v1350
        %2698 = vmatprep.subr.mxu0 %v1355
        %2699 = vmatpush1.msra.mxu0 %v1354
        %2700 = vmatprep.subr.mxu0 %v1359
        %2701 = vmatpush1.msra.mxu0 %v1358
        %2702 = vmatprep.subr.mxu0 %v1363
        %2703 = vmatpush1.msra.mxu0 %v1362
        %2704 = vmatprep.subr.mxu0 %v1367
        %2705 = vmatpush1.msra.mxu0 %v1366
        %2706 = vmatprep.subr.mxu0 %v1371
        %2707 = vmatpush1.msra.mxu0 %v1370
        %2708 = vmatprep.subr.mxu0 %v1375
        %2709 = vmatpush1.msra.mxu0 %v1374
        %2710 = vmatprep.subr.mxu0 %v1379
        %2711 = vmatpush1.msra.mxu0 %v1378
        %2712 = vmatprep.subr.mxu0 %v1383
        %2713 = vmatpush1.msra.mxu0 %v1382
        %2714 = vmatprep.subr.mxu0 %v1387
        %2715 = vmatpush1.msra.mxu0 %v1386
        %2716 = vmatprep.subr.mxu0 %v1391
        %2717 = vmatpush1.msra.mxu0 %v1390
        %2718 = vmatprep.subr.mxu0 %v1395
        %2719 = vmatpush1.msra.mxu0 %v1394
        %2720 = vmatprep.subr.mxu0 %v1399
        %2721 = vmatpush1.msra.mxu0 %v1398
        %2722 = vmatprep.mubr.f32.mxu0 %v241
        %2723 = vmatmul.mubr.f32.gmra.mrb[0].mxu0 %v240
        %v2724 = vpop.f32.mrb[0].mxu0
        %v2725 = vadd.f32 %v2654, %v2724
        %v2726 = vpop.f32.mrb[0].mxu0
        %v2727 = vadd.f32 %v2656, %v2726
        %2728 = vdwg.mxu0
        %2729 = vmatprep.subr.mxu0 %v1403
        %2730 = vmatpush1.msra.mxu0 %v1402
        %2731 = vmatprep.subr.mxu0 %v1407
        %2732 = vmatpush1.msra.mxu0 %v1406
        %2733 = vmatprep.subr.mxu0 %v1411
        %2734 = vmatpush1.msra.mxu0 %v1410
        %2735 = vmatprep.subr.mxu0 %v1415
        %2736 = vmatpush1.msra.mxu0 %v1414
        %2737 = vmatprep.subr.mxu0 %v1419
        %2738 = vmatpush1.msra.mxu0 %v1418
        %2739 = vmatprep.subr.mxu0 %v1423
        %2740 = vmatpush1.msra.mxu0 %v1422
        %2741 = vmatprep.subr.mxu0 %v1427
        %2742 = vmatpush1.msra.mxu0 %v1426
        %2743 = vmatprep.subr.mxu0 %v1431
        %2744 = vmatpush1.msra.mxu0 %v1430
        %2745 = vmatprep.subr.mxu0 %v1435
        %2746 = vmatpush1.msra.mxu0 %v1434
        %2747 = vmatprep.subr.mxu0 %v1439
        %2748 = vmatpush1.msra.mxu0 %v1438
        %2749 = vmatprep.subr.mxu0 %v1443
        %2750 = vmatpush1.msra.mxu0 %v1442
        %2751 = vmatprep.subr.mxu0 %v1447
        %2752 = vmatpush1.msra.mxu0 %v1446
        %2753 = vmatprep.subr.mxu0 %v1451
        %2754 = vmatpush1.msra.mxu0 %v1450
        %2755 = vmatprep.subr.mxu0 %v1455
        %2756 = vmatpush1.msra.mxu0 %v1454
        %2757 = vmatprep.subr.mxu0 %v1459
        %2758 = vmatpush1.msra.mxu0 %v1458
        %2759 = vmatprep.subr.mxu0 %v1463
        %2760 = vmatpush1.msra.mxu0 %v1462
        %2761 = vmatprep.subr.mxu0 %v1467
        %2762 = vmatpush1.msra.mxu0 %v1466
        %2763 = vmatprep.subr.mxu0 %v1471
        %2764 = vmatpush1.msra.mxu0 %v1470
        %2765 = vmatprep.subr.mxu0 %v1475
        %2766 = vmatpush1.msra.mxu0 %v1474
        %2767 = vmatprep.subr.mxu0 %v1479
        %2768 = vmatpush1.msra.mxu0 %v1478
        %2769 = vmatprep.subr.mxu0 %v1483
        %2770 = vmatpush1.msra.mxu0 %v1482
        %2771 = vmatprep.subr.mxu0 %v1487
        %2772 = vmatpush1.msra.mxu0 %v1486
        %2773 = vmatprep.subr.mxu0 %v1491
        %2774 = vmatpush1.msra.mxu0 %v1490
        %2775 = vmatprep.subr.mxu0 %v1495
        %2776 = vmatpush1.msra.mxu0 %v1494
        %2777 = vmatprep.subr.mxu0 %v1499
        %2778 = vmatpush1.msra.mxu0 %v1498
        %2779 = vmatprep.subr.mxu0 %v1503
        %2780 = vmatpush1.msra.mxu0 %v1502
        %2781 = vmatprep.subr.mxu0 %v1507
        %2782 = vmatpush1.msra.mxu0 %v1506
        %2783 = vmatprep.subr.mxu0 %v1511
        %2784 = vmatpush1.msra.mxu0 %v1510
        %2785 = vmatprep.subr.mxu0 %v1515
        %2786 = vmatpush1.msra.mxu0 %v1514
        %2787 = vmatprep.subr.mxu0 %v1519
        %2788 = vmatpush1.msra.mxu0 %v1518
        %2789 = vmatprep.subr.mxu0 %v1523
        %2790 = vmatpush1.msra.mxu0 %v1522
        %2791 = vmatprep.subr.mxu0 %v1527
        %2792 = vmatpush1.msra.mxu0 %v1526
        %2793 = vmatprep.mubr.f32.mxu0 %v243
        %2794 = vmatmul.mubr.f32.gmra.mrb[0].mxu0 %v242
        %v2795 = vpop.f32.mrb[0].mxu0
        %v2796 = vadd.f32 %v2725, %v2795
        %v2797 = vpop.f32.mrb[0].mxu0
        %v2798 = vadd.f32 %v2727, %v2797
        %2799 = vdwg.mxu0
        %2800 = vmatprep.subr.mxu0 %v1531
        %2801 = vmatpush1.msra.mxu0 %v1530
        %2802 = vmatprep.subr.mxu0 %v1535
        %2803 = vmatpush1.msra.mxu0 %v1534
        %2804 = vmatprep.subr.mxu0 %v1539
        %2805 = vmatpush1.msra.mxu0 %v1538
        %2806 = vmatprep.subr.mxu0 %v1543
        %2807 = vmatpush1.msra.mxu0 %v1542
        %2808 = vmatprep.subr.mxu0 %v1547
        %2809 = vmatpush1.msra.mxu0 %v1546
        %2810 = vmatprep.subr.mxu0 %v1551
        %2811 = vmatpush1.msra.mxu0 %v1550
        %2812 = vmatprep.subr.mxu0 %v1555
        %2813 = vmatpush1.msra.mxu0 %v1554
        %2814 = vmatprep.subr.mxu0 %v1559
        %2815 = vmatpush1.msra.mxu0 %v1558
        %2816 = vmatprep.subr.mxu0 %v1563
        %2817 = vmatpush1.msra.mxu0 %v1562
        %2818 = vmatprep.subr.mxu0 %v1567
        %2819 = vmatpush1.msra.mxu0 %v1566
        %2820 = vmatprep.subr.mxu0 %v1571
        %2821 = vmatpush1.msra.mxu0 %v1570
        %2822 = vmatprep.subr.mxu0 %v1575
        %2823 = vmatpush1.msra.mxu0 %v1574
        %2824 = vmatprep.subr.mxu0 %v1579
        %2825 = vmatpush1.msra.mxu0 %v1578
        %2826 = vmatprep.subr.mxu0 %v1583
        %2827 = vmatpush1.msra.mxu0 %v1582
        %2828 = vmatprep.subr.mxu0 %v1587
        %2829 = vmatpush1.msra.mxu0 %v1586
        %2830 = vmatprep.subr.mxu0 %v1591
        %2831 = vmatpush1.msra.mxu0 %v1590
        %2832 = vmatprep.subr.mxu0 %v1595
        %2833 = vmatpush1.msra.mxu0 %v1594
        %2834 = vmatprep.subr.mxu0 %v1599
        %2835 = vmatpush1.msra.mxu0 %v1598
        %2836 = vmatprep.subr.mxu0 %v1603
        %2837 = vmatpush1.msra.mxu0 %v1602
        %2838 = vmatprep.subr.mxu0 %v1607
        %2839 = vmatpush1.msra.mxu0 %v1606
        %2840 = vmatprep.subr.mxu0 %v1611
        %2841 = vmatpush1.msra.mxu0 %v1610
        %2842 = vmatprep.subr.mxu0 %v1615
        %2843 = vmatpush1.msra.mxu0 %v1614
        %2844 = vmatprep.subr.mxu0 %v1619
        %2845 = vmatpush1.msra.mxu0 %v1618
        %2846 = vmatprep.subr.mxu0 %v1623
        %2847 = vmatpush1.msra.mxu0 %v1622
        %2848 = vmatprep.subr.mxu0 %v1627
        %2849 = vmatpush1.msra.mxu0 %v1626
        %2850 = vmatprep.subr.mxu0 %v1631
        %2851 = vmatpush1.msra.mxu0 %v1630
        %2852 = vmatprep.subr.mxu0 %v1635
        %2853 = vmatpush1.msra.mxu0 %v1634
        %2854 = vmatprep.subr.mxu0 %v1639
        %2855 = vmatpush1.msra.mxu0 %v1638
        %2856 = vmatprep.subr.mxu0 %v1643
        %2857 = vmatpush1.msra.mxu0 %v1642
        %2858 = vmatprep.subr.mxu0 %v1647
        %2859 = vmatpush1.msra.mxu0 %v1646
        %2860 = vmatprep.subr.mxu0 %v1651
        %2861 = vmatpush1.msra.mxu0 %v1650
        %2862 = vmatprep.subr.mxu0 %v1655
        %2863 = vmatpush1.msra.mxu0 %v1654
        %2864 = vmatprep.mubr.f32.mxu0 %v245
        %2865 = vmatmul.mubr.f32.gmra.mrb[0].mxu0 %v244
        %v2866 = vpop.f32.mrb[0].mxu0
        %v2867 = vadd.f32 %v2796, %v2866
        %v2868 = vpop.f32.mrb[0].mxu0
        %v2869 = vadd.f32 %v2798, %v2868
        %2870 = vdwg.mxu0
        %2871 = vmatprep.subr.mxu0 %v1659
        %2872 = vmatpush1.msra.mxu0 %v1658
        %2873 = vmatprep.subr.mxu0 %v1663
        %2874 = vmatpush1.msra.mxu0 %v1662
        %2875 = vmatprep.subr.mxu0 %v1667
        %2876 = vmatpush1.msra.mxu0 %v1666
        %2877 = vmatprep.subr.mxu0 %v1671
        %2878 = vmatpush1.msra.mxu0 %v1670
        %2879 = vmatprep.subr.mxu0 %v1675
        %2880 = vmatpush1.msra.mxu0 %v1674
        %2881 = vmatprep.subr.mxu0 %v1679
        %2882 = vmatpush1.msra.mxu0 %v1678
        %2883 = vmatprep.subr.mxu0 %v1683
        %2884 = vmatpush1.msra.mxu0 %v1682
        %2885 = vmatprep.subr.mxu0 %v1687
        %2886 = vmatpush1.msra.mxu0 %v1686
        %2887 = vmatprep.subr.mxu0 %v1691
        %2888 = vmatpush1.msra.mxu0 %v1690
        %2889 = vmatprep.subr.mxu0 %v1695
        %2890 = vmatpush1.msra.mxu0 %v1694
        %2891 = vmatprep.subr.mxu0 %v1699
        %2892 = vmatpush1.msra.mxu0 %v1698
        %2893 = vmatprep.subr.mxu0 %v1703
        %2894 = vmatpush1.msra.mxu0 %v1702
        %2895 = vmatprep.subr.mxu0 %v1707
        %2896 = vmatpush1.msra.mxu0 %v1706
        %2897 = vmatprep.subr.mxu0 %v1711
        %2898 = vmatpush1.msra.mxu0 %v1710
        %2899 = vmatprep.subr.mxu0 %v1715
        %2900 = vmatpush1.msra.mxu0 %v1714
        %2901 = vmatprep.subr.mxu0 %v1719
        %2902 = vmatpush1.msra.mxu0 %v1718
        %2903 = vmatprep.subr.mxu0 %v1723
        %2904 = vmatpush1.msra.mxu0 %v1722
        %2905 = vmatprep.subr.mxu0 %v1727
        %2906 = vmatpush1.msra.mxu0 %v1726
        %2907 = vmatprep.subr.mxu0 %v1731
        %2908 = vmatpush1.msra.mxu0 %v1730
        %2909 = vmatprep.subr.mxu0 %v1735
        %2910 = vmatpush1.msra.mxu0 %v1734
        %2911 = vmatprep.subr.mxu0 %v1739
        %2912 = vmatpush1.msra.mxu0 %v1738
        %2913 = vmatprep.subr.mxu0 %v1743
        %2914 = vmatpush1.msra.mxu0 %v1742
        %2915 = vmatprep.subr.mxu0 %v1747
        %2916 = vmatpush1.msra.mxu0 %v1746
        %2917 = vmatprep.subr.mxu0 %v1751
        %2918 = vmatpush1.msra.mxu0 %v1750
        %2919 = vmatprep.subr.mxu0 %v1755
        %2920 = vmatpush1.msra.mxu0 %v1754
        %2921 = vmatprep.subr.mxu0 %v1759
        %2922 = vmatpush1.msra.mxu0 %v1758
        %2923 = vmatprep.subr.mxu0 %v1763
        %2924 = vmatpush1.msra.mxu0 %v1762
        %2925 = vmatprep.subr.mxu0 %v1767
        %2926 = vmatpush1.msra.mxu0 %v1766
        %2927 = vmatprep.subr.mxu0 %v1771
        %2928 = vmatpush1.msra.mxu0 %v1770
        %2929 = vmatprep.subr.mxu0 %v1775
        %2930 = vmatpush1.msra.mxu0 %v1774
        %2931 = vmatprep.subr.mxu0 %v1779
        %2932 = vmatpush1.msra.mxu0 %v1778
        %2933 = vmatprep.subr.mxu0 %v1783
        %2934 = vmatpush1.msra.mxu0 %v1782
        %2935 = vmatprep.mubr.f32.mxu0 %v247
        %2936 = vmatmul.mubr.f32.gmra.mrb[0].mxu0 %v246
        %v2937 = vpop.f32.mrb[0].mxu0
        %v2938 = vadd.f32 %v2867, %v2937
        %v2939 = vpop.f32.mrb[0].mxu0
        %v2940 = vadd.f32 %v2869, %v2939
        %2941 = vdwg.mxu0
        %2942 = vst [vmem:[%s230] sm:$0xff] %v2370
        %2943 = vst [vmem:[%s230 + $0x8] sm:$0xff] %v2372
        %2944 = vst [vmem:[%s230 + $0x10] sm:$0xff] %v2938
        %2945 = vst [vmem:[%s230 + $0x18] sm:$0xff] %v2940
        %s2946 = smul.u32 4, %s20
        %p2947 = scmp.lt.s32.totalorder %s2946, 7
        %s2948 = scalar_select %p2947, %s2946, 7
        %s2949 = smul.addr %s2948, 8
        %s2950 = scalar_lea.vmem %s3, %s2949
        // Predicated region
        $region41: #{classifier_clr_forward.3} parent=31 // pred_check
          %p2951 = pneg %p111
        $region42: #{classifier_clr_forward.3} parent=31 // pred_check_branch
          %2953 = sbr.rel (%p2951) target = $region44
        $region43: #{classifier_clr_forward.3} parent=31 // pred_region
          %s2954 = smul.u32 4, %s20
        $region44: #{classifier_clr_forward.3} parent=31 // pred_fallthru
          _
      $region32: #{classifier_clr_forward.3} parent=5 // pred_fallthru
        _
      %p2955 = scmp.le.s32.totalorder 2, %s15
      // Predicated region
      $region45: #{classifier_clr_forward.3} parent=5 // pred_check
        %p2956 = pneg %p2955
      $region46: #{classifier_clr_forward.3} parent=5 // pred_check_branch
        %2958 = sbr.rel (%p2956) target = $region48
      $region47: #{classifier_clr_forward.3} parent=5 // pred_region
        %s2959 = ssub.s32 %s15, 2
        // Predicated region
        $region49: #{classifier_clr_forward.3} parent=47 // pred_check
          %p2960 = pneg %p117
        $region50: #{classifier_clr_forward.3} parent=47 // pred_check_branch
          %2962 = sbr.rel (%p2960) target = $region52
        $region51: #{classifier_clr_forward.3} parent=47 // pred_region
          %s2963 = smul.u32 4, %s21
          %p2964 = scmp.lt.s32.totalorder %s2963, 7
          %s2965 = scalar_select %p2964, %s2963, 7
          %s2966 = smul.addr %s2965, 8
          %s2967 = scalar_lea.vmem %s3, %s2966
        $region52: #{classifier_clr_forward.3} parent=47 // pred_fallthru
          _
      $region48: #{classifier_clr_forward.3} parent=5 // pred_fallthru
        _
    $region6: #{classifier_clr_forward.3} parent=1 // loop_footer
      %s19 = sadd.s32 1, %s15
    $region7: #{classifier_clr_forward.3} parent=1 // loop_footer_branch
      %14 = sbr.rel target = $region3
    $region8: #{classifier_clr_forward.3} parent=1 // loop_exit
      _
    %2968 = vsyncpa [#allocation3], 1
    %s2969 = scalar_lea.sflag [#allocation3], 1
    %2970 = vsyncpa %s2969, 1
    %2971 = vsyncpa [#allocation5], 1
    %s2972 = scalar_lea.sflag [#allocation5], 1
    %2973 = vsyncpa %s2972, 1

</llo_original>
